<compile_context>
chip_gen: v5e
topology: v5e:2x2
jax: 0.10.0
libtpu: 0.0.40
codegen_flags: <defaults>
</compile_context>

<pallas_src>
import functools
import math

import jax
import jax.numpy as jnp
from jax import lax
from jax.experimental import pallas as pl
from jax.experimental.pallas import tpu as pltpu


# ---------------------------------------------------------------------------
# In-kernel math helpers (f32 epilogues; v5e has no bf16 VPU/EUP).
# ---------------------------------------------------------------------------

def _layer_norm(x, gamma, beta, eps=1e-5):
    # x: (M, E); gamma/beta: (1, E). PyTorch LayerNorm: biased variance, eps=1e-5.
    mean = jnp.mean(x, axis=-1, keepdims=True)
    xc = x - mean
    var = jnp.mean(xc * xc, axis=-1, keepdims=True)
    inv = lax.rsqrt(var + eps)
    return xc * inv * gamma + beta


def _erf(x):
    # Abramowitz & Stegun 7.1.26 (|err| <= 1.5e-7), built only from exp / abs /
    # where / arithmetic so it is guaranteed to lower in Mosaic (does not rely
    # on a lax.erf lowering rule).  Error is far below bf16 matmul noise.
    a1, a2, a3, a4, a5 = (0.254829592, -0.284496736, 1.421413741,
                          -1.453152027, 1.061405429)
    p = 0.3275911
    ax = jnp.abs(x)
    t = 1.0 / (1.0 + p * ax)
    poly = ((((a5 * t + a4) * t + a3) * t + a2) * t + a1) * t
    y = 1.0 - poly * jnp.exp(-(ax * ax))
    return jnp.where(x < 0.0, -y, y)


def _gelu_exact(x):
    # nn.GELU() default: 0.5 * x * (1 + erf(x / sqrt(2)))
    return 0.5 * x * (1.0 + _erf(x * (1.0 / math.sqrt(2.0))))


# ---------------------------------------------------------------------------
# Kernel
# ---------------------------------------------------------------------------

def encoder_layer_kernel(
    x_ref,
    wqkv_t_ref, bqkv_ref,        # in-proj   (E, 3E) bf16, (1, 3E) f32 (Q cols pre-scaled)
    wo_t_ref, bo_ref,            # out-proj  (E, E) bf16, (1, E) f32
    w1_t_ref, b1_ref,            # fc1       (E, H) bf16, (1, H) f32
    w2_t_ref, b2_ref,            # fc2       (H, E) bf16, (1, E) f32
    g1_ref, be1_ref,             # LayerNorm after attention (f32)
    g2_ref, be2_ref,             # LayerNorm after FFN (f32)
    out_ref,
    qkv_ref,                     # VMEM scratch (M, 3E) bf16
    ctx_ref,                     # VMEM scratch (M, E)  bf16  (per-head attention context)
    *, embed_dim, num_heads, seq_len, b_blk, h_tile,
):
    E, S = embed_dim, seq_len
    hd = E // num_heads
    M = b_blk * S
    H = w1_t_ref.shape[1]
    f32 = jnp.float32
    bf16 = jnp.bfloat16

    # (b_blk, S, E) -> (M, E): major-dim collapse (free view when S % 8 == 0).
    x = x_ref[...].reshape(M, E).astype(f32)

    # ---- Fused QKV projection (bf16 MXU, f32 accumulation) ----
    # 1/sqrt(head_dim) is already folded into the Q columns / Q bias host-side.
    qkv = jnp.dot(x.astype(bf16), wqkv_t_ref[...], preferred_element_type=f32)
    qkv_ref[...] = (qkv + bqkv_ref[...]).astype(bf16)     # (M, 3E) bf16 scratch

    # ---- Multi-head self attention ----
    # fori_loop over the batch block bounds vreg live ranges; heads remain a
    # static Python loop so head offsets are static lane slices (no relayout,
    # no dynamic lane indexing).  Each head writes its context into ctx_ref at
    # lane offset h*hd; the out-projection is then a single full-depth matmul.
    def batch_body(b, carry):
        r0 = b * S
        if S % 8 == 0:
            r0 = pl.multiple_of(r0, 8)
        for h in range(num_heads):
            c0 = h * hd
            qh = qkv_ref[pl.ds(r0, S), c0:c0 + hd]                 # (S, hd) bf16
            kh = qkv_ref[pl.ds(r0, S), E + c0:E + c0 + hd]
            vh = qkv_ref[pl.ds(r0, S), 2 * E + c0:2 * E + c0 + hd]
            # q @ k^T without materializing kh.T: contract last dims directly.
            s = lax.dot_general(qh, kh, (((1,), (1,)), ((), ())),
                                preferred_element_type=f32)        # (S, S) f32
            s = s - jnp.max(s, axis=-1, keepdims=True)
            p = jnp.exp(s)
            denom = jnp.sum(p, axis=-1, keepdims=True)
            p = p * pl.reciprocal(denom, approx=True)   # EUP slot; ~1e-3 rel vs exact
            pv = jnp.dot(p.astype(bf16), vh, preferred_element_type=f32)  # (S, hd)
            ctx_ref[pl.ds(r0, S), c0:c0 + hd] = pv.astype(bf16)
        return carry

    lax.fori_loop(0, b_blk, batch_body, 0)

    # Single (M, E) @ (E, E) out-projection at full MXU contraction depth.
    attn = jnp.dot(ctx_ref[...], wo_t_ref[...], preferred_element_type=f32)
    attn = attn + bo_ref[...]

    # TODO(synk): dropout omitted (eval-mode identity).
    x1 = x + attn
    y = _layer_norm(x1, g1_ref[...], be1_ref[...])      # f32

    # ---- Feed-forward: hidden dim in static chunks of h_tile so the live
    # (M, h_tile) GELU activation stays bounded; one chunk when H <= h_tile. ----
    y_bf = y.astype(bf16)
    h2 = None
    for c0 in range(0, H, h_tile):
        h1 = jnp.dot(y_bf, w1_t_ref[:, c0:c0 + h_tile],
                     preferred_element_type=f32) + b1_ref[:, c0:c0 + h_tile]
        h1 = _gelu_exact(h1)
        part = jnp.dot(h1.astype(bf16), w2_t_ref[c0:c0 + h_tile, :],
                       preferred_element_type=f32)
        h2 = part if h2 is None else h2 + part
    z = y + h2 + b2_ref[...]
    out = _layer_norm(z, g2_ref[...], be2_ref[...])

    out_ref[...] = out.reshape(b_blk, S, E).astype(out_ref.dtype)


# ---------------------------------------------------------------------------
# Host-side weight prep (one-time, not per call)
# ---------------------------------------------------------------------------

def prepare_params(params, *, num_heads, matmul_dtype=jnp.bfloat16):
    """Transpose to x@W layout, fold the attention scale into Q, cast matmul
    operands to bf16.  Biases and LayerNorm params stay f32."""
    E = params["wo"].shape[0]
    hd = E // num_heads
    scale = 1.0 / math.sqrt(hd)

    col_scale = jnp.concatenate([jnp.full((E,), scale, jnp.float32),
                                 jnp.ones((2 * E,), jnp.float32)])
    wqkv_t = params["wqkv"].T.astype(jnp.float32) * col_scale[None, :]   # (E, 3E)
    bqkv = params["bqkv"].astype(jnp.float32) * col_scale                # (3E,)

    row = lambda a: a.reshape(1, -1).astype(jnp.float32)
    return {
        "wqkv_t": wqkv_t.astype(matmul_dtype),
        "bqkv": bqkv.reshape(1, -1),
        "wo_t": params["wo"].T.astype(matmul_dtype),       # (E, E)
        "bo": row(params["bo"]),
        "w1_t": params["w1"].T.astype(matmul_dtype),       # (E, H)
        "b1": row(params["b1"]),
        "w2_t": params["w2"].T.astype(matmul_dtype),       # (H, E)
        "b2": row(params["b2"]),
        "ln1_g": row(params["ln1_g"]), "ln1_b": row(params["ln1_b"]),
        "ln2_g": row(params["ln2_g"]), "ln2_b": row(params["ln2_b"]),
    }


# ---------------------------------------------------------------------------
# Per-generation VMEM budgeting / block selection
# ---------------------------------------------------------------------------

def _tpu_vmem_budget():
    """Returns (per-core VMEM capacity, usable budget, has-2-TensorCores)."""
    try:
        cap = int(getattr(pltpu.get_tpu_info(), "vmem_capacity_bytes", 128 << 20))
    except Exception:
        cap = 128 << 20
    two_cores = cap <= (64 << 20)          # v7x: 64 MiB / TC, 2 TCs per chip
    # Headroom for compiler internal scratch + the x/out pipeline buffers:
    # ~54 MiB on v7x, ~102 MiB on v5e/v6e.
    budget = int(cap * (0.85 if two_cores else 0.80))
    return cap, budget, two_cores


def _pick_h_tile(H, max_tile=1024):
    if H <= 2 * max_tile:
        return H
    for t in range(max_tile, 127, -128):
        if H % t == 0:
            return t
    return H


def _estimate_vmem_bytes(b_blk, S, E, H, h_tile, weight_buffers):
    M = b_blk * S
    w = 2 * (3 * E * E + E * E + 2 * E * H)            # bf16 matmul weights
    w += 4 * (3 * E + E + H + E + 4 * E)               # f32 biases + LN params
    weights = weight_buffers * w
    act = 0
    act += 4 * M * E * 7          # x, attn, x1, y, h2, z, out (f32)
    act += 4 * M * 3 * E          # qkv f32 before the scratch store
    act += 2 * M * 3 * E          # qkv bf16 scratch
    act += 2 * M * E * 2          # ctx bf16 scratch + y bf16 copy
    act += (4 + 2) * M * h_tile   # h1 f32 + bf16 per FFN chunk
    act += 4 * S * S * 3          # per-head (S, S) score / exp workspace
    io = 2 * 2 * 4 * b_blk * S * E    # x + out pipeline double buffers (f32)
    return weights + act + io


def _pick_b_blk(B, S, E, H, h_tile, budget, two_cores, max_blk=8):
    divs = [d for d in range(1, min(max_blk, B) + 1) if B % d == 0]
    fits = [d for d in divs if _estimate_vmem_bytes(d, S, E, H, h_tile, 1) <= budget]
    if not fits:
        fits = [divs[0]]
    if two_cores:
        # Only on 2-TensorCore chips (v7x): keep >= 2 grid steps so both cores
        # get work; on v5e/v6e extra grid steps are pure per-step overhead.
        two_step = [d for d in fits if B // d >= 2]
        if two_step:
            fits = two_step
    return max(fits)


# ---------------------------------------------------------------------------
# Wrapper
# ---------------------------------------------------------------------------

def transformer_encoder_layer(x, prep, *, num_heads, b_blk=None):
    B, S, E = x.shape
    H = prep["w1_t"].shape[1]
    assert E % num_heads == 0, "embed_dim must be divisible by num_heads"

    cap, budget, two_cores = _tpu_vmem_budget()
    h_tile = _pick_h_tile(H)
    assert H % h_tile == 0
    if b_blk is None:
        b_blk = _pick_b_blk(B, S, E, H, h_tile, budget, two_cores)
    assert B % b_blk == 0, "batch must be divisible by the batch block"
    grid = (B // b_blk,)

    kernel = functools.partial(
        encoder_layer_kernel,
        embed_dim=E, num_heads=num_heads, seq_len=S, b_blk=b_blk, h_tile=h_tile)

    M_tot = B * S
    hd = E // num_heads
    cost = pl.CostEstimate(
        flops=int(2 * M_tot * 3 * E * E                  # QKV
                  + 4 * B * num_heads * S * S * hd       # scores + PV
                  + 2 * M_tot * E * E                    # out-proj
                  + 4 * M_tot * E * H),                  # FFN
        transcendentals=int(M_tot * (num_heads * S + H)),
        bytes_accessed=int(2 * (4 * E * E + 2 * E * H) + 4 * (10 * E + H)
                           + 2 * 4 * B * S * E),
    )

    weight_names = ("wqkv_t", "bqkv", "wo_t", "bo", "w1_t", "b1",
                    "w2_t", "b2", "ln1_g", "ln1_b", "ln2_g", "ln2_b")
    weights = [prep[n] for n in weight_names]

    def build_and_call(weight_buffers):
        def wspec(arr):
            nd = arr.ndim
            idx = lambda b, _nd=nd: (0,) * _nd
            if weight_buffers == 1:
                # Grid-invariant weights: single VMEM buffer (second pipeline
                # buffer would be pure VMEM waste with a constant index_map).
                return pl.BlockSpec(arr.shape, idx, pipeline_mode=pl.Buffered(1))
            return pl.BlockSpec(arr.shape, idx)

        est = _estimate_vmem_bytes(b_blk, S, E, H, h_tile, weight_buffers)
        vmem_limit = int(max(32 << 20, min(budget, est + (8 << 20))))

        return pl.pallas_call(
            kernel,
            out_shape=jax.ShapeDtypeStruct((B, S, E), x.dtype),
            grid_spec=pltpu.PrefetchScalarGridSpec(
                num_scalar_prefetch=0,
                grid=grid,
                in_specs=[pl.BlockSpec((b_blk, S, E), lambda b: (b, 0, 0))]
                         + [wspec(w) for w in weights],
                out_specs=pl.BlockSpec((b_blk, S, E), lambda b: (b, 0, 0)),
                scratch_shapes=[
                    pltpu.VMEM((b_blk * S, 3 * E), jnp.bfloat16),   # qkv
                    pltpu.VMEM((b_blk * S, E), jnp.bfloat16),       # per-head ctx
                ],
            ),
            compiler_params=pltpu.CompilerParams(
                dimension_semantics=("parallel",),
                vmem_limit_bytes=vmem_limit,
            ),
            cost_estimate=cost,
        )(x, *weights)

    try:
        return build_and_call(weight_buffers=1)
    except Exception:
        # Fallback for Pallas versions where pipeline_mode=pl.Buffered(1) is
        # not accepted by the pallas_call pipeline: plain (double-buffered)
        # weight BlockSpecs, identical numerics.
        return build_and_call(weight_buffers=2)


# ---------------------------------------------------------------------------
# Parameter init (matches the PyTorch module's parameter set)
# ---------------------------------------------------------------------------

def init_params(key, embed_dim, hidden_dim):
    ks = jax.random.split(key, 8)
    scale = 0.02
    return {
        # nn.MultiheadAttention: in_proj_weight (3E, E), in_proj_bias (3E),
        # out_proj (E, E) + bias (E)
        "wqkv": scale * jax.random.normal(ks[0], (3 * embed_dim, embed_dim), jnp.float32),
        "bqkv": scale * jax.random.normal(ks[1], (3 * embed_dim,), jnp.float32),
        "wo":   scale * jax.random.normal(ks[2], (embed_dim, embed_dim), jnp.float32),
        "bo":   scale * jax.random.normal(ks[3], (embed_dim,), jnp.float32),
        # FeedForward: fc1 (H, E), fc2 (E, H)
        "w1":   scale * jax.random.normal(ks[4], (hidden_dim, embed_dim), jnp.float32),
        "b1":   scale * jax.random.normal(ks[5], (hidden_dim,), jnp.float32),
        "w2":   scale * jax.random.normal(ks[6], (embed_dim, hidden_dim), jnp.float32),
        "b2":   scale * jax.random.normal(ks[7], (embed_dim,), jnp.float32),
        # LayerNorms
        "ln1_g": jnp.ones((embed_dim,), jnp.float32),
        "ln1_b": jnp.zeros((embed_dim,), jnp.float32),
        "ln2_g": jnp.ones((embed_dim,), jnp.float32),
        "ln2_b": jnp.zeros((embed_dim,), jnp.float32),
    }


if __name__ == "__main__":
    # Small, deterministic smoke-test shapes (S multiple of 16 keeps bf16
    # sublane packing aligned for the batch-offset scratch stores).
    B, S, E, NH, HID = 4, 16, 64, 4, 128
    key = jax.random.PRNGKey(0)
    kx, kp = jax.random.split(key)
    x = jax.random.normal(kx, (B, S, E), jnp.float32)

    params = init_params(kp, E, HID)
    prep = prepare_params(params, num_heads=NH)   # one-time weight prep

    out = transformer_encoder_layer(x, prep, num_heads=NH)
    out = jax.block_until_ready(out)
    assert out.shape == (B, S, E)
    assert bool(jnp.isfinite(out).all())
    print("KERNEL_OK")
</pallas_src>

<mosaic_0001>
module attributes {stable_mosaic.version = 11 : i64} {
  func.func @encoder_layer_kernel(%arg0: i32, %arg1: memref<4x16x64xf32, #tpu.memory_space<vmem>>, %arg2: memref<64x192xbf16, #tpu.memory_space<vmem>>, %arg3: memref<1x192xf32, #tpu.memory_space<vmem>>, %arg4: memref<64x64xbf16, #tpu.memory_space<vmem>>, %arg5: memref<1x64xf32, #tpu.memory_space<vmem>>, %arg6: memref<64x128xbf16, #tpu.memory_space<vmem>>, %arg7: memref<1x128xf32, #tpu.memory_space<vmem>>, %arg8: memref<128x64xbf16, #tpu.memory_space<vmem>>, %arg9: memref<1x64xf32, #tpu.memory_space<vmem>>, %arg10: memref<1x64xf32, #tpu.memory_space<vmem>>, %arg11: memref<1x64xf32, #tpu.memory_space<vmem>>, %arg12: memref<1x64xf32, #tpu.memory_space<vmem>>, %arg13: memref<1x64xf32, #tpu.memory_space<vmem>>, %arg14: memref<4x16x64xf32, #tpu.memory_space<vmem>>, %arg15: memref<64x192xbf16, #tpu.memory_space<vmem>>, %arg16: memref<64x64xbf16, #tpu.memory_space<vmem>>) attributes {dimension_semantics = [#tpu.dimension_semantics<parallel>], iteration_bounds = array<i64: 1>, scalar_prefetch = 0 : i64, scratch_operands = 2 : i64, tpu.core_type = #tpu.core_type<tc>, window_params = [{transform_indices = @transform_0, window_bounds = array<i64: 4, 16, 64>}, {pipeline_mode = #tpu.pipeline_mode<synchronous>, transform_indices = @transform_1, window_bounds = array<i64: 64, 192>}, {pipeline_mode = #tpu.pipeline_mode<synchronous>, transform_indices = @transform_2, window_bounds = array<i64: 1, 192>}, {pipeline_mode = #tpu.pipeline_mode<synchronous>, transform_indices = @transform_3, window_bounds = array<i64: 64, 64>}, {pipeline_mode = #tpu.pipeline_mode<synchronous>, transform_indices = @transform_4, window_bounds = array<i64: 1, 64>}, {pipeline_mode = #tpu.pipeline_mode<synchronous>, transform_indices = @transform_5, window_bounds = array<i64: 64, 128>}, {pipeline_mode = #tpu.pipeline_mode<synchronous>, transform_indices = @transform_6, window_bounds = array<i64: 1, 128>}, {pipeline_mode = #tpu.pipeline_mode<synchronous>, transform_indices = @transform_7, window_bounds = array<i64: 128, 64>}, {pipeline_mode = #tpu.pipeline_mode<synchronous>, transform_indices = @transform_8, window_bounds = array<i64: 1, 64>}, {pipeline_mode = #tpu.pipeline_mode<synchronous>, transform_indices = @transform_9, window_bounds = array<i64: 1, 64>}, {pipeline_mode = #tpu.pipeline_mode<synchronous>, transform_indices = @transform_10, window_bounds = array<i64: 1, 64>}, {pipeline_mode = #tpu.pipeline_mode<synchronous>, transform_indices = @transform_11, window_bounds = array<i64: 1, 64>}, {pipeline_mode = #tpu.pipeline_mode<synchronous>, transform_indices = @transform_12, window_bounds = array<i64: 1, 64>}, {transform_indices = @transform_13, window_bounds = array<i64: 4, 16, 64>}]} {
    %c0 = arith.constant 0 : index
    %c0_0 = arith.constant 0 : index
    %c0_1 = arith.constant 0 : index
    %0 = vector.load %arg1[%c0, %c0_0, %c0_1] : memref<4x16x64xf32, #tpu.memory_space<vmem>>, vector<4x16x64xf32>
    %1 = vector.shape_cast %0 : vector<4x16x64xf32> to vector<64x64xf32>
    %2 = arith.truncf %1 : vector<64x64xf32> to vector<64x64xbf16>
    %c0_2 = arith.constant 0 : index
    %c0_3 = arith.constant 0 : index
    %3 = vector.load %arg2[%c0_2, %c0_3] : memref<64x192xbf16, #tpu.memory_space<vmem>>, vector<64x192xbf16>
    %cst = arith.constant dense<0.000000e+00> : vector<64x192xf32>
    %4 = tpu.matmul %2, %3, %cst {dimension_numbers = #tpu.dot_dimension_numbers<[1], [0], [0], [1], [0, 0, 1, 1], [], []>} : vector<64x64xbf16>, vector<64x192xbf16>, vector<64x192xf32> -> vector<64x192xf32>
    %c0_4 = arith.constant 0 : index
    %c0_5 = arith.constant 0 : index
    %5 = vector.load %arg3[%c0_4, %c0_5] : memref<1x192xf32, #tpu.memory_space<vmem>>, vector<1x192xf32>
    %6 = vector.broadcast %5 : vector<1x192xf32> to vector<64x192xf32>
    %7 = arith.addf %4, %6 : vector<64x192xf32>
    %8 = arith.truncf %7 : vector<64x192xf32> to vector<64x192xbf16>
    %c0_6 = arith.constant 0 : index
    %c0_7 = arith.constant 0 : index
    %9 = vector.load %arg15[%c0_6, %c0_7] : memref<64x192xbf16, #tpu.memory_space<vmem>>, vector<64x192xbf16>
    tpu.vector_store %arg15[%c0_6, %c0_7], %8 {strides = array<i32>} : memref<64x192xbf16, #tpu.memory_space<vmem>>, vector<64x192xbf16>,
    %c0_i32 = arith.constant 0 : i32
    %c4_i32 = arith.constant 4 : i32
    %10 = arith.addi %c0_i32, %c4_i32 : i32
    %c1_i32 = arith.constant 1 : i32
    scf.for %arg17 = %c0_i32 to %10 step %c1_i32  : i32 {
      %c16_i32 = arith.constant 16 : i32
      %117 = arith.muli %arg17, %c16_i32 : i32
      %118 = tpu.assume_multiple %117, 8 : i32
      %119 = arith.index_cast %118 : i32 to index
      %c0_62 = arith.constant 0 : index
      %120 = vector.load %arg15[%119, %c0_62] : memref<64x192xbf16, #tpu.memory_space<vmem>>, vector<16x16xbf16>
      %121 = arith.index_cast %118 : i32 to index
      %c64 = arith.constant 64 : index
      %122 = vector.load %arg15[%121, %c64] : memref<64x192xbf16, #tpu.memory_space<vmem>>, vector<16x16xbf16>
      %123 = arith.index_cast %118 : i32 to index
      %c128 = arith.constant 128 : index
      %124 = vector.load %arg15[%123, %c128] : memref<64x192xbf16, #tpu.memory_space<vmem>>, vector<16x16xbf16>
      %cst_63 = arith.constant dense<0.000000e+00> : vector<16x16xf32>
      %125 = tpu.matmul %120, %122, %cst_63 {dimension_numbers = #tpu.dot_dimension_numbers<[1], [1], [0], [0], [0, 0, 1, 0], [], []>} : vector<16x16xbf16>, vector<16x16xbf16>, vector<16x16xf32> -> vector<16x16xf32>
      %cst_64 = arith.constant dense<0xFF800000> : vector<16xf32>
      %126 = vector.multi_reduction <maximumf>, %125, %cst_64 [1] : vector<16x16xf32> to vector<16xf32>
      %127 = vector.shape_cast %126 : vector<16xf32> to vector<16x1xf32>
      %128 = vector.broadcast %127 : vector<16x1xf32> to vector<16x16xf32>
      %129 = arith.subf %125, %128 : vector<16x16xf32>
      %130 = math.exp %129 : vector<16x16xf32>
      %cst_65 = arith.constant dense<0.000000e+00> : vector<16xf32>
      %131 = vector.multi_reduction <add>, %130, %cst_65 [1] : vector<16x16xf32> to vector<16xf32>
      %132 = vector.shape_cast %131 : vector<16xf32> to vector<16x1xf32>
      %133 = tpu.reciprocal %132 {approx = true} : vector<16x1xf32> -> vector<16x1xf32>
      %134 = vector.broadcast %133 : vector<16x1xf32> to vector<16x16xf32>
      %135 = arith.mulf %130, %134 : vector<16x16xf32>
      %136 = arith.truncf %135 : vector<16x16xf32> to vector<16x16xbf16>
      %cst_66 = arith.constant dense<0.000000e+00> : vector<16x16xf32>
      %137 = tpu.matmul %136, %124, %cst_66 {dimension_numbers = #tpu.dot_dimension_numbers<[1], [0], [0], [1], [0, 0, 1, 1], [], []>} : vector<16x16xbf16>, vector<16x16xbf16>, vector<16x16xf32> -> vector<16x16xf32>
      %138 = arith.truncf %137 : vector<16x16xf32> to vector<16x16xbf16>
      %139 = arith.index_cast %118 : i32 to index
      %c0_67 = arith.constant 0 : index
      %140 = vector.load %arg16[%139, %c0_67] : memref<64x64xbf16, #tpu.memory_space<vmem>>, vector<16x16xbf16>
      tpu.vector_store %arg16[%139, %c0_67], %138 {strides = array<i32>} : memref<64x64xbf16, #tpu.memory_space<vmem>>, vector<16x16xbf16>,
      %141 = arith.index_cast %118 : i32 to index
      %c16 = arith.constant 16 : index
      %142 = vector.load %arg15[%141, %c16] : memref<64x192xbf16, #tpu.memory_space<vmem>>, vector<16x16xbf16>
      %143 = arith.index_cast %118 : i32 to index
      %c80 = arith.constant 80 : index
      %144 = vector.load %arg15[%143, %c80] : memref<64x192xbf16, #tpu.memory_space<vmem>>, vector<16x16xbf16>
      %145 = arith.index_cast %118 : i32 to index
      %c144 = arith.constant 144 : index
      %146 = vector.load %arg15[%145, %c144] : memref<64x192xbf16, #tpu.memory_space<vmem>>, vector<16x16xbf16>
      %cst_68 = arith.constant dense<0.000000e+00> : vector<16x16xf32>
      %147 = tpu.matmul %142, %144, %cst_68 {dimension_numbers = #tpu.dot_dimension_numbers<[1], [1], [0], [0], [0, 0, 1, 0], [], []>} : vector<16x16xbf16>, vector<16x16xbf16>, vector<16x16xf32> -> vector<16x16xf32>
      %cst_69 = arith.constant dense<0xFF800000> : vector<16xf32>
      %148 = vector.multi_reduction <maximumf>, %147, %cst_69 [1] : vector<16x16xf32> to vector<16xf32>
      %149 = vector.shape_cast %148 : vector<16xf32> to vector<16x1xf32>
      %150 = vector.broadcast %149 : vector<16x1xf32> to vector<16x16xf32>
      %151 = arith.subf %147, %150 : vector<16x16xf32>
      %152 = math.exp %151 : vector<16x16xf32>
      %cst_70 = arith.constant dense<0.000000e+00> : vector<16xf32>
      %153 = vector.multi_reduction <add>, %152, %cst_70 [1] : vector<16x16xf32> to vector<16xf32>
      %154 = vector.shape_cast %153 : vector<16xf32> to vector<16x1xf32>
      %155 = tpu.reciprocal %154 {approx = true} : vector<16x1xf32> -> vector<16x1xf32>
      %156 = vector.broadcast %155 : vector<16x1xf32> to vector<16x16xf32>
      %157 = arith.mulf %152, %156 : vector<16x16xf32>
      %158 = arith.truncf %157 : vector<16x16xf32> to vector<16x16xbf16>
      %cst_71 = arith.constant dense<0.000000e+00> : vector<16x16xf32>
      %159 = tpu.matmul %158, %146, %cst_71 {dimension_numbers = #tpu.dot_dimension_numbers<[1], [0], [0], [1], [0, 0, 1, 1], [], []>} : vector<16x16xbf16>, vector<16x16xbf16>, vector<16x16xf32> -> vector<16x16xf32>
      %160 = arith.truncf %159 : vector<16x16xf32> to vector<16x16xbf16>
      %161 = arith.index_cast %118 : i32 to index
      %c16_72 = arith.constant 16 : index
      %162 = vector.load %arg16[%161, %c16_72] : memref<64x64xbf16, #tpu.memory_space<vmem>>, vector<16x16xbf16>
      tpu.vector_store %arg16[%161, %c16_72], %160 {strides = array<i32>} : memref<64x64xbf16, #tpu.memory_space<vmem>>, vector<16x16xbf16>,
      %163 = arith.index_cast %118 : i32 to index
      %c32 = arith.constant 32 : index
      %164 = vector.load %arg15[%163, %c32] : memref<64x192xbf16, #tpu.memory_space<vmem>>, vector<16x16xbf16>
      %165 = arith.index_cast %118 : i32 to index
      %c96 = arith.constant 96 : index
      %166 = vector.load %arg15[%165, %c96] : memref<64x192xbf16, #tpu.memory_space<vmem>>, vector<16x16xbf16>
      %167 = arith.index_cast %118 : i32 to index
      %c160 = arith.constant 160 : index
      %168 = vector.load %arg15[%167, %c160] : memref<64x192xbf16, #tpu.memory_space<vmem>>, vector<16x16xbf16>
      %cst_73 = arith.constant dense<0.000000e+00> : vector<16x16xf32>
      %169 = tpu.matmul %164, %166, %cst_73 {dimension_numbers = #tpu.dot_dimension_numbers<[1], [1], [0], [0], [0, 0, 1, 0], [], []>} : vector<16x16xbf16>, vector<16x16xbf16>, vector<16x16xf32> -> vector<16x16xf32>
      %cst_74 = arith.constant dense<0xFF800000> : vector<16xf32>
      %170 = vector.multi_reduction <maximumf>, %169, %cst_74 [1] : vector<16x16xf32> to vector<16xf32>
      %171 = vector.shape_cast %170 : vector<16xf32> to vector<16x1xf32>
      %172 = vector.broadcast %171 : vector<16x1xf32> to vector<16x16xf32>
      %173 = arith.subf %169, %172 : vector<16x16xf32>
      %174 = math.exp %173 : vector<16x16xf32>
      %cst_75 = arith.constant dense<0.000000e+00> : vector<16xf32>
      %175 = vector.multi_reduction <add>, %174, %cst_75 [1] : vector<16x16xf32> to vector<16xf32>
      %176 = vector.shape_cast %175 : vector<16xf32> to vector<16x1xf32>
      %177 = tpu.reciprocal %176 {approx = true} : vector<16x1xf32> -> vector<16x1xf32>
      %178 = vector.broadcast %177 : vector<16x1xf32> to vector<16x16xf32>
      %179 = arith.mulf %174, %178 : vector<16x16xf32>
      %180 = arith.truncf %179 : vector<16x16xf32> to vector<16x16xbf16>
      %cst_76 = arith.constant dense<0.000000e+00> : vector<16x16xf32>
      %181 = tpu.matmul %180, %168, %cst_76 {dimension_numbers = #tpu.dot_dimension_numbers<[1], [0], [0], [1], [0, 0, 1, 1], [], []>} : vector<16x16xbf16>, vector<16x16xbf16>, vector<16x16xf32> -> vector<16x16xf32>
      %182 = arith.truncf %181 : vector<16x16xf32> to vector<16x16xbf16>
      %183 = arith.index_cast %118 : i32 to index
      %c32_77 = arith.constant 32 : index
      %184 = vector.load %arg16[%183, %c32_77] : memref<64x64xbf16, #tpu.memory_space<vmem>>, vector<16x16xbf16>
      tpu.vector_store %arg16[%183, %c32_77], %182 {strides = array<i32>} : memref<64x64xbf16, #tpu.memory_space<vmem>>, vector<16x16xbf16>,
      %185 = arith.index_cast %118 : i32 to index
      %c48 = arith.constant 48 : index
      %186 = vector.load %arg15[%185, %c48] : memref<64x192xbf16, #tpu.memory_space<vmem>>, vector<16x16xbf16>
      %187 = arith.index_cast %118 : i32 to index
      %c112 = arith.constant 112 : index
      %188 = vector.load %arg15[%187, %c112] : memref<64x192xbf16, #tpu.memory_space<vmem>>, vector<16x16xbf16>
      %189 = arith.index_cast %118 : i32 to index
      %c176 = arith.constant 176 : index
      %190 = vector.load %arg15[%189, %c176] : memref<64x192xbf16, #tpu.memory_space<vmem>>, vector<16x16xbf16>
      %cst_78 = arith.constant dense<0.000000e+00> : vector<16x16xf32>
      %191 = tpu.matmul %186, %188, %cst_78 {dimension_numbers = #tpu.dot_dimension_numbers<[1], [1], [0], [0], [0, 0, 1, 0], [], []>} : vector<16x16xbf16>, vector<16x16xbf16>, vector<16x16xf32> -> vector<16x16xf32>
      %cst_79 = arith.constant dense<0xFF800000> : vector<16xf32>
      %192 = vector.multi_reduction <maximumf>, %191, %cst_79 [1] : vector<16x16xf32> to vector<16xf32>
      %193 = vector.shape_cast %192 : vector<16xf32> to vector<16x1xf32>
      %194 = vector.broadcast %193 : vector<16x1xf32> to vector<16x16xf32>
      %195 = arith.subf %191, %194 : vector<16x16xf32>
      %196 = math.exp %195 : vector<16x16xf32>
      %cst_80 = arith.constant dense<0.000000e+00> : vector<16xf32>
      %197 = vector.multi_reduction <add>, %196, %cst_80 [1] : vector<16x16xf32> to vector<16xf32>
      %198 = vector.shape_cast %197 : vector<16xf32> to vector<16x1xf32>
      %199 = tpu.reciprocal %198 {approx = true} : vector<16x1xf32> -> vector<16x1xf32>
      %200 = vector.broadcast %199 : vector<16x1xf32> to vector<16x16xf32>
      %201 = arith.mulf %196, %200 : vector<16x16xf32>
      %202 = arith.truncf %201 : vector<16x16xf32> to vector<16x16xbf16>
      %cst_81 = arith.constant dense<0.000000e+00> : vector<16x16xf32>
      %203 = tpu.matmul %202, %190, %cst_81 {dimension_numbers = #tpu.dot_dimension_numbers<[1], [0], [0], [1], [0, 0, 1, 1], [], []>} : vector<16x16xbf16>, vector<16x16xbf16>, vector<16x16xf32> -> vector<16x16xf32>
      %204 = arith.truncf %203 : vector<16x16xf32> to vector<16x16xbf16>
      %205 = arith.index_cast %118 : i32 to index
      %c48_82 = arith.constant 48 : index
      %206 = vector.load %arg16[%205, %c48_82] : memref<64x64xbf16, #tpu.memory_space<vmem>>, vector<16x16xbf16>
      tpu.vector_store %arg16[%205, %c48_82], %204 {strides = array<i32>} : memref<64x64xbf16, #tpu.memory_space<vmem>>, vector<16x16xbf16>,
    }
    %c4_i32_8 = arith.constant 4 : i32
    %c0_9 = arith.constant 0 : index
    %c0_10 = arith.constant 0 : index
    %11 = vector.load %arg16[%c0_9, %c0_10] : memref<64x64xbf16, #tpu.memory_space<vmem>>, vector<64x64xbf16>
    %c0_11 = arith.constant 0 : index
    %c0_12 = arith.constant 0 : index
    %12 = vector.load %arg4[%c0_11, %c0_12] : memref<64x64xbf16, #tpu.memory_space<vmem>>, vector<64x64xbf16>
    %cst_13 = arith.constant dense<0.000000e+00> : vector<64x64xf32>
    %13 = tpu.matmul %11, %12, %cst_13 {dimension_numbers = #tpu.dot_dimension_numbers<[1], [0], [0], [1], [0, 0, 1, 1], [], []>} : vector<64x64xbf16>, vector<64x64xbf16>, vector<64x64xf32> -> vector<64x64xf32>
    %c0_14 = arith.constant 0 : index
    %c0_15 = arith.constant 0 : index
    %14 = vector.load %arg5[%c0_14, %c0_15] : memref<1x64xf32, #tpu.memory_space<vmem>>, vector<1x64xf32>
    %15 = vector.broadcast %14 : vector<1x64xf32> to vector<64x64xf32>
    %16 = arith.addf %13, %15 : vector<64x64xf32>
    %17 = arith.addf %1, %16 : vector<64x64xf32>
    %c0_16 = arith.constant 0 : index
    %c0_17 = arith.constant 0 : index
    %18 = vector.load %arg10[%c0_16, %c0_17] : memref<1x64xf32, #tpu.memory_space<vmem>>, vector<1x64xf32>
    %c0_18 = arith.constant 0 : index
    %c0_19 = arith.constant 0 : index
    %19 = vector.load %arg11[%c0_18, %c0_19] : memref<1x64xf32, #tpu.memory_space<vmem>>, vector<1x64xf32>
    %cst_20 = arith.constant dense<0.000000e+00> : vector<64xf32>
    %20 = vector.multi_reduction <add>, %17, %cst_20 [1] : vector<64x64xf32> to vector<64xf32>
    %21 = vector.shape_cast %20 : vector<64xf32> to vector<64x1xf32>
    %cst_21 = arith.constant 6.400000e+01 : f32
    %22 = vector.broadcast %cst_21 : f32 to vector<64x1xf32>
    %23 = arith.divf %21, %22 : vector<64x1xf32>
    %24 = vector.broadcast %23 : vector<64x1xf32> to vector<64x64xf32>
    %25 = arith.subf %17, %24 : vector<64x64xf32>
    %26 = arith.mulf %25, %25 : vector<64x64xf32>
    %cst_22 = arith.constant dense<0.000000e+00> : vector<64xf32>
    %27 = vector.multi_reduction <add>, %26, %cst_22 [1] : vector<64x64xf32> to vector<64xf32>
    %28 = vector.shape_cast %27 : vector<64xf32> to vector<64x1xf32>
    %cst_23 = arith.constant 6.400000e+01 : f32
    %29 = vector.broadcast %cst_23 : f32 to vector<64x1xf32>
    %30 = arith.divf %28, %29 : vector<64x1xf32>
    %cst_24 = arith.constant 9.99999974E-6 : f32
    %31 = vector.broadcast %cst_24 : f32 to vector<64x1xf32>
    %32 = arith.addf %30, %31 : vector<64x1xf32>
    %33 = math.rsqrt %32 : vector<64x1xf32>
    %34 = vector.broadcast %33 : vector<64x1xf32> to vector<64x64xf32>
    %35 = arith.mulf %25, %34 : vector<64x64xf32>
    %36 = vector.broadcast %18 : vector<1x64xf32> to vector<64x64xf32>
    %37 = arith.mulf %35, %36 : vector<64x64xf32>
    %38 = vector.broadcast %19 : vector<1x64xf32> to vector<64x64xf32>
    %39 = arith.addf %37, %38 : vector<64x64xf32>
    %40 = arith.truncf %39 : vector<64x64xf32> to vector<64x64xbf16>
    %c0_25 = arith.constant 0 : index
    %c0_26 = arith.constant 0 : index
    %41 = vector.load %arg6[%c0_25, %c0_26] : memref<64x128xbf16, #tpu.memory_space<vmem>>, vector<64x128xbf16>
    %cst_27 = arith.constant dense<0.000000e+00> : vector<64x128xf32>
    %42 = tpu.matmul %40, %41, %cst_27 {dimension_numbers = #tpu.dot_dimension_numbers<[1], [0], [0], [1], [0, 0, 1, 1], [], []>} : vector<64x64xbf16>, vector<64x128xbf16>, vector<64x128xf32> -> vector<64x128xf32>
    %c0_28 = arith.constant 0 : index
    %c0_29 = arith.constant 0 : index
    %43 = vector.load %arg7[%c0_28, %c0_29] : memref<1x128xf32, #tpu.memory_space<vmem>>, vector<1x128xf32>
    %44 = vector.broadcast %43 : vector<1x128xf32> to vector<64x128xf32>
    %45 = arith.addf %42, %44 : vector<64x128xf32>
    %cst_30 = arith.constant 5.000000e-01 : f32
    %46 = vector.broadcast %cst_30 : f32 to vector<64x128xf32>
    %47 = arith.mulf %46, %45 : vector<64x128xf32>
    %cst_31 = arith.constant 0.707106769 : f32
    %48 = vector.broadcast %cst_31 : f32 to vector<64x128xf32>
    %49 = arith.mulf %45, %48 : vector<64x128xf32>
    %50 = math.absf %49 : vector<64x128xf32>
    %cst_32 = arith.constant 0.327591091 : f32
    %51 = vector.broadcast %cst_32 : f32 to vector<64x128xf32>
    %52 = arith.mulf %51, %50 : vector<64x128xf32>
    %cst_33 = arith.constant 1.000000e+00 : f32
    %53 = vector.broadcast %cst_33 : f32 to vector<64x128xf32>
    %54 = arith.addf %53, %52 : vector<64x128xf32>
    %cst_34 = arith.constant 1.000000e+00 : f32
    %55 = vector.broadcast %cst_34 : f32 to vector<64x128xf32>
    %56 = arith.divf %55, %54 : vector<64x128xf32>
    %cst_35 = arith.constant 1.06140542 : f32
    %57 = vector.broadcast %cst_35 : f32 to vector<64x128xf32>
    %58 = arith.mulf %57, %56 : vector<64x128xf32>
    %cst_36 = arith.constant -1.45315206 : f32
    %59 = vector.broadcast %cst_36 : f32 to vector<64x128xf32>
    %60 = arith.addf %58, %59 : vector<64x128xf32>
    %61 = arith.mulf %60, %56 : vector<64x128xf32>
    %cst_37 = arith.constant 1.42141378 : f32
    %62 = vector.broadcast %cst_37 : f32 to vector<64x128xf32>
    %63 = arith.addf %61, %62 : vector<64x128xf32>
    %64 = arith.mulf %63, %56 : vector<64x128xf32>
    %cst_38 = arith.constant -0.284496725 : f32
    %65 = vector.broadcast %cst_38 : f32 to vector<64x128xf32>
    %66 = arith.addf %64, %65 : vector<64x128xf32>
    %67 = arith.mulf %66, %56 : vector<64x128xf32>
    %cst_39 = arith.constant 0.254829586 : f32
    %68 = vector.broadcast %cst_39 : f32 to vector<64x128xf32>
    %69 = arith.addf %67, %68 : vector<64x128xf32>
    %70 = arith.mulf %69, %56 : vector<64x128xf32>
    %71 = arith.mulf %50, %50 : vector<64x128xf32>
    %cst_40 = arith.constant 0.000000e+00 : f32
    %72 = vector.broadcast %cst_40 : f32 to vector<64x128xf32>
    %73 = arith.subf %72, %71 : vector<64x128xf32>
    %74 = math.exp %73 : vector<64x128xf32>
    %75 = arith.mulf %70, %74 : vector<64x128xf32>
    %cst_41 = arith.constant 1.000000e+00 : f32
    %76 = vector.broadcast %cst_41 : f32 to vector<64x128xf32>
    %77 = arith.subf %76, %75 : vector<64x128xf32>
    %cst_42 = arith.constant 0.000000e+00 : f32
    %78 = vector.broadcast %cst_42 : f32 to vector<64x128xf32>
    %79 = arith.cmpf olt, %49, %78 : vector<64x128xf32>
    %cst_43 = arith.constant 0.000000e+00 : f32
    %80 = vector.broadcast %cst_43 : f32 to vector<64x128xf32>
    %81 = arith.subf %80, %77 : vector<64x128xf32>
    %82 = arith.select %79, %81, %77 : vector<64x128xi1>, vector<64x128xf32>
    %cst_44 = arith.constant 1.000000e+00 : f32
    %83 = vector.broadcast %cst_44 : f32 to vector<64x128xf32>
    %84 = arith.addf %83, %82 : vector<64x128xf32>
    %85 = arith.mulf %47, %84 : vector<64x128xf32>
    %86 = arith.truncf %85 : vector<64x128xf32> to vector<64x128xbf16>
    %c0_45 = arith.constant 0 : index
    %c0_46 = arith.constant 0 : index
    %87 = vector.load %arg8[%c0_45, %c0_46] : memref<128x64xbf16, #tpu.memory_space<vmem>>, vector<128x64xbf16>
    %cst_47 = arith.constant dense<0.000000e+00> : vector<64x64xf32>
    %88 = tpu.matmul %86, %87, %cst_47 {dimension_numbers = #tpu.dot_dimension_numbers<[1], [0], [0], [1], [0, 0, 1, 1], [], []>} : vector<64x128xbf16>, vector<128x64xbf16>, vector<64x64xf32> -> vector<64x64xf32>
    %89 = arith.addf %39, %88 : vector<64x64xf32>
    %c0_48 = arith.constant 0 : index
    %c0_49 = arith.constant 0 : index
    %90 = vector.load %arg9[%c0_48, %c0_49] : memref<1x64xf32, #tpu.memory_space<vmem>>, vector<1x64xf32>
    %91 = vector.broadcast %90 : vector<1x64xf32> to vector<64x64xf32>
    %92 = arith.addf %89, %91 : vector<64x64xf32>
    %c0_50 = arith.constant 0 : index
    %c0_51 = arith.constant 0 : index
    %93 = vector.load %arg12[%c0_50, %c0_51] : memref<1x64xf32, #tpu.memory_space<vmem>>, vector<1x64xf32>
    %c0_52 = arith.constant 0 : index
    %c0_53 = arith.constant 0 : index
    %94 = vector.load %arg13[%c0_52, %c0_53] : memref<1x64xf32, #tpu.memory_space<vmem>>, vector<1x64xf32>
    %cst_54 = arith.constant dense<0.000000e+00> : vector<64xf32>
    %95 = vector.multi_reduction <add>, %92, %cst_54 [1] : vector<64x64xf32> to vector<64xf32>
    %96 = vector.shape_cast %95 : vector<64xf32> to vector<64x1xf32>
    %cst_55 = arith.constant 6.400000e+01 : f32
    %97 = vector.broadcast %cst_55 : f32 to vector<64x1xf32>
    %98 = arith.divf %96, %97 : vector<64x1xf32>
    %99 = vector.broadcast %98 : vector<64x1xf32> to vector<64x64xf32>
    %100 = arith.subf %92, %99 : vector<64x64xf32>
    %101 = arith.mulf %100, %100 : vector<64x64xf32>
    %cst_56 = arith.constant dense<0.000000e+00> : vector<64xf32>
    %102 = vector.multi_reduction <add>, %101, %cst_56 [1] : vector<64x64xf32> to vector<64xf32>
    %103 = vector.shape_cast %102 : vector<64xf32> to vector<64x1xf32>
    %cst_57 = arith.constant 6.400000e+01 : f32
    %104 = vector.broadcast %cst_57 : f32 to vector<64x1xf32>
    %105 = arith.divf %103, %104 : vector<64x1xf32>
    %cst_58 = arith.constant 9.99999974E-6 : f32
    %106 = vector.broadcast %cst_58 : f32 to vector<64x1xf32>
    %107 = arith.addf %105, %106 : vector<64x1xf32>
    %108 = math.rsqrt %107 : vector<64x1xf32>
    %109 = vector.broadcast %108 : vector<64x1xf32> to vector<64x64xf32>
    %110 = arith.mulf %100, %109 : vector<64x64xf32>
    %111 = vector.broadcast %93 : vector<1x64xf32> to vector<64x64xf32>
    %112 = arith.mulf %110, %111 : vector<64x64xf32>
    %113 = vector.broadcast %94 : vector<1x64xf32> to vector<64x64xf32>
    %114 = arith.addf %112, %113 : vector<64x64xf32>
    %115 = vector.shape_cast %114 : vector<64x64xf32> to vector<4x16x64xf32>
    %c0_59 = arith.constant 0 : index
    %c0_60 = arith.constant 0 : index
    %c0_61 = arith.constant 0 : index
    %116 = vector.load %arg14[%c0_59, %c0_60, %c0_61] : memref<4x16x64xf32, #tpu.memory_space<vmem>>, vector<4x16x64xf32>
    tpu.vector_store %arg14[%c0_59, %c0_60, %c0_61], %115 {strides = array<i32>} : memref<4x16x64xf32, #tpu.memory_space<vmem>>, vector<4x16x64xf32>,
    return
  }
  func.func @transform_0(%arg0: i32) -> (i32, i32, i32) {
    %c0_i32 = arith.constant 0 : i32
    %c0_i32_0 = arith.constant 0 : i32
    %c0_i32_1 = arith.constant 0 : i32
    return %arg0, %c0_i32, %c0_i32_0 : i32, i32, i32
  }
  func.func @transform_1(%arg0: i32) -> (i32, i32) {
    %c0_i32 = arith.constant 0 : i32
    %c0_i32_0 = arith.constant 0 : i32
    %c0_i32_1 = arith.constant 0 : i32
    return %c0_i32, %c0_i32_0 : i32, i32
  }
  func.func @transform_2(%arg0: i32) -> (i32, i32) {
    %c0_i32 = arith.constant 0 : i32
    %c0_i32_0 = arith.constant 0 : i32
    %c0_i32_1 = arith.constant 0 : i32
    return %c0_i32, %c0_i32_0 : i32, i32
  }
  func.func @transform_3(%arg0: i32) -> (i32, i32) {
    %c0_i32 = arith.constant 0 : i32
    %c0_i32_0 = arith.constant 0 : i32
    %c0_i32_1 = arith.constant 0 : i32
    return %c0_i32, %c0_i32_0 : i32, i32
  }
  func.func @transform_4(%arg0: i32) -> (i32, i32) {
    %c0_i32 = arith.constant 0 : i32
    %c0_i32_0 = arith.constant 0 : i32
    %c0_i32_1 = arith.constant 0 : i32
    return %c0_i32, %c0_i32_0 : i32, i32
  }
  func.func @transform_5(%arg0: i32) -> (i32, i32) {
    %c0_i32 = arith.constant 0 : i32
    %c0_i32_0 = arith.constant 0 : i32
    %c0_i32_1 = arith.constant 0 : i32
    return %c0_i32, %c0_i32_0 : i32, i32
  }
  func.func @transform_6(%arg0: i32) -> (i32, i32) {
    %c0_i32 = arith.constant 0 : i32
    %c0_i32_0 = arith.constant 0 : i32
    %c0_i32_1 = arith.constant 0 : i32
    return %c0_i32, %c0_i32_0 : i32, i32
  }
  func.func @transform_7(%arg0: i32) -> (i32, i32) {
    %c0_i32 = arith.constant 0 : i32
    %c0_i32_0 = arith.constant 0 : i32
    %c0_i32_1 = arith.constant 0 : i32
    return %c0_i32, %c0_i32_0 : i32, i32
  }
  func.func @transform_8(%arg0: i32) -> (i32, i32) {
    %c0_i32 = arith.constant 0 : i32
    %c0_i32_0 = arith.constant 0 : i32
    %c0_i32_1 = arith.constant 0 : i32
    return %c0_i32, %c0_i32_0 : i32, i32
  }
  func.func @transform_9(%arg0: i32) -> (i32, i32) {
    %c0_i32 = arith.constant 0 : i32
    %c0_i32_0 = arith.constant 0 : i32
    %c0_i32_1 = arith.constant 0 : i32
    return %c0_i32, %c0_i32_0 : i32, i32
  }
  func.func @transform_10(%arg0: i32) -> (i32, i32) {
    %c0_i32 = arith.constant 0 : i32
    %c0_i32_0 = arith.constant 0 : i32
    %c0_i32_1 = arith.constant 0 : i32
    return %c0_i32, %c0_i32_0 : i32, i32
  }
  func.func @transform_11(%arg0: i32) -> (i32, i32) {
    %c0_i32 = arith.constant 0 : i32
    %c0_i32_0 = arith.constant 0 : i32
    %c0_i32_1 = arith.constant 0 : i32
    return %c0_i32, %c0_i32_0 : i32, i32
  }
  func.func @transform_12(%arg0: i32) -> (i32, i32) {
    %c0_i32 = arith.constant 0 : i32
    %c0_i32_0 = arith.constant 0 : i32
    %c0_i32_1 = arith.constant 0 : i32
    return %c0_i32, %c0_i32_0 : i32, i32
  }
  func.func @transform_13(%arg0: i32) -> (i32, i32, i32) {
    %c0_i32 = arith.constant 0 : i32
    %c0_i32_0 = arith.constant 0 : i32
    %c0_i32_1 = arith.constant 0 : i32
    return %arg0, %c0_i32, %c0_i32_0 : i32, i32, i32
  }
}

module attributes {stable_mosaic.version = 11 : i64} {
  func.func @encoder_layer_kernel(%arg0: i32, %arg1: memref<4x16x64xf32, #tpu.memory_space<vmem>>, %arg2: memref<64x192xbf16, #tpu.memory_space<vmem>>, %arg3: memref<1x192xf32, #tpu.memory_space<vmem>>, %arg4: memref<64x64xbf16, #tpu.memory_space<vmem>>, %arg5: memref<1x64xf32, #tpu.memory_space<vmem>>, %arg6: memref<64x128xbf16, #tpu.memory_space<vmem>>, %arg7: memref<1x128xf32, #tpu.memory_space<vmem>>, %arg8: memref<128x64xbf16, #tpu.memory_space<vmem>>, %arg9: memref<1x64xf32, #tpu.memory_space<vmem>>, %arg10: memref<1x64xf32, #tpu.memory_space<vmem>>, %arg11: memref<1x64xf32, #tpu.memory_space<vmem>>, %arg12: memref<1x64xf32, #tpu.memory_space<vmem>>, %arg13: memref<1x64xf32, #tpu.memory_space<vmem>>, %arg14: memref<4x16x64xf32, #tpu.memory_space<vmem>>, %arg15: memref<64x192xbf16, #tpu.memory_space<vmem>>, %arg16: memref<64x64xbf16, #tpu.memory_space<vmem>>) attributes {dimension_semantics = [#tpu.dimension_semantics<parallel>], iteration_bounds = array<i64: 1>, scalar_prefetch = 0 : i64, scratch_operands = 2 : i64, tpu.core_type = #tpu.core_type<tc>, window_params = [{transform_indices = @transform_0, window_bounds = array<i64: 4, 16, 64>}, {pipeline_mode = #tpu.pipeline_mode<synchronous>, transform_indices = @transform_1, window_bounds = array<i64: 64, 192>}, {pipeline_mode = #tpu.pipeline_mode<synchronous>, transform_indices = @transform_2, window_bounds = array<i64: 1, 192>}, {pipeline_mode = #tpu.pipeline_mode<synchronous>, transform_indices = @transform_3, window_bounds = array<i64: 64, 64>}, {pipeline_mode = #tpu.pipeline_mode<synchronous>, transform_indices = @transform_4, window_bounds = array<i64: 1, 64>}, {pipeline_mode = #tpu.pipeline_mode<synchronous>, transform_indices = @transform_5, window_bounds = array<i64: 64, 128>}, {pipeline_mode = #tpu.pipeline_mode<synchronous>, transform_indices = @transform_6, window_bounds = array<i64: 1, 128>}, {pipeline_mode = #tpu.pipeline_mode<synchronous>, transform_indices = @transform_7, window_bounds = array<i64: 128, 64>}, {pipeline_mode = #tpu.pipeline_mode<synchronous>, transform_indices = @transform_8, window_bounds = array<i64: 1, 64>}, {pipeline_mode = #tpu.pipeline_mode<synchronous>, transform_indices = @transform_9, window_bounds = array<i64: 1, 64>}, {pipeline_mode = #tpu.pipeline_mode<synchronous>, transform_indices = @transform_10, window_bounds = array<i64: 1, 64>}, {pipeline_mode = #tpu.pipeline_mode<synchronous>, transform_indices = @transform_11, window_bounds = array<i64: 1, 64>}, {pipeline_mode = #tpu.pipeline_mode<synchronous>, transform_indices = @transform_12, window_bounds = array<i64: 1, 64>}, {transform_indices = @transform_13, window_bounds = array<i64: 4, 16, 64>}]} {
    %c0 = arith.constant 0 : index
    %c0_0 = arith.constant 0 : index
    %c0_1 = arith.constant 0 : index
    %0 = vector.load %arg1[%c0, %c0_0, %c0_1] : memref<4x16x64xf32, #tpu.memory_space<vmem>>, vector<4x16x64xf32>
    %1 = vector.shape_cast %0 : vector<4x16x64xf32> to vector<64x64xf32>
    %2 = arith.truncf %1 : vector<64x64xf32> to vector<64x64xbf16>
    %c0_2 = arith.constant 0 : index
    %c0_3 = arith.constant 0 : index
    %3 = vector.load %arg2[%c0_2, %c0_3] : memref<64x192xbf16, #tpu.memory_space<vmem>>, vector<64x192xbf16>
    %cst = arith.constant dense<0.000000e+00> : vector<64x192xf32>
    %4 = tpu.matmul %2, %3, %cst {dimension_numbers = #tpu.dot_dimension_numbers<[1], [0], [0], [1], [0, 0, 1, 1], [], []>} : vector<64x64xbf16>, vector<64x192xbf16>, vector<64x192xf32> -> vector<64x192xf32>
    %c0_4 = arith.constant 0 : index
    %c0_5 = arith.constant 0 : index
    %5 = vector.load %arg3[%c0_4, %c0_5] : memref<1x192xf32, #tpu.memory_space<vmem>>, vector<1x192xf32>
    %6 = vector.broadcast %5 : vector<1x192xf32> to vector<64x192xf32>
    %7 = arith.addf %4, %6 : vector<64x192xf32>
    %8 = arith.truncf %7 : vector<64x192xf32> to vector<64x192xbf16>
    %c0_6 = arith.constant 0 : index
    %c0_7 = arith.constant 0 : index
    %9 = vector.load %arg15[%c0_6, %c0_7] : memref<64x192xbf16, #tpu.memory_space<vmem>>, vector<64x192xbf16>
    tpu.vector_store %arg15[%c0_6, %c0_7], %8 {strides = array<i32>} : memref<64x192xbf16, #tpu.memory_space<vmem>>, vector<64x192xbf16>,
    %c0_i32 = arith.constant 0 : i32
    %c4_i32 = arith.constant 4 : i32
    %10 = arith.addi %c0_i32, %c4_i32 : i32
    %c1_i32 = arith.constant 1 : i32
    scf.for %arg17 = %c0_i32 to %10 step %c1_i32  : i32 {
      %c16_i32 = arith.constant 16 : i32
      %117 = arith.muli %arg17, %c16_i32 : i32
      %118 = tpu.assume_multiple %117, 8 : i32
      %119 = arith.index_cast %118 : i32 to index
      %c0_62 = arith.constant 0 : index
      %120 = vector.load %arg15[%119, %c0_62] : memref<64x192xbf16, #tpu.memory_space<vmem>>, vector<16x16xbf16>
      %121 = arith.index_cast %118 : i32 to index
      %c64 = arith.constant 64 : index
      %122 = vector.load %arg15[%121, %c64] : memref<64x192xbf16, #tpu.memory_space<vmem>>, vector<16x16xbf16>
      %123 = arith.index_cast %118 : i32 to index
      %c128 = arith.constant 128 : index
      %124 = vector.load %arg15[%123, %c128] : memref<64x192xbf16, #tpu.memory_space<vmem>>, vector<16x16xbf16>
      %cst_63 = arith.constant dense<0.000000e+00> : vector<16x16xf32>
      %125 = tpu.matmul %120, %122, %cst_63 {dimension_numbers = #tpu.dot_dimension_numbers<[1], [1], [0], [0], [0, 0, 1, 0], [], []>} : vector<16x16xbf16>, vector<16x16xbf16>, vector<16x16xf32> -> vector<16x16xf32>
      %cst_64 = arith.constant dense<0xFF800000> : vector<16xf32>
      %126 = vector.multi_reduction <maximumf>, %125, %cst_64 [1] : vector<16x16xf32> to vector<16xf32>
      %127 = vector.shape_cast %126 : vector<16xf32> to vector<16x1xf32>
      %128 = vector.broadcast %127 : vector<16x1xf32> to vector<16x16xf32>
      %129 = arith.subf %125, %128 : vector<16x16xf32>
      %130 = math.exp %129 : vector<16x16xf32>
      %cst_65 = arith.constant dense<0.000000e+00> : vector<16xf32>
      %131 = vector.multi_reduction <add>, %130, %cst_65 [1] : vector<16x16xf32> to vector<16xf32>
      %132 = vector.shape_cast %131 : vector<16xf32> to vector<16x1xf32>
      %133 = tpu.reciprocal %132 {approx = true} : vector<16x1xf32> -> vector<16x1xf32>
      %134 = vector.broadcast %133 : vector<16x1xf32> to vector<16x16xf32>
      %135 = arith.mulf %130, %134 : vector<16x16xf32>
      %136 = arith.truncf %135 : vector<16x16xf32> to vector<16x16xbf16>
      %cst_66 = arith.constant dense<0.000000e+00> : vector<16x16xf32>
      %137 = tpu.matmul %136, %124, %cst_66 {dimension_numbers = #tpu.dot_dimension_numbers<[1], [0], [0], [1], [0, 0, 1, 1], [], []>} : vector<16x16xbf16>, vector<16x16xbf16>, vector<16x16xf32> -> vector<16x16xf32>
      %138 = arith.truncf %137 : vector<16x16xf32> to vector<16x16xbf16>
      %139 = arith.index_cast %118 : i32 to index
      %c0_67 = arith.constant 0 : index
      %140 = vector.load %arg16[%139, %c0_67] : memref<64x64xbf16, #tpu.memory_space<vmem>>, vector<16x16xbf16>
      tpu.vector_store %arg16[%139, %c0_67], %138 {strides = array<i32>} : memref<64x64xbf16, #tpu.memory_space<vmem>>, vector<16x16xbf16>,
      %141 = arith.index_cast %118 : i32 to index
      %c16 = arith.constant 16 : index
      %142 = vector.load %arg15[%141, %c16] : memref<64x192xbf16, #tpu.memory_space<vmem>>, vector<16x16xbf16>
      %143 = arith.index_cast %118 : i32 to index
      %c80 = arith.constant 80 : index
      %144 = vector.load %arg15[%143, %c80] : memref<64x192xbf16, #tpu.memory_space<vmem>>, vector<16x16xbf16>
      %145 = arith.index_cast %118 : i32 to index
      %c144 = arith.constant 144 : index
      %146 = vector.load %arg15[%145, %c144] : memref<64x192xbf16, #tpu.memory_space<vmem>>, vector<16x16xbf16>
      %cst_68 = arith.constant dense<0.000000e+00> : vector<16x16xf32>
      %147 = tpu.matmul %142, %144, %cst_68 {dimension_numbers = #tpu.dot_dimension_numbers<[1], [1], [0], [0], [0, 0, 1, 0], [], []>} : vector<16x16xbf16>, vector<16x16xbf16>, vector<16x16xf32> -> vector<16x16xf32>
      %cst_69 = arith.constant dense<0xFF800000> : vector<16xf32>
      %148 = vector.multi_reduction <maximumf>, %147, %cst_69 [1] : vector<16x16xf32> to vector<16xf32>
      %149 = vector.shape_cast %148 : vector<16xf32> to vector<16x1xf32>
      %150 = vector.broadcast %149 : vector<16x1xf32> to vector<16x16xf32>
      %151 = arith.subf %147, %150 : vector<16x16xf32>
      %152 = math.exp %151 : vector<16x16xf32>
      %cst_70 = arith.constant dense<0.000000e+00> : vector<16xf32>
      %153 = vector.multi_reduction <add>, %152, %cst_70 [1] : vector<16x16xf32> to vector<16xf32>
      %154 = vector.shape_cast %153 : vector<16xf32> to vector<16x1xf32>
      %155 = tpu.reciprocal %154 {approx = true} : vector<16x1xf32> -> vector<16x1xf32>
      %156 = vector.broadcast %155 : vector<16x1xf32> to vector<16x16xf32>
      %157 = arith.mulf %152, %156 : vector<16x16xf32>
      %158 = arith.truncf %157 : vector<16x16xf32> to vector<16x16xbf16>
      %cst_71 = arith.constant dense<0.000000e+00> : vector<16x16xf32>
      %159 = tpu.matmul %158, %146, %cst_71 {dimension_numbers = #tpu.dot_dimension_numbers<[1], [0], [0], [1], [0, 0, 1, 1], [], []>} : vector<16x16xbf16>, vector<16x16xbf16>, vector<16x16xf32> -> vector<16x16xf32>
      %160 = arith.truncf %159 : vector<16x16xf32> to vector<16x16xbf16>
      %161 = arith.index_cast %118 : i32 to index
      %c16_72 = arith.constant 16 : index
      %162 = vector.load %arg16[%161, %c16_72] : memref<64x64xbf16, #tpu.memory_space<vmem>>, vector<16x16xbf16>
      tpu.vector_store %arg16[%161, %c16_72], %160 {strides = array<i32>} : memref<64x64xbf16, #tpu.memory_space<vmem>>, vector<16x16xbf16>,
      %163 = arith.index_cast %118 : i32 to index
      %c32 = arith.constant 32 : index
      %164 = vector.load %arg15[%163, %c32] : memref<64x192xbf16, #tpu.memory_space<vmem>>, vector<16x16xbf16>
      %165 = arith.index_cast %118 : i32 to index
      %c96 = arith.constant 96 : index
      %166 = vector.load %arg15[%165, %c96] : memref<64x192xbf16, #tpu.memory_space<vmem>>, vector<16x16xbf16>
      %167 = arith.index_cast %118 : i32 to index
      %c160 = arith.constant 160 : index
      %168 = vector.load %arg15[%167, %c160] : memref<64x192xbf16, #tpu.memory_space<vmem>>, vector<16x16xbf16>
      %cst_73 = arith.constant dense<0.000000e+00> : vector<16x16xf32>
      %169 = tpu.matmul %164, %166, %cst_73 {dimension_numbers = #tpu.dot_dimension_numbers<[1], [1], [0], [0], [0, 0, 1, 0], [], []>} : vector<16x16xbf16>, vector<16x16xbf16>, vector<16x16xf32> -> vector<16x16xf32>
      %cst_74 = arith.constant dense<0xFF800000> : vector<16xf32>
      %170 = vector.multi_reduction <maximumf>, %169, %cst_74 [1] : vector<16x16xf32> to vector<16xf32>
      %171 = vector.shape_cast %170 : vector<16xf32> to vector<16x1xf32>
      %172 = vector.broadcast %171 : vector<16x1xf32> to vector<16x16xf32>
      %173 = arith.subf %169, %172 : vector<16x16xf32>
      %174 = math.exp %173 : vector<16x16xf32>
      %cst_75 = arith.constant dense<0.000000e+00> : vector<16xf32>
      %175 = vector.multi_reduction <add>, %174, %cst_75 [1] : vector<16x16xf32> to vector<16xf32>
      %176 = vector.shape_cast %175 : vector<16xf32> to vector<16x1xf32>
      %177 = tpu.reciprocal %176 {approx = true} : vector<16x1xf32> -> vector<16x1xf32>
      %178 = vector.broadcast %177 : vector<16x1xf32> to vector<16x16xf32>
      %179 = arith.mulf %174, %178 : vector<16x16xf32>
      %180 = arith.truncf %179 : vector<16x16xf32> to vector<16x16xbf16>
      %cst_76 = arith.constant dense<0.000000e+00> : vector<16x16xf32>
      %181 = tpu.matmul %180, %168, %cst_76 {dimension_numbers = #tpu.dot_dimension_numbers<[1], [0], [0], [1], [0, 0, 1, 1], [], []>} : vector<16x16xbf16>, vector<16x16xbf16>, vector<16x16xf32> -> vector<16x16xf32>
      %182 = arith.truncf %181 : vector<16x16xf32> to vector<16x16xbf16>
      %183 = arith.index_cast %118 : i32 to index
      %c32_77 = arith.constant 32 : index
      %184 = vector.load %arg16[%183, %c32_77] : memref<64x64xbf16, #tpu.memory_space<vmem>>, vector<16x16xbf16>
      tpu.vector_store %arg16[%183, %c32_77], %182 {strides = array<i32>} : memref<64x64xbf16, #tpu.memory_space<vmem>>, vector<16x16xbf16>,
      %185 = arith.index_cast %118 : i32 to index
      %c48 = arith.constant 48 : index
      %186 = vector.load %arg15[%185, %c48] : memref<64x192xbf16, #tpu.memory_space<vmem>>, vector<16x16xbf16>
      %187 = arith.index_cast %118 : i32 to index
      %c112 = arith.constant 112 : index
      %188 = vector.load %arg15[%187, %c112] : memref<64x192xbf16, #tpu.memory_space<vmem>>, vector<16x16xbf16>
      %189 = arith.index_cast %118 : i32 to index
      %c176 = arith.constant 176 : index
      %190 = vector.load %arg15[%189, %c176] : memref<64x192xbf16, #tpu.memory_space<vmem>>, vector<16x16xbf16>
      %cst_78 = arith.constant dense<0.000000e+00> : vector<16x16xf32>
      %191 = tpu.matmul %186, %188, %cst_78 {dimension_numbers = #tpu.dot_dimension_numbers<[1], [1], [0], [0], [0, 0, 1, 0], [], []>} : vector<16x16xbf16>, vector<16x16xbf16>, vector<16x16xf32> -> vector<16x16xf32>
      %cst_79 = arith.constant dense<0xFF800000> : vector<16xf32>
      %192 = vector.multi_reduction <maximumf>, %191, %cst_79 [1] : vector<16x16xf32> to vector<16xf32>
      %193 = vector.shape_cast %192 : vector<16xf32> to vector<16x1xf32>
      %194 = vector.broadcast %193 : vector<16x1xf32> to vector<16x16xf32>
      %195 = arith.subf %191, %194 : vector<16x16xf32>
      %196 = math.exp %195 : vector<16x16xf32>
      %cst_80 = arith.constant dense<0.000000e+00> : vector<16xf32>
      %197 = vector.multi_reduction <add>, %196, %cst_80 [1] : vector<16x16xf32> to vector<16xf32>
      %198 = vector.shape_cast %197 : vector<16xf32> to vector<16x1xf32>
      %199 = tpu.reciprocal %198 {approx = true} : vector<16x1xf32> -> vector<16x1xf32>
      %200 = vector.broadcast %199 : vector<16x1xf32> to vector<16x16xf32>
      %201 = arith.mulf %196, %200 : vector<16x16xf32>
      %202 = arith.truncf %201 : vector<16x16xf32> to vector<16x16xbf16>
      %cst_81 = arith.constant dense<0.000000e+00> : vector<16x16xf32>
      %203 = tpu.matmul %202, %190, %cst_81 {dimension_numbers = #tpu.dot_dimension_numbers<[1], [0], [0], [1], [0, 0, 1, 1], [], []>} : vector<16x16xbf16>, vector<16x16xbf16>, vector<16x16xf32> -> vector<16x16xf32>
      %204 = arith.truncf %203 : vector<16x16xf32> to vector<16x16xbf16>
      %205 = arith.index_cast %118 : i32 to index
      %c48_82 = arith.constant 48 : index
      %206 = vector.load %arg16[%205, %c48_82] : memref<64x64xbf16, #tpu.memory_space<vmem>>, vector<16x16xbf16>
      tpu.vector_store %arg16[%205, %c48_82], %204 {strides = array<i32>} : memref<64x64xbf16, #tpu.memory_space<vmem>>, vector<16x16xbf16>,
    }
    %c4_i32_8 = arith.constant 4 : i32
    %c0_9 = arith.constant 0 : index
    %c0_10 = arith.constant 0 : index
    %11 = vector.load %arg16[%c0_9, %c0_10] : memref<64x64xbf16, #tpu.memory_space<vmem>>, vector<64x64xbf16>
    %c0_11 = arith.constant 0 : index
    %c0_12 = arith.constant 0 : index
    %12 = vector.load %arg4[%c0_11, %c0_12] : memref<64x64xbf16, #tpu.memory_space<vmem>>, vector<64x64xbf16>
    %cst_13 = arith.constant dense<0.000000e+00> : vector<64x64xf32>
    %13 = tpu.matmul %11, %12, %cst_13 {dimension_numbers = #tpu.dot_dimension_numbers<[1], [0], [0], [1], [0, 0, 1, 1], [], []>} : vector<64x64xbf16>, vector<64x64xbf16>, vector<64x64xf32> -> vector<64x64xf32>
    %c0_14 = arith.constant 0 : index
    %c0_15 = arith.constant 0 : index
    %14 = vector.load %arg5[%c0_14, %c0_15] : memref<1x64xf32, #tpu.memory_space<vmem>>, vector<1x64xf32>
    %15 = vector.broadcast %14 : vector<1x64xf32> to vector<64x64xf32>
    %16 = arith.addf %13, %15 : vector<64x64xf32>
    %17 = arith.addf %1, %16 : vector<64x64xf32>
    %c0_16 = arith.constant 0 : index
    %c0_17 = arith.constant 0 : index
    %18 = vector.load %arg10[%c0_16, %c0_17] : memref<1x64xf32, #tpu.memory_space<vmem>>, vector<1x64xf32>
    %c0_18 = arith.constant 0 : index
    %c0_19 = arith.constant 0 : index
    %19 = vector.load %arg11[%c0_18, %c0_19] : memref<1x64xf32, #tpu.memory_space<vmem>>, vector<1x64xf32>
    %cst_20 = arith.constant dense<0.000000e+00> : vector<64xf32>
    %20 = vector.multi_reduction <add>, %17, %cst_20 [1] : vector<64x64xf32> to vector<64xf32>
    %21 = vector.shape_cast %20 : vector<64xf32> to vector<64x1xf32>
    %cst_21 = arith.constant 6.400000e+01 : f32
    %22 = vector.broadcast %cst_21 : f32 to vector<64x1xf32>
    %23 = arith.divf %21, %22 : vector<64x1xf32>
    %24 = vector.broadcast %23 : vector<64x1xf32> to vector<64x64xf32>
    %25 = arith.subf %17, %24 : vector<64x64xf32>
    %26 = arith.mulf %25, %25 : vector<64x64xf32>
    %cst_22 = arith.constant dense<0.000000e+00> : vector<64xf32>
    %27 = vector.multi_reduction <add>, %26, %cst_22 [1] : vector<64x64xf32> to vector<64xf32>
    %28 = vector.shape_cast %27 : vector<64xf32> to vector<64x1xf32>
    %cst_23 = arith.constant 6.400000e+01 : f32
    %29 = vector.broadcast %cst_23 : f32 to vector<64x1xf32>
    %30 = arith.divf %28, %29 : vector<64x1xf32>
    %cst_24 = arith.constant 9.99999974E-6 : f32
    %31 = vector.broadcast %cst_24 : f32 to vector<64x1xf32>
    %32 = arith.addf %30, %31 : vector<64x1xf32>
    %33 = math.rsqrt %32 : vector<64x1xf32>
    %34 = vector.broadcast %33 : vector<64x1xf32> to vector<64x64xf32>
    %35 = arith.mulf %25, %34 : vector<64x64xf32>
    %36 = vector.broadcast %18 : vector<1x64xf32> to vector<64x64xf32>
    %37 = arith.mulf %35, %36 : vector<64x64xf32>
    %38 = vector.broadcast %19 : vector<1x64xf32> to vector<64x64xf32>
    %39 = arith.addf %37, %38 : vector<64x64xf32>
    %40 = arith.truncf %39 : vector<64x64xf32> to vector<64x64xbf16>
    %c0_25 = arith.constant 0 : index
    %c0_26 = arith.constant 0 : index
    %41 = vector.load %arg6[%c0_25, %c0_26] : memref<64x128xbf16, #tpu.memory_space<vmem>>, vector<64x128xbf16>
    %cst_27 = arith.constant dense<0.000000e+00> : vector<64x128xf32>
    %42 = tpu.matmul %40, %41, %cst_27 {dimension_numbers = #tpu.dot_dimension_numbers<[1], [0], [0], [1], [0, 0, 1, 1], [], []>} : vector<64x64xbf16>, vector<64x128xbf16>, vector<64x128xf32> -> vector<64x128xf32>
    %c0_28 = arith.constant 0 : index
    %c0_29 = arith.constant 0 : index
    %43 = vector.load %arg7[%c0_28, %c0_29] : memref<1x128xf32, #tpu.memory_space<vmem>>, vector<1x128xf32>
    %44 = vector.broadcast %43 : vector<1x128xf32> to vector<64x128xf32>
    %45 = arith.addf %42, %44 : vector<64x128xf32>
    %cst_30 = arith.constant 5.000000e-01 : f32
    %46 = vector.broadcast %cst_30 : f32 to vector<64x128xf32>
    %47 = arith.mulf %46, %45 : vector<64x128xf32>
    %cst_31 = arith.constant 0.707106769 : f32
    %48 = vector.broadcast %cst_31 : f32 to vector<64x128xf32>
    %49 = arith.mulf %45, %48 : vector<64x128xf32>
    %50 = math.absf %49 : vector<64x128xf32>
    %cst_32 = arith.constant 0.327591091 : f32
    %51 = vector.broadcast %cst_32 : f32 to vector<64x128xf32>
    %52 = arith.mulf %51, %50 : vector<64x128xf32>
    %cst_33 = arith.constant 1.000000e+00 : f32
    %53 = vector.broadcast %cst_33 : f32 to vector<64x128xf32>
    %54 = arith.addf %53, %52 : vector<64x128xf32>
    %cst_34 = arith.constant 1.000000e+00 : f32
    %55 = vector.broadcast %cst_34 : f32 to vector<64x128xf32>
    %56 = arith.divf %55, %54 : vector<64x128xf32>
    %cst_35 = arith.constant 1.06140542 : f32
    %57 = vector.broadcast %cst_35 : f32 to vector<64x128xf32>
    %58 = arith.mulf %57, %56 : vector<64x128xf32>
    %cst_36 = arith.constant -1.45315206 : f32
    %59 = vector.broadcast %cst_36 : f32 to vector<64x128xf32>
    %60 = arith.addf %58, %59 : vector<64x128xf32>
    %61 = arith.mulf %60, %56 : vector<64x128xf32>
    %cst_37 = arith.constant 1.42141378 : f32
    %62 = vector.broadcast %cst_37 : f32 to vector<64x128xf32>
    %63 = arith.addf %61, %62 : vector<64x128xf32>
    %64 = arith.mulf %63, %56 : vector<64x128xf32>
    %cst_38 = arith.constant -0.284496725 : f32
    %65 = vector.broadcast %cst_38 : f32 to vector<64x128xf32>
    %66 = arith.addf %64, %65 : vector<64x128xf32>
    %67 = arith.mulf %66, %56 : vector<64x128xf32>
    %cst_39 = arith.constant 0.254829586 : f32
    %68 = vector.broadcast %cst_39 : f32 to vector<64x128xf32>
    %69 = arith.addf %67, %68 : vector<64x128xf32>
    %70 = arith.mulf %69, %56 : vector<64x128xf32>
    %71 = arith.mulf %50, %50 : vector<64x128xf32>
    %cst_40 = arith.constant 0.000000e+00 : f32
    %72 = vector.broadcast %cst_40 : f32 to vector<64x128xf32>
    %73 = arith.subf %72, %71 : vector<64x128xf32>
    %74 = math.exp %73 : vector<64x128xf32>
    %75 = arith.mulf %70, %74 : vector<64x128xf32>
    %cst_41 = arith.constant 1.000000e+00 : f32
    %76 = vector.broadcast %cst_41 : f32 to vector<64x128xf32>
    %77 = arith.subf %76, %75 : vector<64x128xf32>
    %cst_42 = arith.constant 0.000000e+00 : f32
    %78 = vector.broadcast %cst_42 : f32 to vector<64x128xf32>
    %79 = arith.cmpf olt, %49, %78 : vector<64x128xf32>
    %cst_43 = arith.constant 0.000000e+00 : f32
    %80 = vector.broadcast %cst_43 : f32 to vector<64x128xf32>
    %81 = arith.subf %80, %77 : vector<64x128xf32>
    %82 = arith.select %79, %81, %77 : vector<64x128xi1>, vector<64x128xf32>
    %cst_44 = arith.constant 1.000000e+00 : f32
    %83 = vector.broadcast %cst_44 : f32 to vector<64x128xf32>
    %84 = arith.addf %83, %82 : vector<64x128xf32>
    %85 = arith.mulf %47, %84 : vector<64x128xf32>
    %86 = arith.truncf %85 : vector<64x128xf32> to vector<64x128xbf16>
    %c0_45 = arith.constant 0 : index
    %c0_46 = arith.constant 0 : index
    %87 = vector.load %arg8[%c0_45, %c0_46] : memref<128x64xbf16, #tpu.memory_space<vmem>>, vector<128x64xbf16>
    %cst_47 = arith.constant dense<0.000000e+00> : vector<64x64xf32>
    %88 = tpu.matmul %86, %87, %cst_47 {dimension_numbers = #tpu.dot_dimension_numbers<[1], [0], [0], [1], [0, 0, 1, 1], [], []>} : vector<64x128xbf16>, vector<128x64xbf16>, vector<64x64xf32> -> vector<64x64xf32>
    %89 = arith.addf %39, %88 : vector<64x64xf32>
    %c0_48 = arith.constant 0 : index
    %c0_49 = arith.constant 0 : index
    %90 = vector.load %arg9[%c0_48, %c0_49] : memref<1x64xf32, #tpu.memory_space<vmem>>, vector<1x64xf32>
    %91 = vector.broadcast %90 : vector<1x64xf32> to vector<64x64xf32>
    %92 = arith.addf %89, %91 : vector<64x64xf32>
    %c0_50 = arith.constant 0 : index
    %c0_51 = arith.constant 0 : index
    %93 = vector.load %arg12[%c0_50, %c0_51] : memref<1x64xf32, #tpu.memory_space<vmem>>, vector<1x64xf32>
    %c0_52 = arith.constant 0 : index
    %c0_53 = arith.constant 0 : index
    %94 = vector.load %arg13[%c0_52, %c0_53] : memref<1x64xf32, #tpu.memory_space<vmem>>, vector<1x64xf32>
    %cst_54 = arith.constant dense<0.000000e+00> : vector<64xf32>
    %95 = vector.multi_reduction <add>, %92, %cst_54 [1] : vector<64x64xf32> to vector<64xf32>
    %96 = vector.shape_cast %95 : vector<64xf32> to vector<64x1xf32>
    %cst_55 = arith.constant 6.400000e+01 : f32
    %97 = vector.broadcast %cst_55 : f32 to vector<64x1xf32>
    %98 = arith.divf %96, %97 : vector<64x1xf32>
    %99 = vector.broadcast %98 : vector<64x1xf32> to vector<64x64xf32>
    %100 = arith.subf %92, %99 : vector<64x64xf32>
    %101 = arith.mulf %100, %100 : vector<64x64xf32>
    %cst_56 = arith.constant dense<0.000000e+00> : vector<64xf32>
    %102 = vector.multi_reduction <add>, %101, %cst_56 [1] : vector<64x64xf32> to vector<64xf32>
    %103 = vector.shape_cast %102 : vector<64xf32> to vector<64x1xf32>
    %cst_57 = arith.constant 6.400000e+01 : f32
    %104 = vector.broadcast %cst_57 : f32 to vector<64x1xf32>
    %105 = arith.divf %103, %104 : vector<64x1xf32>
    %cst_58 = arith.constant 9.99999974E-6 : f32
    %106 = vector.broadcast %cst_58 : f32 to vector<64x1xf32>
    %107 = arith.addf %105, %106 : vector<64x1xf32>
    %108 = math.rsqrt %107 : vector<64x1xf32>
    %109 = vector.broadcast %108 : vector<64x1xf32> to vector<64x64xf32>
    %110 = arith.mulf %100, %109 : vector<64x64xf32>
    %111 = vector.broadcast %93 : vector<1x64xf32> to vector<64x64xf32>
    %112 = arith.mulf %110, %111 : vector<64x64xf32>
    %113 = vector.broadcast %94 : vector<1x64xf32> to vector<64x64xf32>
    %114 = arith.addf %112, %113 : vector<64x64xf32>
    %115 = vector.shape_cast %114 : vector<64x64xf32> to vector<4x16x64xf32>
    %c0_59 = arith.constant 0 : index
    %c0_60 = arith.constant 0 : index
    %c0_61 = arith.constant 0 : index
    %116 = vector.load %arg14[%c0_59, %c0_60, %c0_61] : memref<4x16x64xf32, #tpu.memory_space<vmem>>, vector<4x16x64xf32>
    tpu.vector_store %arg14[%c0_59, %c0_60, %c0_61], %115 {strides = array<i32>} : memref<4x16x64xf32, #tpu.memory_space<vmem>>, vector<4x16x64xf32>,
    return
  }
  func.func @transform_0(%arg0: i32) -> (i32, i32, i32) {
    %c0_i32 = arith.constant 0 : i32
    %c0_i32_0 = arith.constant 0 : i32
    %c0_i32_1 = arith.constant 0 : i32
    return %arg0, %c0_i32, %c0_i32_0 : i32, i32, i32
  }
  func.func @transform_1(%arg0: i32) -> (i32, i32) {
    %c0_i32 = arith.constant 0 : i32
    %c0_i32_0 = arith.constant 0 : i32
    %c0_i32_1 = arith.constant 0 : i32
    return %c0_i32, %c0_i32_0 : i32, i32
  }
  func.func @transform_2(%arg0: i32) -> (i32, i32) {
    %c0_i32 = arith.constant 0 : i32
    %c0_i32_0 = arith.constant 0 : i32
    %c0_i32_1 = arith.constant 0 : i32
    return %c0_i32, %c0_i32_0 : i32, i32
  }
  func.func @transform_3(%arg0: i32) -> (i32, i32) {
    %c0_i32 = arith.constant 0 : i32
    %c0_i32_0 = arith.constant 0 : i32
    %c0_i32_1 = arith.constant 0 : i32
    return %c0_i32, %c0_i32_0 : i32, i32
  }
  func.func @transform_4(%arg0: i32) -> (i32, i32) {
    %c0_i32 = arith.constant 0 : i32
    %c0_i32_0 = arith.constant 0 : i32
    %c0_i32_1 = arith.constant 0 : i32
    return %c0_i32, %c0_i32_0 : i32, i32
  }
  func.func @transform_5(%arg0: i32) -> (i32, i32) {
    %c0_i32 = arith.constant 0 : i32
    %c0_i32_0 = arith.constant 0 : i32
    %c0_i32_1 = arith.constant 0 : i32
    return %c0_i32, %c0_i32_0 : i32, i32
  }
  func.func @transform_6(%arg0: i32) -> (i32, i32) {
    %c0_i32 = arith.constant 0 : i32
    %c0_i32_0 = arith.constant 0 : i32
    %c0_i32_1 = arith.constant 0 : i32
    return %c0_i32, %c0_i32_0 : i32, i32
  }
  func.func @transform_7(%arg0: i32) -> (i32, i32) {
    %c0_i32 = arith.constant 0 : i32
    %c0_i32_0 = arith.constant 0 : i32
    %c0_i32_1 = arith.constant 0 : i32
    return %c0_i32, %c0_i32_0 : i32, i32
  }
  func.func @transform_8(%arg0: i32) -> (i32, i32) {
    %c0_i32 = arith.constant 0 : i32
    %c0_i32_0 = arith.constant 0 : i32
    %c0_i32_1 = arith.constant 0 : i32
    return %c0_i32, %c0_i32_0 : i32, i32
  }
  func.func @transform_9(%arg0: i32) -> (i32, i32) {
    %c0_i32 = arith.constant 0 : i32
    %c0_i32_0 = arith.constant 0 : i32
    %c0_i32_1 = arith.constant 0 : i32
    return %c0_i32, %c0_i32_0 : i32, i32
  }
  func.func @transform_10(%arg0: i32) -> (i32, i32) {
    %c0_i32 = arith.constant 0 : i32
    %c0_i32_0 = arith.constant 0 : i32
    %c0_i32_1 = arith.constant 0 : i32
    return %c0_i32, %c0_i32_0 : i32, i32
  }
  func.func @transform_11(%arg0: i32) -> (i32, i32) {
    %c0_i32 = arith.constant 0 : i32
    %c0_i32_0 = arith.constant 0 : i32
    %c0_i32_1 = arith.constant 0 : i32
    return %c0_i32, %c0_i32_0 : i32, i32
  }
  func.func @transform_12(%arg0: i32) -> (i32, i32) {
    %c0_i32 = arith.constant 0 : i32
    %c0_i32_0 = arith.constant 0 : i32
    %c0_i32_1 = arith.constant 0 : i32
    return %c0_i32, %c0_i32_0 : i32, i32
  }
  func.func @transform_13(%arg0: i32) -> (i32, i32, i32) {
    %c0_i32 = arith.constant 0 : i32
    %c0_i32_0 = arith.constant 0 : i32
    %c0_i32_1 = arith.constant 0 : i32
    return %arg0, %c0_i32, %c0_i32_0 : i32, i32, i32
  }
}

</mosaic_0001>

<llo_original>
// kernel: tpu_custom_call.1
$region0: #{tpu_custom_call.1}
  #allocation0 [shape = 'u32[]', space=smem, size = 0x4, offset = 0x4, fixed_abs, tag = 'smem constant byte address 0x4 - core index']
  #allocation1 [shape = 'u32[72,128]{1,0:T(1,128)}', space=vmem, size = 0x9000, scoped, tag = 'internal scratch']
  #allocation2 [shape = 'bf16[64,192]{1,0:T(8,128)(2,1)}', space=vmem, size = 0x8000, scoped, tag = 'scratch operand']
  #allocation3 [shape = 'bf16[64,64]{1,0:T(8,128)(2,1)}', space=vmem, size = 0x4000, scoped, tag = 'scratch operand']
  %s0 = inlined_call_operand.vmem [shape: f32[4,16,64], index: 0, kind: input, shape index: {}]
  %s1 = inlined_call_operand.hbm [shape: bf16[64,192], index: 1, kind: input, shape index: {}]
  %s2 = inlined_call_operand.hbm [shape: f32[1,192], index: 2, kind: input, shape index: {}]
  %s3 = inlined_call_operand.vmem [shape: bf16[64,64], index: 3, kind: input, shape index: {}]
  %s4 = inlined_call_operand.vmem [shape: f32[1,64], index: 4, kind: input, shape index: {}]
  %s5 = inlined_call_operand.hbm [shape: bf16[64,128], index: 5, kind: input, shape index: {}]
  %s6 = inlined_call_operand.vmem [shape: f32[1,128], index: 6, kind: input, shape index: {}]
  %s7 = inlined_call_operand.vmem [shape: bf16[128,64], index: 7, kind: input, shape index: {}]
  %s8 = inlined_call_operand.vmem [shape: f32[1,64], index: 8, kind: input, shape index: {}]
  %s9 = inlined_call_operand.vmem [shape: f32[1,64], index: 9, kind: input, shape index: {}]
  %s10 = inlined_call_operand.vmem [shape: f32[1,64], index: 10, kind: input, shape index: {}]
  %s11 = inlined_call_operand.vmem [shape: f32[1,64], index: 11, kind: input, shape index: {}]
  %s12 = inlined_call_operand.vmem [shape: f32[1,64], index: 12, kind: input, shape index: {}]
  %s13 = inlined_call_operand.hbm [shape: f32[4,16,64], index: 13, kind: output, shape index: {}]
  %s14 = sld [smem:[#allocation0]]
  $region81: #{tpu_custom_call.1} parent=0
    _
  %s16 = ssub.s32 1, %s14
  %s17 = scalar_select 0, %s16, %s14
  $region1: #{tpu_custom_call.1} parent=0
    #allocation4 [shape = 'u8[32768]{0}', space=vmem, size = 0x8000, scoped, tag = 'input window, operand 1, single buffered']
    #allocation5 [shape = 's32[1]{0}', space=sflag, size = 0x4, scoped, tag = 'scoped memory for tpu_custom_call.1']
    #allocation6 [shape = 's32[1]{0}', space=sflag, size = 0x4, scoped, tag = 'scoped memory for tpu_custom_call.1']
    #allocation7 [shape = 'u8[1024]{0}', space=vmem, size = 0x400, scoped, tag = 'input window, operand 2, single buffered']
    #allocation8 [shape = 's32[1]{0}', space=sflag, size = 0x4, scoped, tag = 'scoped memory for tpu_custom_call.1']
    #allocation9 [shape = 'u8[16384]{0}', space=vmem, size = 0x4000, scoped, tag = 'input window, operand 5, single buffered']
    #allocation10 [shape = 'u8[32768]{0}', space=vmem, size = 0x8000, scoped, tag = 'output window, operand 0, single buffered']
    %18 = vsyncpa [#allocation5], 0
    %19 = vsyncpa [#allocation8], 0
    %20 = vsyncpa [#allocation6], 0
    // Predicated region
    $region2: #{tpu_custom_call.1} parent=1 // pred_check
      _
    $region3: #{tpu_custom_call.1} parent=1 // pred_check_branch
      %22 = sbr.rel (0) target = $region5
    $region4: #{tpu_custom_call.1} parent=1 // pred_region
      _
    $region5: #{tpu_custom_call.1} parent=1 // pred_fallthru
      _
    // Predicated region
    $region6: #{tpu_custom_call.1} parent=1 // pred_check
      _
    $region7: #{tpu_custom_call.1} parent=1 // pred_check_branch
      %24 = sbr.rel (0) target = $region9
    $region8: #{tpu_custom_call.1} parent=1 // pred_region
      %26 = vsyncadd [#allocation5], 0
      %s27 = sshll.u32 %s1, 4
      %s28 = int_to_ptr.hbm [resolvable:$true] %s27
      %s29 = sshll.u32 [#allocation4], 4
      %s30 = int_to_ptr.vmem [resolvable:$true] %s29
      %35 = dma.hbm_to_vmem [thread:$0]  %s28, 1024, %s30, [#allocation5], 128, 128, 8
    $region9: #{tpu_custom_call.1} parent=1 // pred_fallthru
      _
    // Predicated region
    $region10: #{tpu_custom_call.1} parent=1 // pred_check
      _
    $region11: #{tpu_custom_call.1} parent=1 // pred_check_branch
      %37 = sbr.rel (0) target = $region13
    $region12: #{tpu_custom_call.1} parent=1 // pred_region
      %39 = vsyncadd [#allocation8], 0
      %s41 = sshll.u32 %s2, 4
      %s42 = int_to_ptr.hbm [resolvable:$true] %s41
      %s43 = sshll.u32 [#allocation7], 4
      %s44 = int_to_ptr.vmem [resolvable:$true] %s43
      %46 = dma.hbm_to_vmem [thread:$0]  %s42, 32, %s44, [#allocation8]
    $region13: #{tpu_custom_call.1} parent=1 // pred_fallthru
      _
    // Predicated region
    $region14: #{tpu_custom_call.1} parent=1 // pred_check
      _
    $region15: #{tpu_custom_call.1} parent=1 // pred_check_branch
      %48 = sbr.rel (0) target = $region17
    $region16: #{tpu_custom_call.1} parent=1 // pred_region
      _
    $region17: #{tpu_custom_call.1} parent=1 // pred_fallthru
      _
    // Predicated region
    $region18: #{tpu_custom_call.1} parent=1 // pred_check
      _
    $region19: #{tpu_custom_call.1} parent=1 // pred_check_branch
      %50 = sbr.rel (0) target = $region21
    $region20: #{tpu_custom_call.1} parent=1 // pred_region
      _
    $region21: #{tpu_custom_call.1} parent=1 // pred_fallthru
      _
    // Predicated region
    $region22: #{tpu_custom_call.1} parent=1 // pred_check
      _
    $region23: #{tpu_custom_call.1} parent=1 // pred_check_branch
      %52 = sbr.rel (0) target = $region25
    $region24: #{tpu_custom_call.1} parent=1 // pred_region
      %54 = vsyncadd [#allocation8], 0
      %s55 = sshll.u32 %s5, 4
      %s56 = int_to_ptr.hbm [resolvable:$true] %s55
      %s57 = sshll.u32 [#allocation9], 4
      %s58 = int_to_ptr.vmem [resolvable:$true] %s57
      %63 = dma.hbm_to_vmem [thread:$0]  %s56, 512, %s58, [#allocation8], 64, 64, 4
    $region25: #{tpu_custom_call.1} parent=1 // pred_fallthru
      _
    // Predicated region
    $region26: #{tpu_custom_call.1} parent=1 // pred_check
      _
    $region27: #{tpu_custom_call.1} parent=1 // pred_check_branch
      %65 = sbr.rel (0) target = $region29
    $region28: #{tpu_custom_call.1} parent=1 // pred_region
      _
    $region29: #{tpu_custom_call.1} parent=1 // pred_fallthru
      _
    // Predicated region
    $region30: #{tpu_custom_call.1} parent=1 // pred_check
      _
    $region31: #{tpu_custom_call.1} parent=1 // pred_check_branch
      %67 = sbr.rel (0) target = $region33
    $region32: #{tpu_custom_call.1} parent=1 // pred_region
      _
    $region33: #{tpu_custom_call.1} parent=1 // pred_fallthru
      _
    // Predicated region
    $region34: #{tpu_custom_call.1} parent=1 // pred_check
      _
    $region35: #{tpu_custom_call.1} parent=1 // pred_check_branch
      %69 = sbr.rel (0) target = $region37
    $region36: #{tpu_custom_call.1} parent=1 // pred_region
      _
    $region37: #{tpu_custom_call.1} parent=1 // pred_fallthru
      _
    // Predicated region
    $region38: #{tpu_custom_call.1} parent=1 // pred_check
      _
    $region39: #{tpu_custom_call.1} parent=1 // pred_check_branch
      %71 = sbr.rel (0) target = $region41
    $region40: #{tpu_custom_call.1} parent=1 // pred_region
      _
    $region41: #{tpu_custom_call.1} parent=1 // pred_fallthru
      _
    // Predicated region
    $region42: #{tpu_custom_call.1} parent=1 // pred_check
      _
    $region43: #{tpu_custom_call.1} parent=1 // pred_check_branch
      %73 = sbr.rel (0) target = $region45
    $region44: #{tpu_custom_call.1} parent=1 // pred_region
      _
    $region45: #{tpu_custom_call.1} parent=1 // pred_fallthru
      _
    // Predicated region
    $region46: #{tpu_custom_call.1} parent=1 // pred_check
      _
    $region47: #{tpu_custom_call.1} parent=1 // pred_check_branch
      %75 = sbr.rel (0) target = $region49
    $region48: #{tpu_custom_call.1} parent=1 // pred_region
      _
    $region49: #{tpu_custom_call.1} parent=1 // pred_fallthru
      _
    // Predicated region
    $region50: #{tpu_custom_call.1} parent=1 // pred_check
      _
    $region51: #{tpu_custom_call.1} parent=1 // pred_check_branch
      %77 = sbr.rel (0) target = $region53
    $region52: #{tpu_custom_call.1} parent=1 // pred_region
      _
    $region53: #{tpu_custom_call.1} parent=1 // pred_fallthru
      _
    // Predicated region
    $region54: #{tpu_custom_call.1} parent=1 // pred_check
      _
    $region55: #{tpu_custom_call.1} parent=1 // pred_check_branch
      %79 = sbr.rel (0) target = $region57
    $region56: #{tpu_custom_call.1} parent=1 // pred_region
      %81 = dma.done [#allocation5], 1024
    $region57: #{tpu_custom_call.1} parent=1 // pred_fallthru
      _
    // Predicated region
    $region58: #{tpu_custom_call.1} parent=1 // pred_check
      _
    $region59: #{tpu_custom_call.1} parent=1 // pred_check_branch
      %83 = sbr.rel (0) target = $region61
    $region60: #{tpu_custom_call.1} parent=1 // pred_region
      %85 = dma.done [#allocation8], 32
    $region61: #{tpu_custom_call.1} parent=1 // pred_fallthru
      _
    // Predicated region
    $region62: #{tpu_custom_call.1} parent=1 // pred_check
      _
    $region63: #{tpu_custom_call.1} parent=1 // pred_check_branch
      %87 = sbr.rel (0) target = $region65
    $region64: #{tpu_custom_call.1} parent=1 // pred_region
      %89 = dma.done [#allocation8], 512
    $region65: #{tpu_custom_call.1} parent=1 // pred_fallthru
      _
    %v91 = vld [vmem:[%s0] sm:$0xff]
    %v92 = vld [vmem:[%s0 + $0x8] sm:$0xff]
    %v93 = vld [vmem:[%s0 + $0x10] sm:$0xff]
    %v94 = vld [vmem:[%s0 + $0x18] sm:$0xff]
    %v95 = vld [vmem:[%s0 + $0x20] sm:$0xff]
    %v96 = vld [vmem:[%s0 + $0x28] sm:$0xff]
    %v97 = vld [vmem:[%s0 + $0x30] sm:$0xff]
    %v98 = vld [vmem:[%s0 + $0x38] sm:$0xff]
    %v99 = vpack.c.bf16 %v92, %v91
    %v100 = vpack.c.bf16 %v94, %v93
    %v101 = vpack.c.bf16 %v96, %v95
    %v102 = vpack.c.bf16 %v98, %v97
    %v103 = vld [vmem:[#allocation4] sm:$0xff]
    %v104 = vld [vmem:[#allocation4 + $0x8] sm:$0xff]
    %v105 = vld [vmem:[#allocation4 + $0x10] sm:$0xff]
    %v106 = vld [vmem:[#allocation4 + $0x18] sm:$0xff]
    %v107 = vld [vmem:[#allocation4 + $0x20] sm:$0xff]
    %v108 = vld [vmem:[#allocation4 + $0x28] sm:$0xff]
    %v109 = vld [vmem:[#allocation4 + $0x30] sm:$0xff]
    %v110 = vld [vmem:[#allocation4 + $0x38] sm:$0xff]
    %v111 = vld [vmem:[#allocation7] sm:$0x3]
    %v113 = vperm.slane %v111, 0
    %v114 = vperm.slane %v111, 1
    %v125 = vunpack.c.l.b16 %v103
    %v126 = vunpack.c.h.b16 %v103
    %v127 = vunpack.c.l.b16 %v104
    %v128 = vunpack.c.h.b16 %v104
    %v129 = vunpack.c.l.b16 %v105
    %v130 = vunpack.c.h.b16 %v105
    %v131 = vunpack.c.l.b16 %v106
    %v132 = vunpack.c.h.b16 %v106
    %v133 = vunpack.c.l.b16 %v107
    %v134 = vunpack.c.h.b16 %v107
    %v135 = vunpack.c.l.b16 %v108
    %v136 = vunpack.c.h.b16 %v108
    %v137 = vunpack.c.l.b16 %v109
    %v138 = vunpack.c.h.b16 %v109
    %v139 = vunpack.c.l.b16 %v110
    %v140 = vunpack.c.h.b16 %v110
    %v141 = vpack.c.b16 %v127, %v125
    %v142 = vpack.c.b16 %v128, %v126
    %v143 = vpack.c.b16 %v131, %v129
    %v144 = vpack.c.b16 %v132, %v130
    %v145 = vpack.c.b16 %v135, %v133
    %v146 = vpack.c.b16 %v136, %v134
    %v147 = vpack.c.b16 %v139, %v137
    %v148 = vpack.c.b16 %v140, %v138
    %vm157 = vcmask 523264
    %v159 = vsel %vm157, %v99, 0
    %v162 = vsel %vm157, %v100, 0
    %v165 = vsel %vm157, %v101, 0
    %v168 = vsel %vm157, %v102, 0
    %170 = vmatpush.bf16.msra.mxu0 0
    %171 = vmatpush.bf16.msra.mxu0 0
    %172 = vmatpush.bf16.msra.mxu0 0
    %173 = vmatpush.bf16.msra.mxu0 0
    %174 = vmatpush.bf16.msra.mxu0 %v147
    %175 = vmatpush.bf16.msra.mxu0 %v145
    %176 = vmatpush.bf16.msra.mxu0 %v143
    %177 = vmatpush.bf16.msra.mxu0 %v141
    %178 = vmatmul.bf16.gmra.mxu0 %v159
    %v179 = vpop.f32.mrf.mxu0
    %v180 = vadd.f32 %v113, %v179
    %v181 = vpop.f32.mrf.mxu0
    %v182 = vadd.f32 %v113, %v181
    %183 = vmatmul.bf16.gmra.mxu0 %v162
    %v184 = vpop.f32.mrf.mxu0
    %v185 = vadd.f32 %v113, %v184
    %v186 = vpop.f32.mrf.mxu0
    %v187 = vadd.f32 %v113, %v186
    %188 = vmatmul.bf16.gmra.mxu0 %v165
    %v189 = vpop.f32.mrf.mxu0
    %v190 = vadd.f32 %v113, %v189
    %v191 = vpop.f32.mrf.mxu0
    %v192 = vadd.f32 %v113, %v191
    %193 = vmatmul.bf16.gmra.mxu0 %v168
    %v194 = vpop.f32.mrf.mxu0
    %v195 = vadd.f32 %v113, %v194
    %v196 = vpop.f32.mrf.mxu0
    %v197 = vadd.f32 %v113, %v196
    %198 = vdwg.mxu0
    %199 = vmatpush.bf16.msra.mxu0 0
    %200 = vmatpush.bf16.msra.mxu0 0
    %201 = vmatpush.bf16.msra.mxu0 0
    %202 = vmatpush.bf16.msra.mxu0 0
    %203 = vmatpush.bf16.msra.mxu0 %v148
    %204 = vmatpush.bf16.msra.mxu0 %v146
    %205 = vmatpush.bf16.msra.mxu0 %v144
    %206 = vmatpush.bf16.msra.mxu0 %v142
    %207 = vmatmul.bf16.gmra.mxu0 %v159
    %v208 = vpop.f32.mrf.mxu0
    %v209 = vadd.f32 %v114, %v208
    %v210 = vpop.f32.mrf.mxu0
    %v211 = vadd.f32 %v114, %v210
    %212 = vmatmul.bf16.gmra.mxu0 %v162
    %v213 = vpop.f32.mrf.mxu0
    %v214 = vadd.f32 %v114, %v213
    %v215 = vpop.f32.mrf.mxu0
    %v216 = vadd.f32 %v114, %v215
    %217 = vmatmul.bf16.gmra.mxu0 %v165
    %v218 = vpop.f32.mrf.mxu0
    %v219 = vadd.f32 %v114, %v218
    %v220 = vpop.f32.mrf.mxu0
    %v221 = vadd.f32 %v114, %v220
    %222 = vmatmul.bf16.gmra.mxu0 %v168
    %v223 = vpop.f32.mrf.mxu0
    %v224 = vadd.f32 %v114, %v223
    %v225 = vpop.f32.mrf.mxu0
    %v226 = vadd.f32 %v114, %v225
    %227 = vdwg.mxu0
    %v228 = vpack.c.bf16 %v209, %v180
    %v229 = vpack.c.bf16 %v211, %v182
    %v230 = vpack.c.bf16 %v214, %v185
    %v231 = vpack.c.bf16 %v216, %v187
    %v232 = vpack.c.bf16 %v219, %v190
    %v233 = vpack.c.bf16 %v221, %v192
    %v234 = vpack.c.bf16 %v224, %v195
    %v235 = vpack.c.bf16 %v226, %v197
    %vm236 = vcmask 1043456
    %vm237 = vcmask 523268
    %vm238 = vmor %vm237, %vm236
    %239 = vst.msk [vmem:[#allocation2] sm:$0xff] %vm238, %v228
    %240 = vst.msk [vmem:[#allocation2 + $0x8] sm:$0xff] %vm238, %v229
    %241 = vst.msk [vmem:[#allocation2 + $0x10] sm:$0xff] %vm238, %v230
    %242 = vst.msk [vmem:[#allocation2 + $0x18] sm:$0xff] %vm238, %v231
    %243 = vst.msk [vmem:[#allocation2 + $0x20] sm:$0xff] %vm238, %v232
    %244 = vst.msk [vmem:[#allocation2 + $0x28] sm:$0xff] %vm238, %v233
    %245 = vst.msk [vmem:[#allocation2 + $0x30] sm:$0xff] %vm238, %v234
    %246 = vst.msk [vmem:[#allocation2 + $0x38] sm:$0xff] %vm238, %v235
    loop: start=0, step=1, limit=4
    $region66: #{tpu_custom_call.1} parent=1 // loop_pre_header
      _
    $region67: #{tpu_custom_call.1} parent=1 // loop_header
      %s248 = sphi 0, %s252
      %p249 = scmp.ge.s32.totalorder %s248, 4
    $region68: #{tpu_custom_call.1} parent=1 // loop_header_branch
      %251 = sbr.rel (%p249) target = $region72
    $region69: #{tpu_custom_call.1} parent=1 // loop_body
      %s253 = smul.u32 %s248, 16
      %s254 = sshra.s32 %s253, 3
      %s255 = sand.u32 %s253, 7
      %s256 = smul.u32 %s254, 2
      %s257 = smul.addr %s256, 4
      %s258 = scalar_lea.vmem [#allocation2], %s257
      %v259 = vld [vmem:[%s258] sm:$0xf]
      %v260 = vld [vmem:[%s258 + $0x8] sm:$0xf]
      %v261 = vld [vmem:[%s258 + $0x4] sm:$0xf]
      %v262 = vld [vmem:[%s258 + $0xc] sm:$0xf]
      %v265 = vunpack.c.l.b16 %v259
      %v266 = vunpack.c.l.b16 %v260
      %v267 = vpack.c.b16 %v266, %v265
      %268 = vrot.lane.b32.xlu0 %v267, 64
      %v269 = vpop.permute.xlu0 %268
      %vm270 = vcmask 130048
      %v272 = vsel %vm270, %v267, 0
      %v275 = vsel %vm270, %v269, 0
      %277 = vmatpush.bf16.xpose.msra.mxu0 0
      %278 = vmatpush.bf16.xpose.msra.mxu0 0
      %279 = vmatpush.bf16.xpose.msra.mxu0 0
      %280 = vmatpush.bf16.xpose.msra.mxu0 0
      %281 = vmatpush.bf16.xpose.msra.mxu0 0
      %282 = vmatpush.bf16.xpose.msra.mxu0 0
      %283 = vmatpush.bf16.xpose.msra.mxu0 0
      %284 = vmatpush.bf16.xpose.msra.mxu0 %v275
      %285 = vmatmul.bf16.gmra.mxu0 %v272
      %v286 = vpop.f32.mrf.mxu0
      %v287 = vadd.f32 0.0, %v286
      %v288 = vpop.f32.mrf.mxu0
      %v289 = vadd.f32 0.0, %v288
      %290 = vdwg.mxu0
      %v291 = vsel %vm270, %v287, -inf
      %292 = vmax.xlane.f32.xlu0 %v291
      %v293 = vpop.xlane.xlu0 %292
      %v294 = vsel %vm270, %v289, -inf
      %295 = vmax.xlane.f32.xlu0 %v294
      %v296 = vpop.xlane.xlu0 %295
      %v297 = vsub.f32 %v287, %v293
      %v298 = vsub.f32 %v289, %v296
      %v299 = vmul.f32 %v297, 1.442695
      %v300 = vpow.pop %v299
      %v301 = vmul.f32 %v298, 1.442695
      %v302 = vpow.pop %v301
      %v303 = vsel %vm270, %v300, 0.0
      %304 = vadd.xlane.f32.xlu0 %v303
      %v305 = vpop.xlane.xlu0 %304
      %v306 = vsel %vm270, %v302, 0.0
      %307 = vadd.xlane.f32.xlu0 %v306
      %v308 = vpop.xlane.xlu0 %307
      %v309 = vrcp.pop %v305
      %v310 = vrcp.pop %v308
      %v311 = vmul.f32 %v300, %v309
      %v312 = vmul.f32 %v302, %v310
      %v313 = vpack.c.bf16 %v312, %v311
      %v316 = vunpack.c.l.b16 %v261
      %v317 = vunpack.c.l.b16 %v262
      %v318 = vpack.c.b16 %v317, %v316
      %v321 = vsel %vm270, %v313, 0
      %323 = vmatpush.bf16.msra.mxu0 0
      %324 = vmatpush.bf16.msra.mxu0 0
      %325 = vmatpush.bf16.msra.mxu0 0
      %326 = vmatpush.bf16.msra.mxu0 0
      %327 = vmatpush.bf16.msra.mxu0 0
      %328 = vmatpush.bf16.msra.mxu0 0
      %329 = vmatpush.bf16.msra.mxu0 0
      %330 = vmatpush.bf16.msra.mxu0 %v318
      %331 = vmatmul.bf16.gmra.mxu0 %v321
      %v332 = vpop.f32.mrf.mxu0
      %v333 = vadd.f32 0.0, %v332
      %v334 = vpop.f32.mrf.mxu0
      %v335 = vadd.f32 0.0, %v334
      %336 = vdwg.mxu0
      %v337 = vpack.c.bf16 %v333, %v333
      %v338 = vpack.c.bf16 %v335, %v335
      %s339 = smul.addr %s254, 4
      %s340 = scalar_lea.vmem [#allocation3], %s339
      %vm341 = vcmask 125952
      %342 = vst.msk [vmem:[%s340] sm:$0xf] %vm341, %v337
      %343 = vst.msk [vmem:[%s340 + $0x4] sm:$0xf] %vm341, %v338
      %v344 = vld [vmem:[%s258] sm:$0xf]
      %v345 = vld [vmem:[%s258 + $0x8] sm:$0xf]
      %v346 = vld [vmem:[%s258 + $0x4] sm:$0xf]
      %v347 = vld [vmem:[%s258 + $0xc] sm:$0xf]
      %v350 = vunpack.c.l.b16 %v344
      %v351 = vunpack.c.l.b16 %v345
      %v352 = vpack.c.b16 %v351, %v350
      %353 = vrot.lane.b32.xlu0 %v352, 112
      %v354 = vpop.permute.xlu0 %353
      %355 = vrot.lane.b32.xlu0 %v352, 48
      %v356 = vpop.permute.xlu0 %355
      %v358 = vsel %vm270, %v354, 0
      %v361 = vsel %vm270, %v356, 0
      %363 = vmatpush.bf16.xpose.msra.mxu0 0
      %364 = vmatpush.bf16.xpose.msra.mxu0 0
      %365 = vmatpush.bf16.xpose.msra.mxu0 0
      %366 = vmatpush.bf16.xpose.msra.mxu0 0
      %367 = vmatpush.bf16.xpose.msra.mxu0 0
      %368 = vmatpush.bf16.xpose.msra.mxu0 0
      %369 = vmatpush.bf16.xpose.msra.mxu0 0
      %370 = vmatpush.bf16.xpose.msra.mxu0 %v361
      %371 = vmatmul.bf16.gmra.mxu0 %v358
      %v372 = vpop.f32.mrf.mxu0
      %v373 = vadd.f32 0.0, %v372
      %v374 = vpop.f32.mrf.mxu0
      %v375 = vadd.f32 0.0, %v374
      %376 = vdwg.mxu0
      %v377 = vsel %vm270, %v373, -inf
      %378 = vmax.xlane.f32.xlu0 %v377
      %v379 = vpop.xlane.xlu0 %378
      %v380 = vsel %vm270, %v375, -inf
      %381 = vmax.xlane.f32.xlu0 %v380
      %v382 = vpop.xlane.xlu0 %381
      %v383 = vsub.f32 %v373, %v379
      %v384 = vsub.f32 %v375, %v382
      %v385 = vmul.f32 %v383, 1.442695
      %v386 = vpow.pop %v385
      %v387 = vmul.f32 %v384, 1.442695
      %v388 = vpow.pop %v387
      %v389 = vsel %vm270, %v386, 0.0
      %390 = vadd.xlane.f32.xlu0 %v389
      %v391 = vpop.xlane.xlu0 %390
      %v392 = vsel %vm270, %v388, 0.0
      %393 = vadd.xlane.f32.xlu0 %v392
      %v394 = vpop.xlane.xlu0 %393
      %v395 = vrcp.pop %v391
      %v396 = vrcp.pop %v394
      %v397 = vmul.f32 %v386, %v395
      %v398 = vmul.f32 %v388, %v396
      %v399 = vpack.c.bf16 %v398, %v397
      %v402 = vunpack.c.l.b16 %v346
      %v403 = vunpack.c.l.b16 %v347
      %v404 = vpack.c.b16 %v403, %v402
      %405 = vrot.lane.b32.xlu0 %v404, 112
      %v406 = vpop.permute.xlu0 %405
      %v409 = vsel %vm270, %v399, 0
      %411 = vmatpush.bf16.msra.mxu0 0
      %412 = vmatpush.bf16.msra.mxu0 0
      %413 = vmatpush.bf16.msra.mxu0 0
      %414 = vmatpush.bf16.msra.mxu0 0
      %415 = vmatpush.bf16.msra.mxu0 0
      %416 = vmatpush.bf16.msra.mxu0 0
      %417 = vmatpush.bf16.msra.mxu0 0
      %418 = vmatpush.bf16.msra.mxu0 %v406
      %419 = vmatmul.bf16.gmra.mxu0 %v409
      %v420 = vpop.f32.mrf.mxu0
      %v421 = vadd.f32 0.0, %v420
      %v422 = vpop.f32.mrf.mxu0
      %v423 = vadd.f32 0.0, %v422
      %424 = vdwg.mxu0
      %v425 = vpack.c.bf16 %v421, %v421
      %v426 = vpack.c.bf16 %v423, %v423
      %429 = vrot.lane.b32.xlu0 %v425, 16
      %v430 = vpop.permute.xlu0 %429
      %431 = vrot.lane.b32.xlu0 %v426, 16
      %v432 = vpop.permute.xlu0 %431
      %vm435 = vcmask 257152
      %436 = vst.msk [vmem:[%s340] sm:$0xf] %vm435, %v430
      %437 = vst.msk [vmem:[%s340 + $0x4] sm:$0xf] %vm435, %v432
      %v438 = vld [vmem:[%s258] sm:$0xf]
      %v439 = vld [vmem:[%s258 + $0x8] sm:$0xf]
      %v440 = vld [vmem:[%s258 + $0x4] sm:$0xf]
      %v441 = vld [vmem:[%s258 + $0xc] sm:$0xf]
      %v444 = vunpack.c.l.b16 %v438
      %v445 = vunpack.c.l.b16 %v439
      %v446 = vpack.c.b16 %v445, %v444
      %447 = vrot.lane.b32.xlu0 %v446, 96
      %v448 = vpop.permute.xlu0 %447
      %449 = vrot.lane.b32.xlu0 %v446, 32
      %v450 = vpop.permute.xlu0 %449
      %v452 = vsel %vm270, %v448, 0
      %v455 = vsel %vm270, %v450, 0
      %457 = vmatpush.bf16.xpose.msra.mxu0 0
      %458 = vmatpush.bf16.xpose.msra.mxu0 0
      %459 = vmatpush.bf16.xpose.msra.mxu0 0
      %460 = vmatpush.bf16.xpose.msra.mxu0 0
      %461 = vmatpush.bf16.xpose.msra.mxu0 0
      %462 = vmatpush.bf16.xpose.msra.mxu0 0
      %463 = vmatpush.bf16.xpose.msra.mxu0 0
      %464 = vmatpush.bf16.xpose.msra.mxu0 %v455
      %465 = vmatmul.bf16.gmra.mxu0 %v452
      %v466 = vpop.f32.mrf.mxu0
      %v467 = vadd.f32 0.0, %v466
      %v468 = vpop.f32.mrf.mxu0
      %v469 = vadd.f32 0.0, %v468
      %470 = vdwg.mxu0
      %v471 = vsel %vm270, %v467, -inf
      %472 = vmax.xlane.f32.xlu0 %v471
      %v473 = vpop.xlane.xlu0 %472
      %v474 = vsel %vm270, %v469, -inf
      %475 = vmax.xlane.f32.xlu0 %v474
      %v476 = vpop.xlane.xlu0 %475
      %v477 = vsub.f32 %v467, %v473
      %v478 = vsub.f32 %v469, %v476
      %v479 = vmul.f32 %v477, 1.442695
      %v480 = vpow.pop %v479
      %v481 = vmul.f32 %v478, 1.442695
      %v482 = vpow.pop %v481
      %v483 = vsel %vm270, %v480, 0.0
      %484 = vadd.xlane.f32.xlu0 %v483
      %v485 = vpop.xlane.xlu0 %484
      %v486 = vsel %vm270, %v482, 0.0
      %487 = vadd.xlane.f32.xlu0 %v486
      %v488 = vpop.xlane.xlu0 %487
      %v489 = vrcp.pop %v485
      %v490 = vrcp.pop %v488
      %v491 = vmul.f32 %v480, %v489
      %v492 = vmul.f32 %v482, %v490
      %v493 = vpack.c.bf16 %v492, %v491
      %v496 = vunpack.c.l.b16 %v440
      %v497 = vunpack.c.l.b16 %v441
      %v498 = vpack.c.b16 %v497, %v496
      %499 = vrot.lane.b32.xlu0 %v498, 96
      %v500 = vpop.permute.xlu0 %499
      %v503 = vsel %vm270, %v493, 0
      %505 = vmatpush.bf16.msra.mxu0 0
      %506 = vmatpush.bf16.msra.mxu0 0
      %507 = vmatpush.bf16.msra.mxu0 0
      %508 = vmatpush.bf16.msra.mxu0 0
      %509 = vmatpush.bf16.msra.mxu0 0
      %510 = vmatpush.bf16.msra.mxu0 0
      %511 = vmatpush.bf16.msra.mxu0 0
      %512 = vmatpush.bf16.msra.mxu0 %v500
      %513 = vmatmul.bf16.gmra.mxu0 %v503
      %v514 = vpop.f32.mrf.mxu0
      %v515 = vadd.f32 0.0, %v514
      %v516 = vpop.f32.mrf.mxu0
      %v517 = vadd.f32 0.0, %v516
      %518 = vdwg.mxu0
      %v519 = vpack.c.bf16 %v515, %v515
      %v520 = vpack.c.bf16 %v517, %v517
      %523 = vrot.lane.b32.xlu0 %v519, 32
      %v524 = vpop.permute.xlu0 %523
      %525 = vrot.lane.b32.xlu0 %v520, 32
      %v526 = vpop.permute.xlu0 %525
      %vm529 = vcmask 388352
      %530 = vst.msk [vmem:[%s340] sm:$0xf] %vm529, %v524
      %531 = vst.msk [vmem:[%s340 + $0x4] sm:$0xf] %vm529, %v526
      %v532 = vld [vmem:[%s258] sm:$0xf]
      %v533 = vld [vmem:[%s258 + $0x8] sm:$0xf]
      %v534 = vld [vmem:[%s258 + $0x4] sm:$0xf]
      %v535 = vld [vmem:[%s258 + $0xc] sm:$0xf]
      %v538 = vunpack.c.l.b16 %v532
      %v539 = vunpack.c.l.b16 %v533
      %v540 = vpack.c.b16 %v539, %v538
      %541 = vrot.lane.b32.xlu0 %v540, 80
      %v542 = vpop.permute.xlu0 %541
      %543 = vrot.lane.b32.xlu0 %v540, 16
      %v544 = vpop.permute.xlu0 %543
      %v546 = vsel %vm270, %v542, 0
      %v549 = vsel %vm270, %v544, 0
      %551 = vmatpush.bf16.xpose.msra.mxu0 0
      %552 = vmatpush.bf16.xpose.msra.mxu0 0
      %553 = vmatpush.bf16.xpose.msra.mxu0 0
      %554 = vmatpush.bf16.xpose.msra.mxu0 0
      %555 = vmatpush.bf16.xpose.msra.mxu0 0
      %556 = vmatpush.bf16.xpose.msra.mxu0 0
      %557 = vmatpush.bf16.xpose.msra.mxu0 0
      %558 = vmatpush.bf16.xpose.msra.mxu0 %v549
      %559 = vmatmul.bf16.gmra.mxu0 %v546
      %v560 = vpop.f32.mrf.mxu0
      %v561 = vadd.f32 0.0, %v560
      %v562 = vpop.f32.mrf.mxu0
      %v563 = vadd.f32 0.0, %v562
      %564 = vdwg.mxu0
      %v565 = vsel %vm270, %v561, -inf
      %566 = vmax.xlane.f32.xlu0 %v565
      %v567 = vpop.xlane.xlu0 %566
      %v568 = vsel %vm270, %v563, -inf
      %569 = vmax.xlane.f32.xlu0 %v568
      %v570 = vpop.xlane.xlu0 %569
      %v571 = vsub.f32 %v561, %v567
      %v572 = vsub.f32 %v563, %v570
      %v573 = vmul.f32 %v571, 1.442695
      %v574 = vpow.pop %v573
      %v575 = vmul.f32 %v572, 1.442695
      %v576 = vpow.pop %v575
      %v577 = vsel %vm270, %v574, 0.0
      %578 = vadd.xlane.f32.xlu0 %v577
      %v579 = vpop.xlane.xlu0 %578
      %v580 = vsel %vm270, %v576, 0.0
      %581 = vadd.xlane.f32.xlu0 %v580
      %v582 = vpop.xlane.xlu0 %581
      %v583 = vrcp.pop %v579
      %v584 = vrcp.pop %v582
      %v585 = vmul.f32 %v574, %v583
      %v586 = vmul.f32 %v576, %v584
      %v587 = vpack.c.bf16 %v586, %v585
      %v590 = vunpack.c.l.b16 %v534
      %v591 = vunpack.c.l.b16 %v535
      %v592 = vpack.c.b16 %v591, %v590
      %593 = vrot.lane.b32.xlu0 %v592, 80
      %v594 = vpop.permute.xlu0 %593
      %v597 = vsel %vm270, %v587, 0
      %599 = vmatpush.bf16.msra.mxu0 0
      %600 = vmatpush.bf16.msra.mxu0 0
      %601 = vmatpush.bf16.msra.mxu0 0
      %602 = vmatpush.bf16.msra.mxu0 0
      %603 = vmatpush.bf16.msra.mxu0 0
      %604 = vmatpush.bf16.msra.mxu0 0
      %605 = vmatpush.bf16.msra.mxu0 0
      %606 = vmatpush.bf16.msra.mxu0 %v594
      %607 = vmatmul.bf16.gmra.mxu0 %v597
      %v608 = vpop.f32.mrf.mxu0
      %v609 = vadd.f32 0.0, %v608
      %v610 = vpop.f32.mrf.mxu0
      %v611 = vadd.f32 0.0, %v610
      %612 = vdwg.mxu0
      %v613 = vpack.c.bf16 %v609, %v609
      %v614 = vpack.c.bf16 %v611, %v611
      %617 = vrot.lane.b32.xlu0 %v613, 48
      %v618 = vpop.permute.xlu0 %617
      %619 = vrot.lane.b32.xlu0 %v614, 48
      %v620 = vpop.permute.xlu0 %619
      %vm623 = vcmask 519552
      %624 = vst.msk [vmem:[%s340] sm:$0xf] %vm623, %v618
      %625 = vst.msk [vmem:[%s340 + $0x4] sm:$0xf] %vm623, %v620
    $region70: #{tpu_custom_call.1} parent=1 // loop_footer
      %s252 = sadd.s32 1, %s248
    $region71: #{tpu_custom_call.1} parent=1 // loop_footer_branch
      %247 = sbr.rel target = $region67
    $region72: #{tpu_custom_call.1} parent=1 // loop_exit
      _
    %v626 = vld [vmem:[#allocation3] sm:$0xf]
    %v627 = vld [vmem:[#allocation3 + $0x4] sm:$0xf]
    %v628 = vld [vmem:[#allocation3 + $0x8] sm:$0xf]
    %v629 = vld [vmem:[#allocation3 + $0xc] sm:$0xf]
    %v630 = vld [vmem:[#allocation3 + $0x10] sm:$0xf]
    %v631 = vld [vmem:[#allocation3 + $0x14] sm:$0xf]
    %v632 = vld [vmem:[#allocation3 + $0x18] sm:$0xf]
    %v633 = vld [vmem:[#allocation3 + $0x1c] sm:$0xf]
    %v634 = vld [vmem:[%s3] sm:$0xf]
    %v635 = vld [vmem:[%s3 + $0x4] sm:$0xf]
    %v636 = vld [vmem:[%s3 + $0x8] sm:$0xf]
    %v637 = vld [vmem:[%s3 + $0xc] sm:$0xf]
    %v638 = vld [vmem:[%s3 + $0x10] sm:$0xf]
    %v639 = vld [vmem:[%s3 + $0x14] sm:$0xf]
    %v640 = vld [vmem:[%s3 + $0x18] sm:$0xf]
    %v641 = vld [vmem:[%s3 + $0x1c] sm:$0xf]
    %v642 = vld [vmem:[%s4] sm:$0x1]
    %v644 = vperm.slane %v642, 0
    %v654 = vunpack.c.l.b16 %v626
    %v655 = vunpack.c.l.b16 %v627
    %v656 = vunpack.c.l.b16 %v628
    %v657 = vunpack.c.l.b16 %v629
    %v658 = vunpack.c.l.b16 %v630
    %v659 = vunpack.c.l.b16 %v631
    %v660 = vunpack.c.l.b16 %v632
    %v661 = vunpack.c.l.b16 %v633
    %v662 = vpack.c.b16 %v655, %v654
    %v663 = vpack.c.b16 %v657, %v656
    %v664 = vpack.c.b16 %v659, %v658
    %v665 = vpack.c.b16 %v661, %v660
    %v674 = vunpack.c.l.b16 %v634
    %v675 = vunpack.c.l.b16 %v635
    %v676 = vunpack.c.l.b16 %v636
    %v677 = vunpack.c.l.b16 %v637
    %v678 = vunpack.c.l.b16 %v638
    %v679 = vunpack.c.l.b16 %v639
    %v680 = vunpack.c.l.b16 %v640
    %v681 = vunpack.c.l.b16 %v641
    %v682 = vpack.c.b16 %v675, %v674
    %v683 = vpack.c.b16 %v677, %v676
    %v684 = vpack.c.b16 %v679, %v678
    %v685 = vpack.c.b16 %v681, %v680
    %v691 = vsel %vm157, %v662, 0
    %v694 = vsel %vm157, %v663, 0
    %v697 = vsel %vm157, %v664, 0
    %v700 = vsel %vm157, %v665, 0
    %702 = vmatpush.bf16.msra.mxu0 0
    %703 = vmatpush.bf16.msra.mxu0 0
    %704 = vmatpush.bf16.msra.mxu0 0
    %705 = vmatpush.bf16.msra.mxu0 0
    %706 = vmatpush.bf16.msra.mxu0 %v685
    %707 = vmatpush.bf16.msra.mxu0 %v684
    %708 = vmatpush.bf16.msra.mxu0 %v683
    %709 = vmatpush.bf16.msra.mxu0 %v682
    %710 = vmatmul.bf16.gmra.mxu0 %v691
    %v711 = vpop.f32.mrf.mxu0
    %v712 = vadd.f32 %v644, %v711
    %v713 = vpop.f32.mrf.mxu0
    %v714 = vadd.f32 %v644, %v713
    %715 = vmatmul.bf16.gmra.mxu0 %v694
    %v716 = vpop.f32.mrf.mxu0
    %v717 = vadd.f32 %v644, %v716
    %v718 = vpop.f32.mrf.mxu0
    %v719 = vadd.f32 %v644, %v718
    %720 = vmatmul.bf16.gmra.mxu0 %v697
    %v721 = vpop.f32.mrf.mxu0
    %v722 = vadd.f32 %v644, %v721
    %v723 = vpop.f32.mrf.mxu0
    %v724 = vadd.f32 %v644, %v723
    %725 = vmatmul.bf16.gmra.mxu0 %v700
    %v726 = vpop.f32.mrf.mxu0
    %v727 = vadd.f32 %v644, %v726
    %v728 = vpop.f32.mrf.mxu0
    %v729 = vadd.f32 %v644, %v728
    %730 = vdwg.mxu0
    %v731 = vadd.f32 %v91, %v712
    %v732 = vadd.f32 %v92, %v714
    %v733 = vadd.f32 %v93, %v717
    %v734 = vadd.f32 %v94, %v719
    %v735 = vadd.f32 %v95, %v722
    %v736 = vadd.f32 %v96, %v724
    %v737 = vadd.f32 %v97, %v727
    %v738 = vadd.f32 %v98, %v729
    %v739 = vld [vmem:[%s9] sm:$0x1]
    %v740 = vld [vmem:[%s10] sm:$0x1]
    %v741 = vsel %vm157, %v731, 0.0
    %742 = vadd.xlane.f32.xlu0 %v741
    %v743 = vpop.xlane.xlu0 %742
    %v744 = vsel %vm157, %v732, 0.0
    %745 = vadd.xlane.f32.xlu0 %v744
    %v746 = vpop.xlane.xlu0 %745
    %v747 = vsel %vm157, %v733, 0.0
    %748 = vadd.xlane.f32.xlu0 %v747
    %v749 = vpop.xlane.xlu0 %748
    %v750 = vsel %vm157, %v734, 0.0
    %751 = vadd.xlane.f32.xlu0 %v750
    %v752 = vpop.xlane.xlu0 %751
    %v753 = vsel %vm157, %v735, 0.0
    %754 = vadd.xlane.f32.xlu0 %v753
    %v755 = vpop.xlane.xlu0 %754
    %v756 = vsel %vm157, %v736, 0.0
    %757 = vadd.xlane.f32.xlu0 %v756
    %v758 = vpop.xlane.xlu0 %757
    %v759 = vsel %vm157, %v737, 0.0
    %760 = vadd.xlane.f32.xlu0 %v759
    %v761 = vpop.xlane.xlu0 %760
    %v762 = vsel %vm157, %v738, 0.0
    %763 = vadd.xlane.f32.xlu0 %v762
    %v764 = vpop.xlane.xlu0 %763
    %v765 = vrcp.pop 64.0
    %v766 = vmul.f32 64.0, %v765
    %v767 = vsub.f32 1.0, %v766
    %v768 = vmul.f32 %v765, %v767
    %v769 = vadd.f32 %v765, %v768
    %vm770 = vweird.f32 %v765
    %v771 = vsel %vm770, %v765, %v769
    %v772 = vmul.f32 %v743, %v771
    %v773 = vmul.f32 %v746, %v771
    %v774 = vmul.f32 %v749, %v771
    %v775 = vmul.f32 %v752, %v771
    %v776 = vmul.f32 %v755, %v771
    %v777 = vmul.f32 %v758, %v771
    %v778 = vmul.f32 %v761, %v771
    %v779 = vmul.f32 %v764, %v771
    %v780 = vsub.f32 %v731, %v772
    %v781 = vsub.f32 %v732, %v773
    %v782 = vsub.f32 %v733, %v774
    %v783 = vsub.f32 %v734, %v775
    %v784 = vsub.f32 %v735, %v776
    %v785 = vsub.f32 %v736, %v777
    %v786 = vsub.f32 %v737, %v778
    %v787 = vsub.f32 %v738, %v779
    %v788 = vmul.f32 %v780, %v780
    %v789 = vmul.f32 %v781, %v781
    %v790 = vmul.f32 %v782, %v782
    %v791 = vmul.f32 %v783, %v783
    %v792 = vmul.f32 %v784, %v784
    %v793 = vmul.f32 %v785, %v785
    %v794 = vmul.f32 %v786, %v786
    %v795 = vmul.f32 %v787, %v787
    %v796 = vsel %vm157, %v788, 0.0
    %797 = vadd.xlane.f32.xlu0 %v796
    %v798 = vpop.xlane.xlu0 %797
    %v799 = vsel %vm157, %v789, 0.0
    %800 = vadd.xlane.f32.xlu0 %v799
    %v801 = vpop.xlane.xlu0 %800
    %v802 = vsel %vm157, %v790, 0.0
    %803 = vadd.xlane.f32.xlu0 %v802
    %v804 = vpop.xlane.xlu0 %803
    %v805 = vsel %vm157, %v791, 0.0
    %806 = vadd.xlane.f32.xlu0 %v805
    %v807 = vpop.xlane.xlu0 %806
    %v808 = vsel %vm157, %v792, 0.0
    %809 = vadd.xlane.f32.xlu0 %v808
    %v810 = vpop.xlane.xlu0 %809
    %v811 = vsel %vm157, %v793, 0.0
    %812 = vadd.xlane.f32.xlu0 %v811
    %v813 = vpop.xlane.xlu0 %812
    %v814 = vsel %vm157, %v794, 0.0
    %815 = vadd.xlane.f32.xlu0 %v814
    %v816 = vpop.xlane.xlu0 %815
    %v817 = vsel %vm157, %v795, 0.0
    %818 = vadd.xlane.f32.xlu0 %v817
    %v819 = vpop.xlane.xlu0 %818
    %v820 = vmul.f32 %v798, %v771
    %v821 = vmul.f32 %v801, %v771
    %v822 = vmul.f32 %v804, %v771
    %v823 = vmul.f32 %v807, %v771
    %v824 = vmul.f32 %v810, %v771
    %v825 = vmul.f32 %v813, %v771
    %v826 = vmul.f32 %v816, %v771
    %v827 = vmul.f32 %v819, %v771
    %v828 = vadd.f32 %v820, 1e-05
    %v829 = vadd.f32 %v821, 1e-05
    %v830 = vadd.f32 %v822, 1e-05
    %v831 = vadd.f32 %v823, 1e-05
    %v832 = vadd.f32 %v824, 1e-05
    %v833 = vadd.f32 %v825, 1e-05
    %v834 = vadd.f32 %v826, 1e-05
    %v835 = vadd.f32 %v827, 1e-05
    %v836 = vrsqrt.pop %v828
    %v837 = vmul.f32 %v836, %v828
    %v838 = vmul.f32 %v837, %v836
    %v839 = vmul.f32 0.5, %v838
    %v840 = vsub.f32 1.5, %v839
    %v841 = vmul.f32 %v836, %v840
    %vm842 = vweird.f32 %v828
    %vm843 = vweird.f32 %v836
    %vm844 = vmor %vm842, %vm843
    %v845 = vsel %vm844, %v836, %v841
    %v846 = vrsqrt.pop %v829
    %v847 = vmul.f32 %v846, %v829
    %v848 = vmul.f32 %v847, %v846
    %v849 = vmul.f32 0.5, %v848
    %v850 = vsub.f32 1.5, %v849
    %v851 = vmul.f32 %v846, %v850
    %vm852 = vweird.f32 %v829
    %vm853 = vweird.f32 %v846
    %vm854 = vmor %vm852, %vm853
    %v855 = vsel %vm854, %v846, %v851
    %v856 = vrsqrt.pop %v830
    %v857 = vmul.f32 %v856, %v830
    %v858 = vmul.f32 %v857, %v856
    %v859 = vmul.f32 0.5, %v858
    %v860 = vsub.f32 1.5, %v859
    %v861 = vmul.f32 %v856, %v860
    %vm862 = vweird.f32 %v830
    %vm863 = vweird.f32 %v856
    %vm864 = vmor %vm862, %vm863
    %v865 = vsel %vm864, %v856, %v861
    %v866 = vrsqrt.pop %v831
    %v867 = vmul.f32 %v866, %v831
    %v868 = vmul.f32 %v867, %v866
    %v869 = vmul.f32 0.5, %v868
    %v870 = vsub.f32 1.5, %v869
    %v871 = vmul.f32 %v866, %v870
    %vm872 = vweird.f32 %v831
    %vm873 = vweird.f32 %v866
    %vm874 = vmor %vm872, %vm873
    %v875 = vsel %vm874, %v866, %v871
    %v876 = vrsqrt.pop %v832
    %v877 = vmul.f32 %v876, %v832
    %v878 = vmul.f32 %v877, %v876
    %v879 = vmul.f32 0.5, %v878
    %v880 = vsub.f32 1.5, %v879
    %v881 = vmul.f32 %v876, %v880
    %vm882 = vweird.f32 %v832
    %vm883 = vweird.f32 %v876
    %vm884 = vmor %vm882, %vm883
    %v885 = vsel %vm884, %v876, %v881
    %v886 = vrsqrt.pop %v833
    %v887 = vmul.f32 %v886, %v833
    %v888 = vmul.f32 %v887, %v886
    %v889 = vmul.f32 0.5, %v888
    %v890 = vsub.f32 1.5, %v889
    %v891 = vmul.f32 %v886, %v890
    %vm892 = vweird.f32 %v833
    %vm893 = vweird.f32 %v886
    %vm894 = vmor %vm892, %vm893
    %v895 = vsel %vm894, %v886, %v891
    %v896 = vrsqrt.pop %v834
    %v897 = vmul.f32 %v896, %v834
    %v898 = vmul.f32 %v897, %v896
    %v899 = vmul.f32 0.5, %v898
    %v900 = vsub.f32 1.5, %v899
    %v901 = vmul.f32 %v896, %v900
    %vm902 = vweird.f32 %v834
    %vm903 = vweird.f32 %v896
    %vm904 = vmor %vm902, %vm903
    %v905 = vsel %vm904, %v896, %v901
    %v906 = vrsqrt.pop %v835
    %v907 = vmul.f32 %v906, %v835
    %v908 = vmul.f32 %v907, %v906
    %v909 = vmul.f32 0.5, %v908
    %v910 = vsub.f32 1.5, %v909
    %v911 = vmul.f32 %v906, %v910
    %vm912 = vweird.f32 %v835
    %vm913 = vweird.f32 %v906
    %vm914 = vmor %vm912, %vm913
    %v915 = vsel %vm914, %v906, %v911
    %v916 = vmul.f32 %v780, %v845
    %v917 = vmul.f32 %v781, %v855
    %v918 = vmul.f32 %v782, %v865
    %v919 = vmul.f32 %v783, %v875
    %v920 = vmul.f32 %v784, %v885
    %v921 = vmul.f32 %v785, %v895
    %v922 = vmul.f32 %v786, %v905
    %v923 = vmul.f32 %v787, %v915
    %v925 = vperm.slane %v739, 0
    %v927 = vmul.f32 %v916, %v925
    %v928 = vmul.f32 %v917, %v925
    %v929 = vmul.f32 %v918, %v925
    %v930 = vmul.f32 %v919, %v925
    %v931 = vmul.f32 %v920, %v925
    %v932 = vmul.f32 %v921, %v925
    %v933 = vmul.f32 %v922, %v925
    %v934 = vmul.f32 %v923, %v925
    %v936 = vperm.slane %v740, 0
    %v938 = vadd.f32 %v927, %v936
    %v939 = vadd.f32 %v928, %v936
    %v940 = vadd.f32 %v929, %v936
    %v941 = vadd.f32 %v930, %v936
    %v942 = vadd.f32 %v931, %v936
    %v943 = vadd.f32 %v932, %v936
    %v944 = vadd.f32 %v933, %v936
    %v945 = vadd.f32 %v934, %v936
    %v946 = vpack.c.bf16 %v939, %v938
    %v947 = vpack.c.bf16 %v941, %v940
    %v948 = vpack.c.bf16 %v943, %v942
    %v949 = vpack.c.bf16 %v945, %v944
    %v950 = vld [vmem:[#allocation9] sm:$0xf]
    %v951 = vld [vmem:[#allocation9 + $0x4] sm:$0xf]
    %v952 = vld [vmem:[#allocation9 + $0x8] sm:$0xf]
    %v953 = vld [vmem:[#allocation9 + $0xc] sm:$0xf]
    %v954 = vld [vmem:[#allocation9 + $0x10] sm:$0xf]
    %v955 = vld [vmem:[#allocation9 + $0x14] sm:$0xf]
    %v956 = vld [vmem:[#allocation9 + $0x18] sm:$0xf]
    %v957 = vld [vmem:[#allocation9 + $0x1c] sm:$0xf]
    %v958 = vld [vmem:[%s6] sm:$0x1]
    %v960 = vperm.slane %v958, 0
    %v970 = vunpack.c.l.b16 %v950
    %v971 = vunpack.c.l.b16 %v951
    %v972 = vunpack.c.l.b16 %v952
    %v973 = vunpack.c.l.b16 %v953
    %v974 = vunpack.c.l.b16 %v954
    %v975 = vunpack.c.l.b16 %v955
    %v976 = vunpack.c.l.b16 %v956
    %v977 = vunpack.c.l.b16 %v957
    %v978 = vpack.c.b16 %v971, %v970
    %v979 = vpack.c.b16 %v973, %v972
    %v980 = vpack.c.b16 %v975, %v974
    %v981 = vpack.c.b16 %v977, %v976
    %v987 = vsel %vm157, %v946, 0
    %v990 = vsel %vm157, %v947, 0
    %v993 = vsel %vm157, %v948, 0
    %v996 = vsel %vm157, %v949, 0
    %998 = vmatpush.bf16.msra.mxu0 0
    %999 = vmatpush.bf16.msra.mxu0 0
    %1000 = vmatpush.bf16.msra.mxu0 0
    %1001 = vmatpush.bf16.msra.mxu0 0
    %1002 = vmatpush.bf16.msra.mxu0 %v981
    %1003 = vmatpush.bf16.msra.mxu0 %v980
    %1004 = vmatpush.bf16.msra.mxu0 %v979
    %1005 = vmatpush.bf16.msra.mxu0 %v978
    %1006 = vmatmul.bf16.gmra.mxu0 %v987
    %v1007 = vpop.f32.mrf.mxu0
    %v1008 = vadd.f32 %v960, %v1007
    %v1009 = vpop.f32.mrf.mxu0
    %v1010 = vadd.f32 %v960, %v1009
    %1011 = vmatmul.bf16.gmra.mxu0 %v990
    %v1012 = vpop.f32.mrf.mxu0
    %v1013 = vadd.f32 %v960, %v1012
    %v1014 = vpop.f32.mrf.mxu0
    %v1015 = vadd.f32 %v960, %v1014
    %1016 = vmatmul.bf16.gmra.mxu0 %v993
    %v1017 = vpop.f32.mrf.mxu0
    %v1018 = vadd.f32 %v960, %v1017
    %v1019 = vpop.f32.mrf.mxu0
    %v1020 = vadd.f32 %v960, %v1019
    %1021 = vmatmul.bf16.gmra.mxu0 %v996
    %v1022 = vpop.f32.mrf.mxu0
    %v1023 = vadd.f32 %v960, %v1022
    %v1024 = vpop.f32.mrf.mxu0
    %v1025 = vadd.f32 %v960, %v1024
    %1026 = vdwg.mxu0
    %v1027 = vmul.f32 %v1008, 0.5
    %v1028 = vmul.f32 %v1010, 0.5
    %v1029 = vmul.f32 %v1013, 0.5
    %v1030 = vmul.f32 %v1015, 0.5
    %v1031 = vmul.f32 %v1018, 0.5
    %v1032 = vmul.f32 %v1020, 0.5
    %v1033 = vmul.f32 %v1023, 0.5
    %v1034 = vmul.f32 %v1025, 0.5
    %v1035 = vmul.f32 %v1008, 0.70710677
    %v1036 = vmul.f32 %v1010, 0.70710677
    %v1037 = vmul.f32 %v1013, 0.70710677
    %v1038 = vmul.f32 %v1015, 0.70710677
    %v1039 = vmul.f32 %v1018, 0.70710677
    %v1040 = vmul.f32 %v1020, 0.70710677
    %v1041 = vmul.f32 %v1023, 0.70710677
    %v1042 = vmul.f32 %v1025, 0.70710677
    %v1043 = vand.u32 2147483647, %v1035
    %v1044 = vand.u32 2147483647, %v1036
    %v1045 = vand.u32 2147483647, %v1037
    %v1046 = vand.u32 2147483647, %v1038
    %v1047 = vand.u32 2147483647, %v1039
    %v1048 = vand.u32 2147483647, %v1040
    %v1049 = vand.u32 2147483647, %v1041
    %v1050 = vand.u32 2147483647, %v1042
    %v1051 = vmul.f32 %v1043, 0.3275911
    %v1052 = vmul.f32 %v1044, 0.3275911
    %v1053 = vmul.f32 %v1045, 0.3275911
    %v1054 = vmul.f32 %v1046, 0.3275911
    %v1055 = vmul.f32 %v1047, 0.3275911
    %v1056 = vmul.f32 %v1048, 0.3275911
    %v1057 = vmul.f32 %v1049, 0.3275911
    %v1058 = vmul.f32 %v1050, 0.3275911
    %v1059 = vadd.f32 %v1051, 1.0
    %v1060 = vadd.f32 %v1052, 1.0
    %v1061 = vadd.f32 %v1053, 1.0
    %v1062 = vadd.f32 %v1054, 1.0
    %v1063 = vadd.f32 %v1055, 1.0
    %v1064 = vadd.f32 %v1056, 1.0
    %v1065 = vadd.f32 %v1057, 1.0
    %v1066 = vadd.f32 %v1058, 1.0
    %v1067 = vrcp.pop %v1059
    %v1068 = vmul.f32 %v1059, %v1067
    %v1069 = vsub.f32 1.0, %v1068
    %v1070 = vmul.f32 %v1067, %v1069
    %v1071 = vadd.f32 %v1067, %v1070
    %vm1072 = vweird.f32 %v1059
    %vm1073 = vweird.f32 %v1067
    %vm1074 = vmor %vm1072, %vm1073
    %v1075 = vsel %vm1074, %v1067, %v1071
    %v1076 = vand.u32 2147483647, %v1059
    %vm1077 = vcmp.eq.f32.partialorder %v1076, 8.507059e+37
    %v1078 = vand.u32 %v1059, 2147483648
    %v1079 = vor.u32 1.1754944e-38, %v1078
    %v1080 = vsel %vm1077, %v1079, %v1075
    %v1081 = vmul.f32 1.0, %v1080
    %v1082 = vrcp.pop %v1060
    %v1083 = vmul.f32 %v1060, %v1082
    %v1084 = vsub.f32 1.0, %v1083
    %v1085 = vmul.f32 %v1082, %v1084
    %v1086 = vadd.f32 %v1082, %v1085
    %vm1087 = vweird.f32 %v1060
    %vm1088 = vweird.f32 %v1082
    %vm1089 = vmor %vm1087, %vm1088
    %v1090 = vsel %vm1089, %v1082, %v1086
    %v1091 = vand.u32 2147483647, %v1060
    %vm1092 = vcmp.eq.f32.partialorder %v1091, 8.507059e+37
    %v1093 = vand.u32 %v1060, 2147483648
    %v1094 = vor.u32 1.1754944e-38, %v1093
    %v1095 = vsel %vm1092, %v1094, %v1090
    %v1096 = vmul.f32 1.0, %v1095
    %v1097 = vrcp.pop %v1061
    %v1098 = vmul.f32 %v1061, %v1097
    %v1099 = vsub.f32 1.0, %v1098
    %v1100 = vmul.f32 %v1097, %v1099
    %v1101 = vadd.f32 %v1097, %v1100
    %vm1102 = vweird.f32 %v1061
    %vm1103 = vweird.f32 %v1097
    %vm1104 = vmor %vm1102, %vm1103
    %v1105 = vsel %vm1104, %v1097, %v1101
    %v1106 = vand.u32 2147483647, %v1061
    %vm1107 = vcmp.eq.f32.partialorder %v1106, 8.507059e+37
    %v1108 = vand.u32 %v1061, 2147483648
    %v1109 = vor.u32 1.1754944e-38, %v1108
    %v1110 = vsel %vm1107, %v1109, %v1105
    %v1111 = vmul.f32 1.0, %v1110
    %v1112 = vrcp.pop %v1062
    %v1113 = vmul.f32 %v1062, %v1112
    %v1114 = vsub.f32 1.0, %v1113
    %v1115 = vmul.f32 %v1112, %v1114
    %v1116 = vadd.f32 %v1112, %v1115
    %vm1117 = vweird.f32 %v1062
    %vm1118 = vweird.f32 %v1112
    %vm1119 = vmor %vm1117, %vm1118
    %v1120 = vsel %vm1119, %v1112, %v1116
    %v1121 = vand.u32 2147483647, %v1062
    %vm1122 = vcmp.eq.f32.partialorder %v1121, 8.507059e+37
    %v1123 = vand.u32 %v1062, 2147483648
    %v1124 = vor.u32 1.1754944e-38, %v1123
    %v1125 = vsel %vm1122, %v1124, %v1120
    %v1126 = vmul.f32 1.0, %v1125
    %v1127 = vrcp.pop %v1063
    %v1128 = vmul.f32 %v1063, %v1127
    %v1129 = vsub.f32 1.0, %v1128
    %v1130 = vmul.f32 %v1127, %v1129
    %v1131 = vadd.f32 %v1127, %v1130
    %vm1132 = vweird.f32 %v1063
    %vm1133 = vweird.f32 %v1127
    %vm1134 = vmor %vm1132, %vm1133
    %v1135 = vsel %vm1134, %v1127, %v1131
    %v1136 = vand.u32 2147483647, %v1063
    %vm1137 = vcmp.eq.f32.partialorder %v1136, 8.507059e+37
    %v1138 = vand.u32 %v1063, 2147483648
    %v1139 = vor.u32 1.1754944e-38, %v1138
    %v1140 = vsel %vm1137, %v1139, %v1135
    %v1141 = vmul.f32 1.0, %v1140
    %v1142 = vrcp.pop %v1064
    %v1143 = vmul.f32 %v1064, %v1142
    %v1144 = vsub.f32 1.0, %v1143
    %v1145 = vmul.f32 %v1142, %v1144
    %v1146 = vadd.f32 %v1142, %v1145
    %vm1147 = vweird.f32 %v1064
    %vm1148 = vweird.f32 %v1142
    %vm1149 = vmor %vm1147, %vm1148
    %v1150 = vsel %vm1149, %v1142, %v1146
    %v1151 = vand.u32 2147483647, %v1064
    %vm1152 = vcmp.eq.f32.partialorder %v1151, 8.507059e+37
    %v1153 = vand.u32 %v1064, 2147483648
    %v1154 = vor.u32 1.1754944e-38, %v1153
    %v1155 = vsel %vm1152, %v1154, %v1150
    %v1156 = vmul.f32 1.0, %v1155
    %v1157 = vrcp.pop %v1065
    %v1158 = vmul.f32 %v1065, %v1157
    %v1159 = vsub.f32 1.0, %v1158
    %v1160 = vmul.f32 %v1157, %v1159
    %v1161 = vadd.f32 %v1157, %v1160
    %vm1162 = vweird.f32 %v1065
    %vm1163 = vweird.f32 %v1157
    %vm1164 = vmor %vm1162, %vm1163
    %v1165 = vsel %vm1164, %v1157, %v1161
    %v1166 = vand.u32 2147483647, %v1065
    %vm1167 = vcmp.eq.f32.partialorder %v1166, 8.507059e+37
    %v1168 = vand.u32 %v1065, 2147483648
    %v1169 = vor.u32 1.1754944e-38, %v1168
    %v1170 = vsel %vm1167, %v1169, %v1165
    %v1171 = vmul.f32 1.0, %v1170
    %v1172 = vrcp.pop %v1066
    %v1173 = vmul.f32 %v1066, %v1172
    %v1174 = vsub.f32 1.0, %v1173
    %v1175 = vmul.f32 %v1172, %v1174
    %v1176 = vadd.f32 %v1172, %v1175
    %vm1177 = vweird.f32 %v1066
    %vm1178 = vweird.f32 %v1172
    %vm1179 = vmor %vm1177, %vm1178
    %v1180 = vsel %vm1179, %v1172, %v1176
    %v1181 = vand.u32 2147483647, %v1066
    %vm1182 = vcmp.eq.f32.partialorder %v1181, 8.507059e+37
    %v1183 = vand.u32 %v1066, 2147483648
    %v1184 = vor.u32 1.1754944e-38, %v1183
    %v1185 = vsel %vm1182, %v1184, %v1180
    %v1186 = vmul.f32 1.0, %v1185
    %v1187 = vmul.f32 %v1081, 1.0614054
    %v1188 = vmul.f32 %v1096, 1.0614054
    %v1189 = vmul.f32 %v1111, 1.0614054
    %v1190 = vmul.f32 %v1126, 1.0614054
    %v1191 = vmul.f32 %v1141, 1.0614054
    %v1192 = vmul.f32 %v1156, 1.0614054
    %v1193 = vmul.f32 %v1171, 1.0614054
    %v1194 = vmul.f32 %v1186, 1.0614054
    %v1195 = vadd.f32 %v1187, -1.4531521
    %v1196 = vadd.f32 %v1188, -1.4531521
    %v1197 = vadd.f32 %v1189, -1.4531521
    %v1198 = vadd.f32 %v1190, -1.4531521
    %v1199 = vadd.f32 %v1191, -1.4531521
    %v1200 = vadd.f32 %v1192, -1.4531521
    %v1201 = vadd.f32 %v1193, -1.4531521
    %v1202 = vadd.f32 %v1194, -1.4531521
    %v1203 = vmul.f32 %v1195, %v1081
    %v1204 = vmul.f32 %v1196, %v1096
    %v1205 = vmul.f32 %v1197, %v1111
    %v1206 = vmul.f32 %v1198, %v1126
    %v1207 = vmul.f32 %v1199, %v1141
    %v1208 = vmul.f32 %v1200, %v1156
    %v1209 = vmul.f32 %v1201, %v1171
    %v1210 = vmul.f32 %v1202, %v1186
    %v1211 = vadd.f32 %v1203, 1.4214138
    %v1212 = vadd.f32 %v1204, 1.4214138
    %v1213 = vadd.f32 %v1205, 1.4214138
    %v1214 = vadd.f32 %v1206, 1.4214138
    %v1215 = vadd.f32 %v1207, 1.4214138
    %v1216 = vadd.f32 %v1208, 1.4214138
    %v1217 = vadd.f32 %v1209, 1.4214138
    %v1218 = vadd.f32 %v1210, 1.4214138
    %v1219 = vmul.f32 %v1211, %v1081
    %v1220 = vmul.f32 %v1212, %v1096
    %v1221 = vmul.f32 %v1213, %v1111
    %v1222 = vmul.f32 %v1214, %v1126
    %v1223 = vmul.f32 %v1215, %v1141
    %v1224 = vmul.f32 %v1216, %v1156
    %v1225 = vmul.f32 %v1217, %v1171
    %v1226 = vmul.f32 %v1218, %v1186
    %v1227 = vadd.f32 %v1219, -0.28449672
    %v1228 = vadd.f32 %v1220, -0.28449672
    %v1229 = vadd.f32 %v1221, -0.28449672
    %v1230 = vadd.f32 %v1222, -0.28449672
    %v1231 = vadd.f32 %v1223, -0.28449672
    %v1232 = vadd.f32 %v1224, -0.28449672
    %v1233 = vadd.f32 %v1225, -0.28449672
    %v1234 = vadd.f32 %v1226, -0.28449672
    %v1235 = vmul.f32 %v1227, %v1081
    %v1236 = vmul.f32 %v1228, %v1096
    %v1237 = vmul.f32 %v1229, %v1111
    %v1238 = vmul.f32 %v1230, %v1126
    %v1239 = vmul.f32 %v1231, %v1141
    %v1240 = vmul.f32 %v1232, %v1156
    %v1241 = vmul.f32 %v1233, %v1171
    %v1242 = vmul.f32 %v1234, %v1186
    %v1243 = vadd.f32 %v1235, 0.2548296
    %v1244 = vadd.f32 %v1236, 0.2548296
    %v1245 = vadd.f32 %v1237, 0.2548296
    %v1246 = vadd.f32 %v1238, 0.2548296
    %v1247 = vadd.f32 %v1239, 0.2548296
    %v1248 = vadd.f32 %v1240, 0.2548296
    %v1249 = vadd.f32 %v1241, 0.2548296
    %v1250 = vadd.f32 %v1242, 0.2548296
    %v1251 = vmul.f32 %v1243, %v1081
    %v1252 = vmul.f32 %v1244, %v1096
    %v1253 = vmul.f32 %v1245, %v1111
    %v1254 = vmul.f32 %v1246, %v1126
    %v1255 = vmul.f32 %v1247, %v1141
    %v1256 = vmul.f32 %v1248, %v1156
    %v1257 = vmul.f32 %v1249, %v1171
    %v1258 = vmul.f32 %v1250, %v1186
    %v1259 = vmul.f32 %v1043, %v1043
    %v1260 = vmul.f32 %v1044, %v1044
    %v1261 = vmul.f32 %v1045, %v1045
    %v1262 = vmul.f32 %v1046, %v1046
    %v1263 = vmul.f32 %v1047, %v1047
    %v1264 = vmul.f32 %v1048, %v1048
    %v1265 = vmul.f32 %v1049, %v1049
    %v1266 = vmul.f32 %v1050, %v1050
    %v1267 = vsub.f32 0.0, %v1259
    %v1268 = vsub.f32 0.0, %v1260
    %v1269 = vsub.f32 0.0, %v1261
    %v1270 = vsub.f32 0.0, %v1262
    %v1271 = vsub.f32 0.0, %v1263
    %v1272 = vsub.f32 0.0, %v1264
    %v1273 = vsub.f32 0.0, %v1265
    %v1274 = vsub.f32 0.0, %v1266
    %v1275 = vmul.f32 %v1267, 1.442695
    %v1276 = vpow.pop %v1275
    %v1277 = vmul.f32 %v1268, 1.442695
    %v1278 = vpow.pop %v1277
    %v1279 = vmul.f32 %v1269, 1.442695
    %v1280 = vpow.pop %v1279
    %v1281 = vmul.f32 %v1270, 1.442695
    %v1282 = vpow.pop %v1281
    %v1283 = vmul.f32 %v1271, 1.442695
    %v1284 = vpow.pop %v1283
    %v1285 = vmul.f32 %v1272, 1.442695
    %v1286 = vpow.pop %v1285
    %v1287 = vmul.f32 %v1273, 1.442695
    %v1288 = vpow.pop %v1287
    %v1289 = vmul.f32 %v1274, 1.442695
    %v1290 = vpow.pop %v1289
    %v1291 = vmul.f32 %v1251, %v1276
    %v1292 = vmul.f32 %v1252, %v1278
    %v1293 = vmul.f32 %v1253, %v1280
    %v1294 = vmul.f32 %v1254, %v1282
    %v1295 = vmul.f32 %v1255, %v1284
    %v1296 = vmul.f32 %v1256, %v1286
    %v1297 = vmul.f32 %v1257, %v1288
    %v1298 = vmul.f32 %v1258, %v1290
    %v1299 = vsub.f32 1.0, %v1291
    %v1300 = vsub.f32 1.0, %v1292
    %v1301 = vsub.f32 1.0, %v1293
    %v1302 = vsub.f32 1.0, %v1294
    %v1303 = vsub.f32 1.0, %v1295
    %v1304 = vsub.f32 1.0, %v1296
    %v1305 = vsub.f32 1.0, %v1297
    %v1306 = vsub.f32 1.0, %v1298
    %vm1307 = vcmp.lt.f32.partialorder %v1035, 0.0
    %vm1308 = vcmp.lt.f32.partialorder %v1036, 0.0
    %vm1309 = vcmp.lt.f32.partialorder %v1037, 0.0
    %vm1310 = vcmp.lt.f32.partialorder %v1038, 0.0
    %vm1311 = vcmp.lt.f32.partialorder %v1039, 0.0
    %vm1312 = vcmp.lt.f32.partialorder %v1040, 0.0
    %vm1313 = vcmp.lt.f32.partialorder %v1041, 0.0
    %vm1314 = vcmp.lt.f32.partialorder %v1042, 0.0
    %v1315 = vsub.f32 0.0, %v1299
    %v1316 = vsub.f32 0.0, %v1300
    %v1317 = vsub.f32 0.0, %v1301
    %v1318 = vsub.f32 0.0, %v1302
    %v1319 = vsub.f32 0.0, %v1303
    %v1320 = vsub.f32 0.0, %v1304
    %v1321 = vsub.f32 0.0, %v1305
    %v1322 = vsub.f32 0.0, %v1306
    %v1323 = vsel %vm1307, %v1315, %v1299
    %v1324 = vsel %vm1308, %v1316, %v1300
    %v1325 = vsel %vm1309, %v1317, %v1301
    %v1326 = vsel %vm1310, %v1318, %v1302
    %v1327 = vsel %vm1311, %v1319, %v1303
    %v1328 = vsel %vm1312, %v1320, %v1304
    %v1329 = vsel %vm1313, %v1321, %v1305
    %v1330 = vsel %vm1314, %v1322, %v1306
    %v1331 = vadd.f32 %v1323, 1.0
    %v1332 = vadd.f32 %v1324, 1.0
    %v1333 = vadd.f32 %v1325, 1.0
    %v1334 = vadd.f32 %v1326, 1.0
    %v1335 = vadd.f32 %v1327, 1.0
    %v1336 = vadd.f32 %v1328, 1.0
    %v1337 = vadd.f32 %v1329, 1.0
    %v1338 = vadd.f32 %v1330, 1.0
    %v1339 = vmul.f32 %v1027, %v1331
    %v1340 = vmul.f32 %v1028, %v1332
    %v1341 = vmul.f32 %v1029, %v1333
    %v1342 = vmul.f32 %v1030, %v1334
    %v1343 = vmul.f32 %v1031, %v1335
    %v1344 = vmul.f32 %v1032, %v1336
    %v1345 = vmul.f32 %v1033, %v1337
    %v1346 = vmul.f32 %v1034, %v1338
    %v1347 = vpack.c.bf16 %v1340, %v1339
    %v1348 = vpack.c.bf16 %v1342, %v1341
    %v1349 = vpack.c.bf16 %v1344, %v1343
    %v1350 = vpack.c.bf16 %v1346, %v1345
    %v1351 = vld [vmem:[%s7] sm:$0xf]
    %v1352 = vld [vmem:[%s7 + $0x4] sm:$0xf]
    %v1353 = vld [vmem:[%s7 + $0x8] sm:$0xf]
    %v1354 = vld [vmem:[%s7 + $0xc] sm:$0xf]
    %v1355 = vld [vmem:[%s7 + $0x10] sm:$0xf]
    %v1356 = vld [vmem:[%s7 + $0x14] sm:$0xf]
    %v1357 = vld [vmem:[%s7 + $0x18] sm:$0xf]
    %v1358 = vld [vmem:[%s7 + $0x1c] sm:$0xf]
    %v1359 = vld [vmem:[%s7 + $0x20] sm:$0xf]
    %v1360 = vld [vmem:[%s7 + $0x24] sm:$0xf]
    %v1361 = vld [vmem:[%s7 + $0x28] sm:$0xf]
    %v1362 = vld [vmem:[%s7 + $0x2c] sm:$0xf]
    %v1363 = vld [vmem:[%s7 + $0x30] sm:$0xf]
    %v1364 = vld [vmem:[%s7 + $0x34] sm:$0xf]
    %v1365 = vld [vmem:[%s7 + $0x38] sm:$0xf]
    %v1366 = vld [vmem:[%s7 + $0x3c] sm:$0xf]
    %v1383 = vunpack.c.l.b16 %v1351
    %v1384 = vunpack.c.l.b16 %v1352
    %v1385 = vunpack.c.l.b16 %v1353
    %v1386 = vunpack.c.l.b16 %v1354
    %v1387 = vunpack.c.l.b16 %v1355
    %v1388 = vunpack.c.l.b16 %v1356
    %v1389 = vunpack.c.l.b16 %v1357
    %v1390 = vunpack.c.l.b16 %v1358
    %v1391 = vunpack.c.l.b16 %v1359
    %v1392 = vunpack.c.l.b16 %v1360
    %v1393 = vunpack.c.l.b16 %v1361
    %v1394 = vunpack.c.l.b16 %v1362
    %v1395 = vunpack.c.l.b16 %v1363
    %v1396 = vunpack.c.l.b16 %v1364
    %v1397 = vunpack.c.l.b16 %v1365
    %v1398 = vunpack.c.l.b16 %v1366
    %v1399 = vpack.c.b16 %v1384, %v1383
    %v1400 = vpack.c.b16 %v1386, %v1385
    %v1401 = vpack.c.b16 %v1388, %v1387
    %v1402 = vpack.c.b16 %v1390, %v1389
    %v1403 = vpack.c.b16 %v1392, %v1391
    %v1404 = vpack.c.b16 %v1394, %v1393
    %v1405 = vpack.c.b16 %v1396, %v1395
    %v1406 = vpack.c.b16 %v1398, %v1397
    %1415 = vmatpush.bf16.msra.mxu0 %v1406
    %1416 = vmatpush.bf16.msra.mxu0 %v1405
    %1417 = vmatpush.bf16.msra.mxu0 %v1404
    %1418 = vmatpush.bf16.msra.mxu0 %v1403
    %1419 = vmatpush.bf16.msra.mxu0 %v1402
    %1420 = vmatpush.bf16.msra.mxu0 %v1401
    %1421 = vmatpush.bf16.msra.mxu0 %v1400
    %1422 = vmatpush.bf16.msra.mxu0 %v1399
    %1423 = vmatmul.bf16.gmra.mxu0 %v1347
    %v1424 = vpop.f32.mrf.mxu0
    %v1425 = vadd.f32 0.0, %v1424
    %v1426 = vpop.f32.mrf.mxu0
    %v1427 = vadd.f32 0.0, %v1426
    %1428 = vmatmul.bf16.gmra.mxu0 %v1348
    %v1429 = vpop.f32.mrf.mxu0
    %v1430 = vadd.f32 0.0, %v1429
    %v1431 = vpop.f32.mrf.mxu0
    %v1432 = vadd.f32 0.0, %v1431
    %1433 = vmatmul.bf16.gmra.mxu0 %v1349
    %v1434 = vpop.f32.mrf.mxu0
    %v1435 = vadd.f32 0.0, %v1434
    %v1436 = vpop.f32.mrf.mxu0
    %v1437 = vadd.f32 0.0, %v1436
    %1438 = vmatmul.bf16.gmra.mxu0 %v1350
    %v1439 = vpop.f32.mrf.mxu0
    %v1440 = vadd.f32 0.0, %v1439
    %v1441 = vpop.f32.mrf.mxu0
    %v1442 = vadd.f32 0.0, %v1441
    %1443 = vdwg.mxu0
    %v1444 = vadd.f32 %v938, %v1425
    %v1445 = vadd.f32 %v939, %v1427
    %v1446 = vadd.f32 %v940, %v1430
    %v1447 = vadd.f32 %v941, %v1432
    %v1448 = vadd.f32 %v942, %v1435
    %v1449 = vadd.f32 %v943, %v1437
    %v1450 = vadd.f32 %v944, %v1440
    %v1451 = vadd.f32 %v945, %v1442
    %v1452 = vld [vmem:[%s8] sm:$0x1]
    %v1454 = vperm.slane %v1452, 0
    %v1456 = vadd.f32 %v1444, %v1454
    %v1457 = vadd.f32 %v1445, %v1454
    %v1458 = vadd.f32 %v1446, %v1454
    %v1459 = vadd.f32 %v1447, %v1454
    %v1460 = vadd.f32 %v1448, %v1454
    %v1461 = vadd.f32 %v1449, %v1454
    %v1462 = vadd.f32 %v1450, %v1454
    %v1463 = vadd.f32 %v1451, %v1454
    %v1464 = vld [vmem:[%s11] sm:$0x1]
    %v1465 = vld [vmem:[%s12] sm:$0x1]
    %v1466 = vsel %vm157, %v1456, 0.0
    %1467 = vadd.xlane.f32.xlu0 %v1466
    %v1468 = vpop.xlane.xlu0 %1467
    %v1469 = vsel %vm157, %v1457, 0.0
    %1470 = vadd.xlane.f32.xlu0 %v1469
    %v1471 = vpop.xlane.xlu0 %1470
    %v1472 = vsel %vm157, %v1458, 0.0
    %1473 = vadd.xlane.f32.xlu0 %v1472
    %v1474 = vpop.xlane.xlu0 %1473
    %v1475 = vsel %vm157, %v1459, 0.0
    %1476 = vadd.xlane.f32.xlu0 %v1475
    %v1477 = vpop.xlane.xlu0 %1476
    %v1478 = vsel %vm157, %v1460, 0.0
    %1479 = vadd.xlane.f32.xlu0 %v1478
    %v1480 = vpop.xlane.xlu0 %1479
    %v1481 = vsel %vm157, %v1461, 0.0
    %1482 = vadd.xlane.f32.xlu0 %v1481
    %v1483 = vpop.xlane.xlu0 %1482
    %v1484 = vsel %vm157, %v1462, 0.0
    %1485 = vadd.xlane.f32.xlu0 %v1484
    %v1486 = vpop.xlane.xlu0 %1485
    %v1487 = vsel %vm157, %v1463, 0.0
    %1488 = vadd.xlane.f32.xlu0 %v1487
    %v1489 = vpop.xlane.xlu0 %1488
    %v1490 = vmul.f32 %v1468, %v771
    %v1491 = vmul.f32 %v1471, %v771
    %v1492 = vmul.f32 %v1474, %v771
    %v1493 = vmul.f32 %v1477, %v771
    %v1494 = vmul.f32 %v1480, %v771
    %v1495 = vmul.f32 %v1483, %v771
    %v1496 = vmul.f32 %v1486, %v771
    %v1497 = vmul.f32 %v1489, %v771
    %v1498 = vsub.f32 %v1456, %v1490
    %v1499 = vsub.f32 %v1457, %v1491
    %v1500 = vsub.f32 %v1458, %v1492
    %v1501 = vsub.f32 %v1459, %v1493
    %v1502 = vsub.f32 %v1460, %v1494
    %v1503 = vsub.f32 %v1461, %v1495
    %v1504 = vsub.f32 %v1462, %v1496
    %v1505 = vsub.f32 %v1463, %v1497
    %v1506 = vmul.f32 %v1498, %v1498
    %v1507 = vmul.f32 %v1499, %v1499
    %v1508 = vmul.f32 %v1500, %v1500
    %v1509 = vmul.f32 %v1501, %v1501
    %v1510 = vmul.f32 %v1502, %v1502
    %v1511 = vmul.f32 %v1503, %v1503
    %v1512 = vmul.f32 %v1504, %v1504
    %v1513 = vmul.f32 %v1505, %v1505
    %v1514 = vsel %vm157, %v1506, 0.0
    %1515 = vadd.xlane.f32.xlu0 %v1514
    %v1516 = vpop.xlane.xlu0 %1515
    %v1517 = vsel %vm157, %v1507, 0.0
    %1518 = vadd.xlane.f32.xlu0 %v1517
    %v1519 = vpop.xlane.xlu0 %1518
    %v1520 = vsel %vm157, %v1508, 0.0
    %1521 = vadd.xlane.f32.xlu0 %v1520
    %v1522 = vpop.xlane.xlu0 %1521
    %v1523 = vsel %vm157, %v1509, 0.0
    %1524 = vadd.xlane.f32.xlu0 %v1523
    %v1525 = vpop.xlane.xlu0 %1524
    %v1526 = vsel %vm157, %v1510, 0.0
    %1527 = vadd.xlane.f32.xlu0 %v1526
    %v1528 = vpop.xlane.xlu0 %1527
    %v1529 = vsel %vm157, %v1511, 0.0
    %1530 = vadd.xlane.f32.xlu0 %v1529
    %v1531 = vpop.xlane.xlu0 %1530
    %v1532 = vsel %vm157, %v1512, 0.0
    %1533 = vadd.xlane.f32.xlu0 %v1532
    %v1534 = vpop.xlane.xlu0 %1533
    %v1535 = vsel %vm157, %v1513, 0.0
    %1536 = vadd.xlane.f32.xlu0 %v1535
    %v1537 = vpop.xlane.xlu0 %1536
    %v1538 = vmul.f32 %v1516, %v771
    %v1539 = vmul.f32 %v1519, %v771
    %v1540 = vmul.f32 %v1522, %v771
    %v1541 = vmul.f32 %v1525, %v771
    %v1542 = vmul.f32 %v1528, %v771
    %v1543 = vmul.f32 %v1531, %v771
    %v1544 = vmul.f32 %v1534, %v771
    %v1545 = vmul.f32 %v1537, %v771
    %v1546 = vadd.f32 %v1538, 1e-05
    %v1547 = vadd.f32 %v1539, 1e-05
    %v1548 = vadd.f32 %v1540, 1e-05
    %v1549 = vadd.f32 %v1541, 1e-05
    %v1550 = vadd.f32 %v1542, 1e-05
    %v1551 = vadd.f32 %v1543, 1e-05
    %v1552 = vadd.f32 %v1544, 1e-05
    %v1553 = vadd.f32 %v1545, 1e-05
    %v1554 = vrsqrt.pop %v1546
    %v1555 = vmul.f32 %v1554, %v1546
    %v1556 = vmul.f32 %v1555, %v1554
    %v1557 = vmul.f32 0.5, %v1556
    %v1558 = vsub.f32 1.5, %v1557
    %v1559 = vmul.f32 %v1554, %v1558
    %vm1560 = vweird.f32 %v1546
    %vm1561 = vweird.f32 %v1554
    %vm1562 = vmor %vm1560, %vm1561
    %v1563 = vsel %vm1562, %v1554, %v1559
    %v1564 = vrsqrt.pop %v1547
    %v1565 = vmul.f32 %v1564, %v1547
    %v1566 = vmul.f32 %v1565, %v1564
    %v1567 = vmul.f32 0.5, %v1566
    %v1568 = vsub.f32 1.5, %v1567
    %v1569 = vmul.f32 %v1564, %v1568
    %vm1570 = vweird.f32 %v1547
    %vm1571 = vweird.f32 %v1564
    %vm1572 = vmor %vm1570, %vm1571
    %v1573 = vsel %vm1572, %v1564, %v1569
    %v1574 = vrsqrt.pop %v1548
    %v1575 = vmul.f32 %v1574, %v1548
    %v1576 = vmul.f32 %v1575, %v1574
    %v1577 = vmul.f32 0.5, %v1576
    %v1578 = vsub.f32 1.5, %v1577
    %v1579 = vmul.f32 %v1574, %v1578
    %vm1580 = vweird.f32 %v1548
    %vm1581 = vweird.f32 %v1574
    %vm1582 = vmor %vm1580, %vm1581
    %v1583 = vsel %vm1582, %v1574, %v1579
    %v1584 = vrsqrt.pop %v1549
    %v1585 = vmul.f32 %v1584, %v1549
    %v1586 = vmul.f32 %v1585, %v1584
    %v1587 = vmul.f32 0.5, %v1586
    %v1588 = vsub.f32 1.5, %v1587
    %v1589 = vmul.f32 %v1584, %v1588
    %vm1590 = vweird.f32 %v1549
    %vm1591 = vweird.f32 %v1584
    %vm1592 = vmor %vm1590, %vm1591
    %v1593 = vsel %vm1592, %v1584, %v1589
    %v1594 = vrsqrt.pop %v1550
    %v1595 = vmul.f32 %v1594, %v1550
    %v1596 = vmul.f32 %v1595, %v1594
    %v1597 = vmul.f32 0.5, %v1596
    %v1598 = vsub.f32 1.5, %v1597
    %v1599 = vmul.f32 %v1594, %v1598
    %vm1600 = vweird.f32 %v1550
    %vm1601 = vweird.f32 %v1594
    %vm1602 = vmor %vm1600, %vm1601
    %v1603 = vsel %vm1602, %v1594, %v1599
    %v1604 = vrsqrt.pop %v1551
    %v1605 = vmul.f32 %v1604, %v1551
    %v1606 = vmul.f32 %v1605, %v1604
    %v1607 = vmul.f32 0.5, %v1606
    %v1608 = vsub.f32 1.5, %v1607
    %v1609 = vmul.f32 %v1604, %v1608
    %vm1610 = vweird.f32 %v1551
    %vm1611 = vweird.f32 %v1604
    %vm1612 = vmor %vm1610, %vm1611
    %v1613 = vsel %vm1612, %v1604, %v1609
    %v1614 = vrsqrt.pop %v1552
    %v1615 = vmul.f32 %v1614, %v1552
    %v1616 = vmul.f32 %v1615, %v1614
    %v1617 = vmul.f32 0.5, %v1616
    %v1618 = vsub.f32 1.5, %v1617
    %v1619 = vmul.f32 %v1614, %v1618
    %vm1620 = vweird.f32 %v1552
    %vm1621 = vweird.f32 %v1614
    %vm1622 = vmor %vm1620, %vm1621
    %v1623 = vsel %vm1622, %v1614, %v1619
    %v1624 = vrsqrt.pop %v1553
    %v1625 = vmul.f32 %v1624, %v1553
    %v1626 = vmul.f32 %v1625, %v1624
    %v1627 = vmul.f32 0.5, %v1626
    %v1628 = vsub.f32 1.5, %v1627
    %v1629 = vmul.f32 %v1624, %v1628
    %vm1630 = vweird.f32 %v1553
    %vm1631 = vweird.f32 %v1624
    %vm1632 = vmor %vm1630, %vm1631
    %v1633 = vsel %vm1632, %v1624, %v1629
    %v1634 = vmul.f32 %v1498, %v1563
    %v1635 = vmul.f32 %v1499, %v1573
    %v1636 = vmul.f32 %v1500, %v1583
    %v1637 = vmul.f32 %v1501, %v1593
    %v1638 = vmul.f32 %v1502, %v1603
    %v1639 = vmul.f32 %v1503, %v1613
    %v1640 = vmul.f32 %v1504, %v1623
    %v1641 = vmul.f32 %v1505, %v1633
    %v1643 = vperm.slane %v1464, 0
    %v1645 = vmul.f32 %v1634, %v1643
    %v1646 = vmul.f32 %v1635, %v1643
    %v1647 = vmul.f32 %v1636, %v1643
    %v1648 = vmul.f32 %v1637, %v1643
    %v1649 = vmul.f32 %v1638, %v1643
    %v1650 = vmul.f32 %v1639, %v1643
    %v1651 = vmul.f32 %v1640, %v1643
    %v1652 = vmul.f32 %v1641, %v1643
    %v1654 = vperm.slane %v1465, 0
    %v1656 = vadd.f32 %v1645, %v1654
    %v1657 = vadd.f32 %v1646, %v1654
    %v1658 = vadd.f32 %v1647, %v1654
    %v1659 = vadd.f32 %v1648, %v1654
    %v1660 = vadd.f32 %v1649, %v1654
    %v1661 = vadd.f32 %v1650, %v1654
    %v1662 = vadd.f32 %v1651, %v1654
    %v1663 = vadd.f32 %v1652, %v1654
    %1664 = vst.msk [vmem:[#allocation10] sm:$0xff] %vm157, %v1656
    %1665 = vst.msk [vmem:[#allocation10 + $0x8] sm:$0xff] %vm157, %v1657
    %1666 = vst.msk [vmem:[#allocation10 + $0x10] sm:$0xff] %vm157, %v1658
    %1667 = vst.msk [vmem:[#allocation10 + $0x18] sm:$0xff] %vm157, %v1659
    %1668 = vst.msk [vmem:[#allocation10 + $0x20] sm:$0xff] %vm157, %v1660
    %1669 = vst.msk [vmem:[#allocation10 + $0x28] sm:$0xff] %vm157, %v1661
    %1670 = vst.msk [vmem:[#allocation10 + $0x30] sm:$0xff] %vm157, %v1662
    %1671 = vst.msk [vmem:[#allocation10 + $0x38] sm:$0xff] %vm157, %v1663
    // Predicated region
    $region73: #{tpu_custom_call.1} parent=1 // pred_check
      _
    $region74: #{tpu_custom_call.1} parent=1 // pred_check_branch
      %1673 = sbr.rel (0) target = $region76
    $region75: #{tpu_custom_call.1} parent=1 // pred_region
      %1675 = vsyncadd [#allocation6], 0
      %s1676 = sshll.u32 [#allocation10], 4
      %s1677 = int_to_ptr.vmem [resolvable:$true] %s1676
      %s1678 = sshll.u32 %s13, 4
      %s1679 = int_to_ptr.hbm [resolvable:$true] %s1678
      %1684 = dma.vmem_to_hbm [thread:$0]  %s1677, 1024, %s1679, [#allocation6], 128, 128, 8
    $region76: #{tpu_custom_call.1} parent=1 // pred_fallthru
      _
    // Predicated region
    $region77: #{tpu_custom_call.1} parent=1 // pred_check
      _
    $region78: #{tpu_custom_call.1} parent=1 // pred_check_branch
      %1686 = sbr.rel (0) target = $region80
    $region79: #{tpu_custom_call.1} parent=1 // pred_region
      %1688 = dma.done [#allocation6], 1024
    $region80: #{tpu_custom_call.1} parent=1 // pred_fallthru
      _
    %1689 = vsyncpa [#allocation5], 1
    %1690 = vsyncpa [#allocation8], 1
    %1691 = vsyncpa [#allocation6], 1

// kernel: tpu_custom_call.1
$region0: #{tpu_custom_call.1}
  #allocation0 [shape = 'u32[]', space=smem, size = 0x4, offset = 0x4, fixed_abs, tag = 'smem constant byte address 0x4 - core index']
  #allocation1 [shape = 'u32[72,128]{1,0:T(1,128)}', space=vmem, size = 0x9000, scoped, tag = 'internal scratch']
  #allocation2 [shape = 'bf16[64,192]{1,0:T(8,128)(2,1)}', space=vmem, size = 0x8000, scoped, tag = 'scratch operand']
  #allocation3 [shape = 'bf16[64,64]{1,0:T(8,128)(2,1)}', space=vmem, size = 0x4000, scoped, tag = 'scratch operand']
  %s0 = inlined_call_operand.vmem [shape: f32[4,16,64], index: 0, kind: input, shape index: {}]
  %s1 = inlined_call_operand.hbm [shape: bf16[64,192], index: 1, kind: input, shape index: {}]
  %s2 = inlined_call_operand.hbm [shape: f32[1,192], index: 2, kind: input, shape index: {}]
  %s3 = inlined_call_operand.vmem [shape: bf16[64,64], index: 3, kind: input, shape index: {}]
  %s4 = inlined_call_operand.vmem [shape: f32[1,64], index: 4, kind: input, shape index: {}]
  %s5 = inlined_call_operand.hbm [shape: bf16[64,128], index: 5, kind: input, shape index: {}]
  %s6 = inlined_call_operand.vmem [shape: f32[1,128], index: 6, kind: input, shape index: {}]
  %s7 = inlined_call_operand.vmem [shape: bf16[128,64], index: 7, kind: input, shape index: {}]
  %s8 = inlined_call_operand.vmem [shape: f32[1,64], index: 8, kind: input, shape index: {}]
  %s9 = inlined_call_operand.vmem [shape: f32[1,64], index: 9, kind: input, shape index: {}]
  %s10 = inlined_call_operand.vmem [shape: f32[1,64], index: 10, kind: input, shape index: {}]
  %s11 = inlined_call_operand.vmem [shape: f32[1,64], index: 11, kind: input, shape index: {}]
  %s12 = inlined_call_operand.vmem [shape: f32[1,64], index: 12, kind: input, shape index: {}]
  %s13 = inlined_call_operand.hbm [shape: f32[4,16,64], index: 13, kind: output, shape index: {}]
  %s14 = sld [smem:[#allocation0]]
  $region81: #{tpu_custom_call.1} parent=0
    _
  %s16 = ssub.s32 1, %s14
  %s17 = scalar_select 0, %s16, %s14
  $region1: #{tpu_custom_call.1} parent=0
    #allocation4 [shape = 'u8[32768]{0}', space=vmem, size = 0x8000, scoped, tag = 'input window, operand 1, single buffered']
    #allocation5 [shape = 's32[1]{0}', space=sflag, size = 0x4, scoped, tag = 'scoped memory for tpu_custom_call.1']
    #allocation6 [shape = 's32[1]{0}', space=sflag, size = 0x4, scoped, tag = 'scoped memory for tpu_custom_call.1']
    #allocation7 [shape = 'u8[1024]{0}', space=vmem, size = 0x400, scoped, tag = 'input window, operand 2, single buffered']
    #allocation8 [shape = 's32[1]{0}', space=sflag, size = 0x4, scoped, tag = 'scoped memory for tpu_custom_call.1']
    #allocation9 [shape = 'u8[16384]{0}', space=vmem, size = 0x4000, scoped, tag = 'input window, operand 5, single buffered']
    #allocation10 [shape = 'u8[32768]{0}', space=vmem, size = 0x8000, scoped, tag = 'output window, operand 0, single buffered']
    %18 = vsyncpa [#allocation5], 0
    %19 = vsyncpa [#allocation8], 0
    %20 = vsyncpa [#allocation6], 0
    // Predicated region
    $region2: #{tpu_custom_call.1} parent=1 // pred_check
      _
    $region3: #{tpu_custom_call.1} parent=1 // pred_check_branch
      %22 = sbr.rel (0) target = $region5
    $region4: #{tpu_custom_call.1} parent=1 // pred_region
      _
    $region5: #{tpu_custom_call.1} parent=1 // pred_fallthru
      _
    // Predicated region
    $region6: #{tpu_custom_call.1} parent=1 // pred_check
      _
    $region7: #{tpu_custom_call.1} parent=1 // pred_check_branch
      %24 = sbr.rel (0) target = $region9
    $region8: #{tpu_custom_call.1} parent=1 // pred_region
      %26 = vsyncadd [#allocation5], 0
      %s27 = sshll.u32 %s1, 4
      %s28 = int_to_ptr.hbm [resolvable:$true] %s27
      %s29 = sshll.u32 [#allocation4], 4
      %s30 = int_to_ptr.vmem [resolvable:$true] %s29
      %35 = dma.hbm_to_vmem [thread:$0]  %s28, 1024, %s30, [#allocation5], 128, 128, 8
    $region9: #{tpu_custom_call.1} parent=1 // pred_fallthru
      _
    // Predicated region
    $region10: #{tpu_custom_call.1} parent=1 // pred_check
      _
    $region11: #{tpu_custom_call.1} parent=1 // pred_check_branch
      %37 = sbr.rel (0) target = $region13
    $region12: #{tpu_custom_call.1} parent=1 // pred_region
      %39 = vsyncadd [#allocation8], 0
      %s41 = sshll.u32 %s2, 4
      %s42 = int_to_ptr.hbm [resolvable:$true] %s41
      %s43 = sshll.u32 [#allocation7], 4
      %s44 = int_to_ptr.vmem [resolvable:$true] %s43
      %46 = dma.hbm_to_vmem [thread:$0]  %s42, 32, %s44, [#allocation8]
    $region13: #{tpu_custom_call.1} parent=1 // pred_fallthru
      _
    // Predicated region
    $region14: #{tpu_custom_call.1} parent=1 // pred_check
      _
    $region15: #{tpu_custom_call.1} parent=1 // pred_check_branch
      %48 = sbr.rel (0) target = $region17
    $region16: #{tpu_custom_call.1} parent=1 // pred_region
      _
    $region17: #{tpu_custom_call.1} parent=1 // pred_fallthru
      _
    // Predicated region
    $region18: #{tpu_custom_call.1} parent=1 // pred_check
      _
    $region19: #{tpu_custom_call.1} parent=1 // pred_check_branch
      %50 = sbr.rel (0) target = $region21
    $region20: #{tpu_custom_call.1} parent=1 // pred_region
      _
    $region21: #{tpu_custom_call.1} parent=1 // pred_fallthru
      _
    // Predicated region
    $region22: #{tpu_custom_call.1} parent=1 // pred_check
      _
    $region23: #{tpu_custom_call.1} parent=1 // pred_check_branch
      %52 = sbr.rel (0) target = $region25
    $region24: #{tpu_custom_call.1} parent=1 // pred_region
      %54 = vsyncadd [#allocation8], 0
      %s55 = sshll.u32 %s5, 4
      %s56 = int_to_ptr.hbm [resolvable:$true] %s55
      %s57 = sshll.u32 [#allocation9], 4
      %s58 = int_to_ptr.vmem [resolvable:$true] %s57
      %63 = dma.hbm_to_vmem [thread:$0]  %s56, 512, %s58, [#allocation8], 64, 64, 4
    $region25: #{tpu_custom_call.1} parent=1 // pred_fallthru
      _
    // Predicated region
    $region26: #{tpu_custom_call.1} parent=1 // pred_check
      _
    $region27: #{tpu_custom_call.1} parent=1 // pred_check_branch
      %65 = sbr.rel (0) target = $region29
    $region28: #{tpu_custom_call.1} parent=1 // pred_region
      _
    $region29: #{tpu_custom_call.1} parent=1 // pred_fallthru
      _
    // Predicated region
    $region30: #{tpu_custom_call.1} parent=1 // pred_check
      _
    $region31: #{tpu_custom_call.1} parent=1 // pred_check_branch
      %67 = sbr.rel (0) target = $region33
    $region32: #{tpu_custom_call.1} parent=1 // pred_region
      _
    $region33: #{tpu_custom_call.1} parent=1 // pred_fallthru
      _
    // Predicated region
    $region34: #{tpu_custom_call.1} parent=1 // pred_check
      _
    $region35: #{tpu_custom_call.1} parent=1 // pred_check_branch
      %69 = sbr.rel (0) target = $region37
    $region36: #{tpu_custom_call.1} parent=1 // pred_region
      _
    $region37: #{tpu_custom_call.1} parent=1 // pred_fallthru
      _
    // Predicated region
    $region38: #{tpu_custom_call.1} parent=1 // pred_check
      _
    $region39: #{tpu_custom_call.1} parent=1 // pred_check_branch
      %71 = sbr.rel (0) target = $region41
    $region40: #{tpu_custom_call.1} parent=1 // pred_region
      _
    $region41: #{tpu_custom_call.1} parent=1 // pred_fallthru
      _
    // Predicated region
    $region42: #{tpu_custom_call.1} parent=1 // pred_check
      _
    $region43: #{tpu_custom_call.1} parent=1 // pred_check_branch
      %73 = sbr.rel (0) target = $region45
    $region44: #{tpu_custom_call.1} parent=1 // pred_region
      _
    $region45: #{tpu_custom_call.1} parent=1 // pred_fallthru
      _
    // Predicated region
    $region46: #{tpu_custom_call.1} parent=1 // pred_check
      _
    $region47: #{tpu_custom_call.1} parent=1 // pred_check_branch
      %75 = sbr.rel (0) target = $region49
    $region48: #{tpu_custom_call.1} parent=1 // pred_region
      _
    $region49: #{tpu_custom_call.1} parent=1 // pred_fallthru
      _
    // Predicated region
    $region50: #{tpu_custom_call.1} parent=1 // pred_check
      _
    $region51: #{tpu_custom_call.1} parent=1 // pred_check_branch
      %77 = sbr.rel (0) target = $region53
    $region52: #{tpu_custom_call.1} parent=1 // pred_region
      _
    $region53: #{tpu_custom_call.1} parent=1 // pred_fallthru
      _
    // Predicated region
    $region54: #{tpu_custom_call.1} parent=1 // pred_check
      _
    $region55: #{tpu_custom_call.1} parent=1 // pred_check_branch
      %79 = sbr.rel (0) target = $region57
    $region56: #{tpu_custom_call.1} parent=1 // pred_region
      %81 = dma.done [#allocation5], 1024
    $region57: #{tpu_custom_call.1} parent=1 // pred_fallthru
      _
    // Predicated region
    $region58: #{tpu_custom_call.1} parent=1 // pred_check
      _
    $region59: #{tpu_custom_call.1} parent=1 // pred_check_branch
      %83 = sbr.rel (0) target = $region61
    $region60: #{tpu_custom_call.1} parent=1 // pred_region
      %85 = dma.done [#allocation8], 32
    $region61: #{tpu_custom_call.1} parent=1 // pred_fallthru
      _
    // Predicated region
    $region62: #{tpu_custom_call.1} parent=1 // pred_check
      _
    $region63: #{tpu_custom_call.1} parent=1 // pred_check_branch
      %87 = sbr.rel (0) target = $region65
    $region64: #{tpu_custom_call.1} parent=1 // pred_region
      %89 = dma.done [#allocation8], 512
    $region65: #{tpu_custom_call.1} parent=1 // pred_fallthru
      _
    %v91 = vld [vmem:[%s0] sm:$0xff]
    %v92 = vld [vmem:[%s0 + $0x8] sm:$0xff]
    %v93 = vld [vmem:[%s0 + $0x10] sm:$0xff]
    %v94 = vld [vmem:[%s0 + $0x18] sm:$0xff]
    %v95 = vld [vmem:[%s0 + $0x20] sm:$0xff]
    %v96 = vld [vmem:[%s0 + $0x28] sm:$0xff]
    %v97 = vld [vmem:[%s0 + $0x30] sm:$0xff]
    %v98 = vld [vmem:[%s0 + $0x38] sm:$0xff]
    %v99 = vpack.c.bf16 %v92, %v91
    %v100 = vpack.c.bf16 %v94, %v93
    %v101 = vpack.c.bf16 %v96, %v95
    %v102 = vpack.c.bf16 %v98, %v97
    %v103 = vld [vmem:[#allocation4] sm:$0xff]
    %v104 = vld [vmem:[#allocation4 + $0x8] sm:$0xff]
    %v105 = vld [vmem:[#allocation4 + $0x10] sm:$0xff]
    %v106 = vld [vmem:[#allocation4 + $0x18] sm:$0xff]
    %v107 = vld [vmem:[#allocation4 + $0x20] sm:$0xff]
    %v108 = vld [vmem:[#allocation4 + $0x28] sm:$0xff]
    %v109 = vld [vmem:[#allocation4 + $0x30] sm:$0xff]
    %v110 = vld [vmem:[#allocation4 + $0x38] sm:$0xff]
    %v111 = vld [vmem:[#allocation7] sm:$0x3]
    %v113 = vperm.slane %v111, 0
    %v114 = vperm.slane %v111, 1
    %v125 = vunpack.c.l.b16 %v103
    %v126 = vunpack.c.h.b16 %v103
    %v127 = vunpack.c.l.b16 %v104
    %v128 = vunpack.c.h.b16 %v104
    %v129 = vunpack.c.l.b16 %v105
    %v130 = vunpack.c.h.b16 %v105
    %v131 = vunpack.c.l.b16 %v106
    %v132 = vunpack.c.h.b16 %v106
    %v133 = vunpack.c.l.b16 %v107
    %v134 = vunpack.c.h.b16 %v107
    %v135 = vunpack.c.l.b16 %v108
    %v136 = vunpack.c.h.b16 %v108
    %v137 = vunpack.c.l.b16 %v109
    %v138 = vunpack.c.h.b16 %v109
    %v139 = vunpack.c.l.b16 %v110
    %v140 = vunpack.c.h.b16 %v110
    %v141 = vpack.c.b16 %v127, %v125
    %v142 = vpack.c.b16 %v128, %v126
    %v143 = vpack.c.b16 %v131, %v129
    %v144 = vpack.c.b16 %v132, %v130
    %v145 = vpack.c.b16 %v135, %v133
    %v146 = vpack.c.b16 %v136, %v134
    %v147 = vpack.c.b16 %v139, %v137
    %v148 = vpack.c.b16 %v140, %v138
    %vm157 = vcmask 523264
    %v159 = vsel %vm157, %v99, 0
    %v162 = vsel %vm157, %v100, 0
    %v165 = vsel %vm157, %v101, 0
    %v168 = vsel %vm157, %v102, 0
    %170 = vmatpush.bf16.msra.mxu0 0
    %171 = vmatpush.bf16.msra.mxu0 0
    %172 = vmatpush.bf16.msra.mxu0 0
    %173 = vmatpush.bf16.msra.mxu0 0
    %174 = vmatpush.bf16.msra.mxu0 %v147
    %175 = vmatpush.bf16.msra.mxu0 %v145
    %176 = vmatpush.bf16.msra.mxu0 %v143
    %177 = vmatpush.bf16.msra.mxu0 %v141
    %178 = vmatmul.bf16.gmra.mxu0 %v159
    %v179 = vpop.f32.mrf.mxu0
    %v180 = vadd.f32 %v113, %v179
    %v181 = vpop.f32.mrf.mxu0
    %v182 = vadd.f32 %v113, %v181
    %183 = vmatmul.bf16.gmra.mxu0 %v162
    %v184 = vpop.f32.mrf.mxu0
    %v185 = vadd.f32 %v113, %v184
    %v186 = vpop.f32.mrf.mxu0
    %v187 = vadd.f32 %v113, %v186
    %188 = vmatmul.bf16.gmra.mxu0 %v165
    %v189 = vpop.f32.mrf.mxu0
    %v190 = vadd.f32 %v113, %v189
    %v191 = vpop.f32.mrf.mxu0
    %v192 = vadd.f32 %v113, %v191
    %193 = vmatmul.bf16.gmra.mxu0 %v168
    %v194 = vpop.f32.mrf.mxu0
    %v195 = vadd.f32 %v113, %v194
    %v196 = vpop.f32.mrf.mxu0
    %v197 = vadd.f32 %v113, %v196
    %198 = vdwg.mxu0
    %199 = vmatpush.bf16.msra.mxu0 0
    %200 = vmatpush.bf16.msra.mxu0 0
    %201 = vmatpush.bf16.msra.mxu0 0
    %202 = vmatpush.bf16.msra.mxu0 0
    %203 = vmatpush.bf16.msra.mxu0 %v148
    %204 = vmatpush.bf16.msra.mxu0 %v146
    %205 = vmatpush.bf16.msra.mxu0 %v144
    %206 = vmatpush.bf16.msra.mxu0 %v142
    %207 = vmatmul.bf16.gmra.mxu0 %v159
    %v208 = vpop.f32.mrf.mxu0
    %v209 = vadd.f32 %v114, %v208
    %v210 = vpop.f32.mrf.mxu0
    %v211 = vadd.f32 %v114, %v210
    %212 = vmatmul.bf16.gmra.mxu0 %v162
    %v213 = vpop.f32.mrf.mxu0
    %v214 = vadd.f32 %v114, %v213
    %v215 = vpop.f32.mrf.mxu0
    %v216 = vadd.f32 %v114, %v215
    %217 = vmatmul.bf16.gmra.mxu0 %v165
    %v218 = vpop.f32.mrf.mxu0
    %v219 = vadd.f32 %v114, %v218
    %v220 = vpop.f32.mrf.mxu0
    %v221 = vadd.f32 %v114, %v220
    %222 = vmatmul.bf16.gmra.mxu0 %v168
    %v223 = vpop.f32.mrf.mxu0
    %v224 = vadd.f32 %v114, %v223
    %v225 = vpop.f32.mrf.mxu0
    %v226 = vadd.f32 %v114, %v225
    %227 = vdwg.mxu0
    %v228 = vpack.c.bf16 %v209, %v180
    %v229 = vpack.c.bf16 %v211, %v182
    %v230 = vpack.c.bf16 %v214, %v185
    %v231 = vpack.c.bf16 %v216, %v187
    %v232 = vpack.c.bf16 %v219, %v190
    %v233 = vpack.c.bf16 %v221, %v192
    %v234 = vpack.c.bf16 %v224, %v195
    %v235 = vpack.c.bf16 %v226, %v197
    %vm236 = vcmask 1043456
    %vm237 = vcmask 523268
    %vm238 = vmor %vm237, %vm236
    %239 = vst.msk [vmem:[#allocation2] sm:$0xff] %vm238, %v228
    %240 = vst.msk [vmem:[#allocation2 + $0x8] sm:$0xff] %vm238, %v229
    %241 = vst.msk [vmem:[#allocation2 + $0x10] sm:$0xff] %vm238, %v230
    %242 = vst.msk [vmem:[#allocation2 + $0x18] sm:$0xff] %vm238, %v231
    %243 = vst.msk [vmem:[#allocation2 + $0x20] sm:$0xff] %vm238, %v232
    %244 = vst.msk [vmem:[#allocation2 + $0x28] sm:$0xff] %vm238, %v233
    %245 = vst.msk [vmem:[#allocation2 + $0x30] sm:$0xff] %vm238, %v234
    %246 = vst.msk [vmem:[#allocation2 + $0x38] sm:$0xff] %vm238, %v235
    loop: start=0, step=1, limit=4
    $region66: #{tpu_custom_call.1} parent=1 // loop_pre_header
      _
    $region67: #{tpu_custom_call.1} parent=1 // loop_header
      %s248 = sphi 0, %s252
      %p249 = scmp.ge.s32.totalorder %s248, 4
    $region68: #{tpu_custom_call.1} parent=1 // loop_header_branch
      %251 = sbr.rel (%p249) target = $region72
    $region69: #{tpu_custom_call.1} parent=1 // loop_body
      %s253 = smul.u32 %s248, 16
      %s254 = sshra.s32 %s253, 3
      %s255 = sand.u32 %s253, 7
      %s256 = smul.u32 %s254, 2
      %s257 = smul.addr %s256, 4
      %s258 = scalar_lea.vmem [#allocation2], %s257
      %v259 = vld [vmem:[%s258] sm:$0xf]
      %v260 = vld [vmem:[%s258 + $0x8] sm:$0xf]
      %v261 = vld [vmem:[%s258 + $0x4] sm:$0xf]
      %v262 = vld [vmem:[%s258 + $0xc] sm:$0xf]
      %v265 = vunpack.c.l.b16 %v259
      %v266 = vunpack.c.l.b16 %v260
      %v267 = vpack.c.b16 %v266, %v265
      %268 = vrot.lane.b32.xlu0 %v267, 64
      %v269 = vpop.permute.xlu0 %268
      %vm270 = vcmask 130048
      %v272 = vsel %vm270, %v267, 0
      %v275 = vsel %vm270, %v269, 0
      %277 = vmatpush.bf16.xpose.msra.mxu0 0
      %278 = vmatpush.bf16.xpose.msra.mxu0 0
      %279 = vmatpush.bf16.xpose.msra.mxu0 0
      %280 = vmatpush.bf16.xpose.msra.mxu0 0
      %281 = vmatpush.bf16.xpose.msra.mxu0 0
      %282 = vmatpush.bf16.xpose.msra.mxu0 0
      %283 = vmatpush.bf16.xpose.msra.mxu0 0
      %284 = vmatpush.bf16.xpose.msra.mxu0 %v275
      %285 = vmatmul.bf16.gmra.mxu0 %v272
      %v286 = vpop.f32.mrf.mxu0
      %v287 = vadd.f32 0.0, %v286
      %v288 = vpop.f32.mrf.mxu0
      %v289 = vadd.f32 0.0, %v288
      %290 = vdwg.mxu0
      %v291 = vsel %vm270, %v287, -inf
      %292 = vmax.xlane.f32.xlu0 %v291
      %v293 = vpop.xlane.xlu0 %292
      %v294 = vsel %vm270, %v289, -inf
      %295 = vmax.xlane.f32.xlu0 %v294
      %v296 = vpop.xlane.xlu0 %295
      %v297 = vsub.f32 %v287, %v293
      %v298 = vsub.f32 %v289, %v296
      %v299 = vmul.f32 %v297, 1.442695
      %v300 = vpow.pop %v299
      %v301 = vmul.f32 %v298, 1.442695
      %v302 = vpow.pop %v301
      %v303 = vsel %vm270, %v300, 0.0
      %304 = vadd.xlane.f32.xlu0 %v303
      %v305 = vpop.xlane.xlu0 %304
      %v306 = vsel %vm270, %v302, 0.0
      %307 = vadd.xlane.f32.xlu0 %v306
      %v308 = vpop.xlane.xlu0 %307
      %v309 = vrcp.pop %v305
      %v310 = vrcp.pop %v308
      %v311 = vmul.f32 %v300, %v309
      %v312 = vmul.f32 %v302, %v310
      %v313 = vpack.c.bf16 %v312, %v311
      %v316 = vunpack.c.l.b16 %v261
      %v317 = vunpack.c.l.b16 %v262
      %v318 = vpack.c.b16 %v317, %v316
      %v321 = vsel %vm270, %v313, 0
      %323 = vmatpush.bf16.msra.mxu0 0
      %324 = vmatpush.bf16.msra.mxu0 0
      %325 = vmatpush.bf16.msra.mxu0 0
      %326 = vmatpush.bf16.msra.mxu0 0
      %327 = vmatpush.bf16.msra.mxu0 0
      %328 = vmatpush.bf16.msra.mxu0 0
      %329 = vmatpush.bf16.msra.mxu0 0
      %330 = vmatpush.bf16.msra.mxu0 %v318
      %331 = vmatmul.bf16.gmra.mxu0 %v321
      %v332 = vpop.f32.mrf.mxu0
      %v333 = vadd.f32 0.0, %v332
      %v334 = vpop.f32.mrf.mxu0
      %v335 = vadd.f32 0.0, %v334
      %336 = vdwg.mxu0
      %v337 = vpack.c.bf16 %v333, %v333
      %v338 = vpack.c.bf16 %v335, %v335
      %s339 = smul.addr %s254, 4
      %s340 = scalar_lea.vmem [#allocation3], %s339
      %vm341 = vcmask 125952
      %342 = vst.msk [vmem:[%s340] sm:$0xf] %vm341, %v337
      %343 = vst.msk [vmem:[%s340 + $0x4] sm:$0xf] %vm341, %v338
      %v344 = vld [vmem:[%s258] sm:$0xf]
      %v345 = vld [vmem:[%s258 + $0x8] sm:$0xf]
      %v346 = vld [vmem:[%s258 + $0x4] sm:$0xf]
      %v347 = vld [vmem:[%s258 + $0xc] sm:$0xf]
      %v350 = vunpack.c.l.b16 %v344
      %v351 = vunpack.c.l.b16 %v345
      %v352 = vpack.c.b16 %v351, %v350
      %353 = vrot.lane.b32.xlu0 %v352, 112
      %v354 = vpop.permute.xlu0 %353
      %355 = vrot.lane.b32.xlu0 %v352, 48
      %v356 = vpop.permute.xlu0 %355
      %v358 = vsel %vm270, %v354, 0
      %v361 = vsel %vm270, %v356, 0
      %363 = vmatpush.bf16.xpose.msra.mxu0 0
      %364 = vmatpush.bf16.xpose.msra.mxu0 0
      %365 = vmatpush.bf16.xpose.msra.mxu0 0
      %366 = vmatpush.bf16.xpose.msra.mxu0 0
      %367 = vmatpush.bf16.xpose.msra.mxu0 0
      %368 = vmatpush.bf16.xpose.msra.mxu0 0
      %369 = vmatpush.bf16.xpose.msra.mxu0 0
      %370 = vmatpush.bf16.xpose.msra.mxu0 %v361
      %371 = vmatmul.bf16.gmra.mxu0 %v358
      %v372 = vpop.f32.mrf.mxu0
      %v373 = vadd.f32 0.0, %v372
      %v374 = vpop.f32.mrf.mxu0
      %v375 = vadd.f32 0.0, %v374
      %376 = vdwg.mxu0
      %v377 = vsel %vm270, %v373, -inf
      %378 = vmax.xlane.f32.xlu0 %v377
      %v379 = vpop.xlane.xlu0 %378
      %v380 = vsel %vm270, %v375, -inf
      %381 = vmax.xlane.f32.xlu0 %v380
      %v382 = vpop.xlane.xlu0 %381
      %v383 = vsub.f32 %v373, %v379
      %v384 = vsub.f32 %v375, %v382
      %v385 = vmul.f32 %v383, 1.442695
      %v386 = vpow.pop %v385
      %v387 = vmul.f32 %v384, 1.442695
      %v388 = vpow.pop %v387
      %v389 = vsel %vm270, %v386, 0.0
      %390 = vadd.xlane.f32.xlu0 %v389
      %v391 = vpop.xlane.xlu0 %390
      %v392 = vsel %vm270, %v388, 0.0
      %393 = vadd.xlane.f32.xlu0 %v392
      %v394 = vpop.xlane.xlu0 %393
      %v395 = vrcp.pop %v391
      %v396 = vrcp.pop %v394
      %v397 = vmul.f32 %v386, %v395
      %v398 = vmul.f32 %v388, %v396
      %v399 = vpack.c.bf16 %v398, %v397
      %v402 = vunpack.c.l.b16 %v346
      %v403 = vunpack.c.l.b16 %v347
      %v404 = vpack.c.b16 %v403, %v402
      %405 = vrot.lane.b32.xlu0 %v404, 112
      %v406 = vpop.permute.xlu0 %405
      %v409 = vsel %vm270, %v399, 0
      %411 = vmatpush.bf16.msra.mxu0 0
      %412 = vmatpush.bf16.msra.mxu0 0
      %413 = vmatpush.bf16.msra.mxu0 0
      %414 = vmatpush.bf16.msra.mxu0 0
      %415 = vmatpush.bf16.msra.mxu0 0
      %416 = vmatpush.bf16.msra.mxu0 0
      %417 = vmatpush.bf16.msra.mxu0 0
      %418 = vmatpush.bf16.msra.mxu0 %v406
      %419 = vmatmul.bf16.gmra.mxu0 %v409
      %v420 = vpop.f32.mrf.mxu0
      %v421 = vadd.f32 0.0, %v420
      %v422 = vpop.f32.mrf.mxu0
      %v423 = vadd.f32 0.0, %v422
      %424 = vdwg.mxu0
      %v425 = vpack.c.bf16 %v421, %v421
      %v426 = vpack.c.bf16 %v423, %v423
      %429 = vrot.lane.b32.xlu0 %v425, 16
      %v430 = vpop.permute.xlu0 %429
      %431 = vrot.lane.b32.xlu0 %v426, 16
      %v432 = vpop.permute.xlu0 %431
      %vm435 = vcmask 257152
      %436 = vst.msk [vmem:[%s340] sm:$0xf] %vm435, %v430
      %437 = vst.msk [vmem:[%s340 + $0x4] sm:$0xf] %vm435, %v432
      %v438 = vld [vmem:[%s258] sm:$0xf]
      %v439 = vld [vmem:[%s258 + $0x8] sm:$0xf]
      %v440 = vld [vmem:[%s258 + $0x4] sm:$0xf]
      %v441 = vld [vmem:[%s258 + $0xc] sm:$0xf]
      %v444 = vunpack.c.l.b16 %v438
      %v445 = vunpack.c.l.b16 %v439
      %v446 = vpack.c.b16 %v445, %v444
      %447 = vrot.lane.b32.xlu0 %v446, 96
      %v448 = vpop.permute.xlu0 %447
      %449 = vrot.lane.b32.xlu0 %v446, 32
      %v450 = vpop.permute.xlu0 %449
      %v452 = vsel %vm270, %v448, 0
      %v455 = vsel %vm270, %v450, 0
      %457 = vmatpush.bf16.xpose.msra.mxu0 0
      %458 = vmatpush.bf16.xpose.msra.mxu0 0
      %459 = vmatpush.bf16.xpose.msra.mxu0 0
      %460 = vmatpush.bf16.xpose.msra.mxu0 0
      %461 = vmatpush.bf16.xpose.msra.mxu0 0
      %462 = vmatpush.bf16.xpose.msra.mxu0 0
      %463 = vmatpush.bf16.xpose.msra.mxu0 0
      %464 = vmatpush.bf16.xpose.msra.mxu0 %v455
      %465 = vmatmul.bf16.gmra.mxu0 %v452
      %v466 = vpop.f32.mrf.mxu0
      %v467 = vadd.f32 0.0, %v466
      %v468 = vpop.f32.mrf.mxu0
      %v469 = vadd.f32 0.0, %v468
      %470 = vdwg.mxu0
      %v471 = vsel %vm270, %v467, -inf
      %472 = vmax.xlane.f32.xlu0 %v471
      %v473 = vpop.xlane.xlu0 %472
      %v474 = vsel %vm270, %v469, -inf
      %475 = vmax.xlane.f32.xlu0 %v474
      %v476 = vpop.xlane.xlu0 %475
      %v477 = vsub.f32 %v467, %v473
      %v478 = vsub.f32 %v469, %v476
      %v479 = vmul.f32 %v477, 1.442695
      %v480 = vpow.pop %v479
      %v481 = vmul.f32 %v478, 1.442695
      %v482 = vpow.pop %v481
      %v483 = vsel %vm270, %v480, 0.0
      %484 = vadd.xlane.f32.xlu0 %v483
      %v485 = vpop.xlane.xlu0 %484
      %v486 = vsel %vm270, %v482, 0.0
      %487 = vadd.xlane.f32.xlu0 %v486
      %v488 = vpop.xlane.xlu0 %487
      %v489 = vrcp.pop %v485
      %v490 = vrcp.pop %v488
      %v491 = vmul.f32 %v480, %v489
      %v492 = vmul.f32 %v482, %v490
      %v493 = vpack.c.bf16 %v492, %v491
      %v496 = vunpack.c.l.b16 %v440
      %v497 = vunpack.c.l.b16 %v441
      %v498 = vpack.c.b16 %v497, %v496
      %499 = vrot.lane.b32.xlu0 %v498, 96
      %v500 = vpop.permute.xlu0 %499
      %v503 = vsel %vm270, %v493, 0
      %505 = vmatpush.bf16.msra.mxu0 0
      %506 = vmatpush.bf16.msra.mxu0 0
      %507 = vmatpush.bf16.msra.mxu0 0
      %508 = vmatpush.bf16.msra.mxu0 0
      %509 = vmatpush.bf16.msra.mxu0 0
      %510 = vmatpush.bf16.msra.mxu0 0
      %511 = vmatpush.bf16.msra.mxu0 0
      %512 = vmatpush.bf16.msra.mxu0 %v500
      %513 = vmatmul.bf16.gmra.mxu0 %v503
      %v514 = vpop.f32.mrf.mxu0
      %v515 = vadd.f32 0.0, %v514
      %v516 = vpop.f32.mrf.mxu0
      %v517 = vadd.f32 0.0, %v516
      %518 = vdwg.mxu0
      %v519 = vpack.c.bf16 %v515, %v515
      %v520 = vpack.c.bf16 %v517, %v517
      %523 = vrot.lane.b32.xlu0 %v519, 32
      %v524 = vpop.permute.xlu0 %523
      %525 = vrot.lane.b32.xlu0 %v520, 32
      %v526 = vpop.permute.xlu0 %525
      %vm529 = vcmask 388352
      %530 = vst.msk [vmem:[%s340] sm:$0xf] %vm529, %v524
      %531 = vst.msk [vmem:[%s340 + $0x4] sm:$0xf] %vm529, %v526
      %v532 = vld [vmem:[%s258] sm:$0xf]
      %v533 = vld [vmem:[%s258 + $0x8] sm:$0xf]
      %v534 = vld [vmem:[%s258 + $0x4] sm:$0xf]
      %v535 = vld [vmem:[%s258 + $0xc] sm:$0xf]
      %v538 = vunpack.c.l.b16 %v532
      %v539 = vunpack.c.l.b16 %v533
      %v540 = vpack.c.b16 %v539, %v538
      %541 = vrot.lane.b32.xlu0 %v540, 80
      %v542 = vpop.permute.xlu0 %541
      %543 = vrot.lane.b32.xlu0 %v540, 16
      %v544 = vpop.permute.xlu0 %543
      %v546 = vsel %vm270, %v542, 0
      %v549 = vsel %vm270, %v544, 0
      %551 = vmatpush.bf16.xpose.msra.mxu0 0
      %552 = vmatpush.bf16.xpose.msra.mxu0 0
      %553 = vmatpush.bf16.xpose.msra.mxu0 0
      %554 = vmatpush.bf16.xpose.msra.mxu0 0
      %555 = vmatpush.bf16.xpose.msra.mxu0 0
      %556 = vmatpush.bf16.xpose.msra.mxu0 0
      %557 = vmatpush.bf16.xpose.msra.mxu0 0
      %558 = vmatpush.bf16.xpose.msra.mxu0 %v549
      %559 = vmatmul.bf16.gmra.mxu0 %v546
      %v560 = vpop.f32.mrf.mxu0
      %v561 = vadd.f32 0.0, %v560
      %v562 = vpop.f32.mrf.mxu0
      %v563 = vadd.f32 0.0, %v562
      %564 = vdwg.mxu0
      %v565 = vsel %vm270, %v561, -inf
      %566 = vmax.xlane.f32.xlu0 %v565
      %v567 = vpop.xlane.xlu0 %566
      %v568 = vsel %vm270, %v563, -inf
      %569 = vmax.xlane.f32.xlu0 %v568
      %v570 = vpop.xlane.xlu0 %569
      %v571 = vsub.f32 %v561, %v567
      %v572 = vsub.f32 %v563, %v570
      %v573 = vmul.f32 %v571, 1.442695
      %v574 = vpow.pop %v573
      %v575 = vmul.f32 %v572, 1.442695
      %v576 = vpow.pop %v575
      %v577 = vsel %vm270, %v574, 0.0
      %578 = vadd.xlane.f32.xlu0 %v577
      %v579 = vpop.xlane.xlu0 %578
      %v580 = vsel %vm270, %v576, 0.0
      %581 = vadd.xlane.f32.xlu0 %v580
      %v582 = vpop.xlane.xlu0 %581
      %v583 = vrcp.pop %v579
      %v584 = vrcp.pop %v582
      %v585 = vmul.f32 %v574, %v583
      %v586 = vmul.f32 %v576, %v584
      %v587 = vpack.c.bf16 %v586, %v585
      %v590 = vunpack.c.l.b16 %v534
      %v591 = vunpack.c.l.b16 %v535
      %v592 = vpack.c.b16 %v591, %v590
      %593 = vrot.lane.b32.xlu0 %v592, 80
      %v594 = vpop.permute.xlu0 %593
      %v597 = vsel %vm270, %v587, 0
      %599 = vmatpush.bf16.msra.mxu0 0
      %600 = vmatpush.bf16.msra.mxu0 0
      %601 = vmatpush.bf16.msra.mxu0 0
      %602 = vmatpush.bf16.msra.mxu0 0
      %603 = vmatpush.bf16.msra.mxu0 0
      %604 = vmatpush.bf16.msra.mxu0 0
      %605 = vmatpush.bf16.msra.mxu0 0
      %606 = vmatpush.bf16.msra.mxu0 %v594
      %607 = vmatmul.bf16.gmra.mxu0 %v597
      %v608 = vpop.f32.mrf.mxu0
      %v609 = vadd.f32 0.0, %v608
      %v610 = vpop.f32.mrf.mxu0
      %v611 = vadd.f32 0.0, %v610
      %612 = vdwg.mxu0
      %v613 = vpack.c.bf16 %v609, %v609
      %v614 = vpack.c.bf16 %v611, %v611
      %617 = vrot.lane.b32.xlu0 %v613, 48
      %v618 = vpop.permute.xlu0 %617
      %619 = vrot.lane.b32.xlu0 %v614, 48
      %v620 = vpop.permute.xlu0 %619
      %vm623 = vcmask 519552
      %624 = vst.msk [vmem:[%s340] sm:$0xf] %vm623, %v618
      %625 = vst.msk [vmem:[%s340 + $0x4] sm:$0xf] %vm623, %v620
    $region70: #{tpu_custom_call.1} parent=1 // loop_footer
      %s252 = sadd.s32 1, %s248
    $region71: #{tpu_custom_call.1} parent=1 // loop_footer_branch
      %247 = sbr.rel target = $region67
    $region72: #{tpu_custom_call.1} parent=1 // loop_exit
      _
    %v626 = vld [vmem:[#allocation3] sm:$0xf]
    %v627 = vld [vmem:[#allocation3 + $0x4] sm:$0xf]
    %v628 = vld [vmem:[#allocation3 + $0x8] sm:$0xf]
    %v629 = vld [vmem:[#allocation3 + $0xc] sm:$0xf]
    %v630 = vld [vmem:[#allocation3 + $0x10] sm:$0xf]
    %v631 = vld [vmem:[#allocation3 + $0x14] sm:$0xf]
    %v632 = vld [vmem:[#allocation3 + $0x18] sm:$0xf]
    %v633 = vld [vmem:[#allocation3 + $0x1c] sm:$0xf]
    %v634 = vld [vmem:[%s3] sm:$0xf]
    %v635 = vld [vmem:[%s3 + $0x4] sm:$0xf]
    %v636 = vld [vmem:[%s3 + $0x8] sm:$0xf]
    %v637 = vld [vmem:[%s3 + $0xc] sm:$0xf]
    %v638 = vld [vmem:[%s3 + $0x10] sm:$0xf]
    %v639 = vld [vmem:[%s3 + $0x14] sm:$0xf]
    %v640 = vld [vmem:[%s3 + $0x18] sm:$0xf]
    %v641 = vld [vmem:[%s3 + $0x1c] sm:$0xf]
    %v642 = vld [vmem:[%s4] sm:$0x1]
    %v644 = vperm.slane %v642, 0
    %v654 = vunpack.c.l.b16 %v626
    %v655 = vunpack.c.l.b16 %v627
    %v656 = vunpack.c.l.b16 %v628
    %v657 = vunpack.c.l.b16 %v629
    %v658 = vunpack.c.l.b16 %v630
    %v659 = vunpack.c.l.b16 %v631
    %v660 = vunpack.c.l.b16 %v632
    %v661 = vunpack.c.l.b16 %v633
    %v662 = vpack.c.b16 %v655, %v654
    %v663 = vpack.c.b16 %v657, %v656
    %v664 = vpack.c.b16 %v659, %v658
    %v665 = vpack.c.b16 %v661, %v660
    %v674 = vunpack.c.l.b16 %v634
    %v675 = vunpack.c.l.b16 %v635
    %v676 = vunpack.c.l.b16 %v636
    %v677 = vunpack.c.l.b16 %v637
    %v678 = vunpack.c.l.b16 %v638
    %v679 = vunpack.c.l.b16 %v639
    %v680 = vunpack.c.l.b16 %v640
    %v681 = vunpack.c.l.b16 %v641
    %v682 = vpack.c.b16 %v675, %v674
    %v683 = vpack.c.b16 %v677, %v676
    %v684 = vpack.c.b16 %v679, %v678
    %v685 = vpack.c.b16 %v681, %v680
    %v691 = vsel %vm157, %v662, 0
    %v694 = vsel %vm157, %v663, 0
    %v697 = vsel %vm157, %v664, 0
    %v700 = vsel %vm157, %v665, 0
    %702 = vmatpush.bf16.msra.mxu0 0
    %703 = vmatpush.bf16.msra.mxu0 0
    %704 = vmatpush.bf16.msra.mxu0 0
    %705 = vmatpush.bf16.msra.mxu0 0
    %706 = vmatpush.bf16.msra.mxu0 %v685
    %707 = vmatpush.bf16.msra.mxu0 %v684
    %708 = vmatpush.bf16.msra.mxu0 %v683
    %709 = vmatpush.bf16.msra.mxu0 %v682
    %710 = vmatmul.bf16.gmra.mxu0 %v691
    %v711 = vpop.f32.mrf.mxu0
    %v712 = vadd.f32 %v644, %v711
    %v713 = vpop.f32.mrf.mxu0
    %v714 = vadd.f32 %v644, %v713
    %715 = vmatmul.bf16.gmra.mxu0 %v694
    %v716 = vpop.f32.mrf.mxu0
    %v717 = vadd.f32 %v644, %v716
    %v718 = vpop.f32.mrf.mxu0
    %v719 = vadd.f32 %v644, %v718
    %720 = vmatmul.bf16.gmra.mxu0 %v697
    %v721 = vpop.f32.mrf.mxu0
    %v722 = vadd.f32 %v644, %v721
    %v723 = vpop.f32.mrf.mxu0
    %v724 = vadd.f32 %v644, %v723
    %725 = vmatmul.bf16.gmra.mxu0 %v700
    %v726 = vpop.f32.mrf.mxu0
    %v727 = vadd.f32 %v644, %v726
    %v728 = vpop.f32.mrf.mxu0
    %v729 = vadd.f32 %v644, %v728
    %730 = vdwg.mxu0
    %v731 = vadd.f32 %v91, %v712
    %v732 = vadd.f32 %v92, %v714
    %v733 = vadd.f32 %v93, %v717
    %v734 = vadd.f32 %v94, %v719
    %v735 = vadd.f32 %v95, %v722
    %v736 = vadd.f32 %v96, %v724
    %v737 = vadd.f32 %v97, %v727
    %v738 = vadd.f32 %v98, %v729
    %v739 = vld [vmem:[%s9] sm:$0x1]
    %v740 = vld [vmem:[%s10] sm:$0x1]
    %v741 = vsel %vm157, %v731, 0.0
    %742 = vadd.xlane.f32.xlu0 %v741
    %v743 = vpop.xlane.xlu0 %742
    %v744 = vsel %vm157, %v732, 0.0
    %745 = vadd.xlane.f32.xlu0 %v744
    %v746 = vpop.xlane.xlu0 %745
    %v747 = vsel %vm157, %v733, 0.0
    %748 = vadd.xlane.f32.xlu0 %v747
    %v749 = vpop.xlane.xlu0 %748
    %v750 = vsel %vm157, %v734, 0.0
    %751 = vadd.xlane.f32.xlu0 %v750
    %v752 = vpop.xlane.xlu0 %751
    %v753 = vsel %vm157, %v735, 0.0
    %754 = vadd.xlane.f32.xlu0 %v753
    %v755 = vpop.xlane.xlu0 %754
    %v756 = vsel %vm157, %v736, 0.0
    %757 = vadd.xlane.f32.xlu0 %v756
    %v758 = vpop.xlane.xlu0 %757
    %v759 = vsel %vm157, %v737, 0.0
    %760 = vadd.xlane.f32.xlu0 %v759
    %v761 = vpop.xlane.xlu0 %760
    %v762 = vsel %vm157, %v738, 0.0
    %763 = vadd.xlane.f32.xlu0 %v762
    %v764 = vpop.xlane.xlu0 %763
    %v765 = vrcp.pop 64.0
    %v766 = vmul.f32 64.0, %v765
    %v767 = vsub.f32 1.0, %v766
    %v768 = vmul.f32 %v765, %v767
    %v769 = vadd.f32 %v765, %v768
    %vm770 = vweird.f32 %v765
    %v771 = vsel %vm770, %v765, %v769
    %v772 = vmul.f32 %v743, %v771
    %v773 = vmul.f32 %v746, %v771
    %v774 = vmul.f32 %v749, %v771
    %v775 = vmul.f32 %v752, %v771
    %v776 = vmul.f32 %v755, %v771
    %v777 = vmul.f32 %v758, %v771
    %v778 = vmul.f32 %v761, %v771
    %v779 = vmul.f32 %v764, %v771
    %v780 = vsub.f32 %v731, %v772
    %v781 = vsub.f32 %v732, %v773
    %v782 = vsub.f32 %v733, %v774
    %v783 = vsub.f32 %v734, %v775
    %v784 = vsub.f32 %v735, %v776
    %v785 = vsub.f32 %v736, %v777
    %v786 = vsub.f32 %v737, %v778
    %v787 = vsub.f32 %v738, %v779
    %v788 = vmul.f32 %v780, %v780
    %v789 = vmul.f32 %v781, %v781
    %v790 = vmul.f32 %v782, %v782
    %v791 = vmul.f32 %v783, %v783
    %v792 = vmul.f32 %v784, %v784
    %v793 = vmul.f32 %v785, %v785
    %v794 = vmul.f32 %v786, %v786
    %v795 = vmul.f32 %v787, %v787
    %v796 = vsel %vm157, %v788, 0.0
    %797 = vadd.xlane.f32.xlu0 %v796
    %v798 = vpop.xlane.xlu0 %797
    %v799 = vsel %vm157, %v789, 0.0
    %800 = vadd.xlane.f32.xlu0 %v799
    %v801 = vpop.xlane.xlu0 %800
    %v802 = vsel %vm157, %v790, 0.0
    %803 = vadd.xlane.f32.xlu0 %v802
    %v804 = vpop.xlane.xlu0 %803
    %v805 = vsel %vm157, %v791, 0.0
    %806 = vadd.xlane.f32.xlu0 %v805
    %v807 = vpop.xlane.xlu0 %806
    %v808 = vsel %vm157, %v792, 0.0
    %809 = vadd.xlane.f32.xlu0 %v808
    %v810 = vpop.xlane.xlu0 %809
    %v811 = vsel %vm157, %v793, 0.0
    %812 = vadd.xlane.f32.xlu0 %v811
    %v813 = vpop.xlane.xlu0 %812
    %v814 = vsel %vm157, %v794, 0.0
    %815 = vadd.xlane.f32.xlu0 %v814
    %v816 = vpop.xlane.xlu0 %815
    %v817 = vsel %vm157, %v795, 0.0
    %818 = vadd.xlane.f32.xlu0 %v817
    %v819 = vpop.xlane.xlu0 %818
    %v820 = vmul.f32 %v798, %v771
    %v821 = vmul.f32 %v801, %v771
    %v822 = vmul.f32 %v804, %v771
    %v823 = vmul.f32 %v807, %v771
    %v824 = vmul.f32 %v810, %v771
    %v825 = vmul.f32 %v813, %v771
    %v826 = vmul.f32 %v816, %v771
    %v827 = vmul.f32 %v819, %v771
    %v828 = vadd.f32 %v820, 1e-05
    %v829 = vadd.f32 %v821, 1e-05
    %v830 = vadd.f32 %v822, 1e-05
    %v831 = vadd.f32 %v823, 1e-05
    %v832 = vadd.f32 %v824, 1e-05
    %v833 = vadd.f32 %v825, 1e-05
    %v834 = vadd.f32 %v826, 1e-05
    %v835 = vadd.f32 %v827, 1e-05
    %v836 = vrsqrt.pop %v828
    %v837 = vmul.f32 %v836, %v828
    %v838 = vmul.f32 %v837, %v836
    %v839 = vmul.f32 0.5, %v838
    %v840 = vsub.f32 1.5, %v839
    %v841 = vmul.f32 %v836, %v840
    %vm842 = vweird.f32 %v828
    %vm843 = vweird.f32 %v836
    %vm844 = vmor %vm842, %vm843
    %v845 = vsel %vm844, %v836, %v841
    %v846 = vrsqrt.pop %v829
    %v847 = vmul.f32 %v846, %v829
    %v848 = vmul.f32 %v847, %v846
    %v849 = vmul.f32 0.5, %v848
    %v850 = vsub.f32 1.5, %v849
    %v851 = vmul.f32 %v846, %v850
    %vm852 = vweird.f32 %v829
    %vm853 = vweird.f32 %v846
    %vm854 = vmor %vm852, %vm853
    %v855 = vsel %vm854, %v846, %v851
    %v856 = vrsqrt.pop %v830
    %v857 = vmul.f32 %v856, %v830
    %v858 = vmul.f32 %v857, %v856
    %v859 = vmul.f32 0.5, %v858
    %v860 = vsub.f32 1.5, %v859
    %v861 = vmul.f32 %v856, %v860
    %vm862 = vweird.f32 %v830
    %vm863 = vweird.f32 %v856
    %vm864 = vmor %vm862, %vm863
    %v865 = vsel %vm864, %v856, %v861
    %v866 = vrsqrt.pop %v831
    %v867 = vmul.f32 %v866, %v831
    %v868 = vmul.f32 %v867, %v866
    %v869 = vmul.f32 0.5, %v868
    %v870 = vsub.f32 1.5, %v869
    %v871 = vmul.f32 %v866, %v870
    %vm872 = vweird.f32 %v831
    %vm873 = vweird.f32 %v866
    %vm874 = vmor %vm872, %vm873
    %v875 = vsel %vm874, %v866, %v871
    %v876 = vrsqrt.pop %v832
    %v877 = vmul.f32 %v876, %v832
    %v878 = vmul.f32 %v877, %v876
    %v879 = vmul.f32 0.5, %v878
    %v880 = vsub.f32 1.5, %v879
    %v881 = vmul.f32 %v876, %v880
    %vm882 = vweird.f32 %v832
    %vm883 = vweird.f32 %v876
    %vm884 = vmor %vm882, %vm883
    %v885 = vsel %vm884, %v876, %v881
    %v886 = vrsqrt.pop %v833
    %v887 = vmul.f32 %v886, %v833
    %v888 = vmul.f32 %v887, %v886
    %v889 = vmul.f32 0.5, %v888
    %v890 = vsub.f32 1.5, %v889
    %v891 = vmul.f32 %v886, %v890
    %vm892 = vweird.f32 %v833
    %vm893 = vweird.f32 %v886
    %vm894 = vmor %vm892, %vm893
    %v895 = vsel %vm894, %v886, %v891
    %v896 = vrsqrt.pop %v834
    %v897 = vmul.f32 %v896, %v834
    %v898 = vmul.f32 %v897, %v896
    %v899 = vmul.f32 0.5, %v898
    %v900 = vsub.f32 1.5, %v899
    %v901 = vmul.f32 %v896, %v900
    %vm902 = vweird.f32 %v834
    %vm903 = vweird.f32 %v896
    %vm904 = vmor %vm902, %vm903
    %v905 = vsel %vm904, %v896, %v901
    %v906 = vrsqrt.pop %v835
    %v907 = vmul.f32 %v906, %v835
    %v908 = vmul.f32 %v907, %v906
    %v909 = vmul.f32 0.5, %v908
    %v910 = vsub.f32 1.5, %v909
    %v911 = vmul.f32 %v906, %v910
    %vm912 = vweird.f32 %v835
    %vm913 = vweird.f32 %v906
    %vm914 = vmor %vm912, %vm913
    %v915 = vsel %vm914, %v906, %v911
    %v916 = vmul.f32 %v780, %v845
    %v917 = vmul.f32 %v781, %v855
    %v918 = vmul.f32 %v782, %v865
    %v919 = vmul.f32 %v783, %v875
    %v920 = vmul.f32 %v784, %v885
    %v921 = vmul.f32 %v785, %v895
    %v922 = vmul.f32 %v786, %v905
    %v923 = vmul.f32 %v787, %v915
    %v925 = vperm.slane %v739, 0
    %v927 = vmul.f32 %v916, %v925
    %v928 = vmul.f32 %v917, %v925
    %v929 = vmul.f32 %v918, %v925
    %v930 = vmul.f32 %v919, %v925
    %v931 = vmul.f32 %v920, %v925
    %v932 = vmul.f32 %v921, %v925
    %v933 = vmul.f32 %v922, %v925
    %v934 = vmul.f32 %v923, %v925
    %v936 = vperm.slane %v740, 0
    %v938 = vadd.f32 %v927, %v936
    %v939 = vadd.f32 %v928, %v936
    %v940 = vadd.f32 %v929, %v936
    %v941 = vadd.f32 %v930, %v936
    %v942 = vadd.f32 %v931, %v936
    %v943 = vadd.f32 %v932, %v936
    %v944 = vadd.f32 %v933, %v936
    %v945 = vadd.f32 %v934, %v936
    %v946 = vpack.c.bf16 %v939, %v938
    %v947 = vpack.c.bf16 %v941, %v940
    %v948 = vpack.c.bf16 %v943, %v942
    %v949 = vpack.c.bf16 %v945, %v944
    %v950 = vld [vmem:[#allocation9] sm:$0xf]
    %v951 = vld [vmem:[#allocation9 + $0x4] sm:$0xf]
    %v952 = vld [vmem:[#allocation9 + $0x8] sm:$0xf]
    %v953 = vld [vmem:[#allocation9 + $0xc] sm:$0xf]
    %v954 = vld [vmem:[#allocation9 + $0x10] sm:$0xf]
    %v955 = vld [vmem:[#allocation9 + $0x14] sm:$0xf]
    %v956 = vld [vmem:[#allocation9 + $0x18] sm:$0xf]
    %v957 = vld [vmem:[#allocation9 + $0x1c] sm:$0xf]
    %v958 = vld [vmem:[%s6] sm:$0x1]
    %v960 = vperm.slane %v958, 0
    %v970 = vunpack.c.l.b16 %v950
    %v971 = vunpack.c.l.b16 %v951
    %v972 = vunpack.c.l.b16 %v952
    %v973 = vunpack.c.l.b16 %v953
    %v974 = vunpack.c.l.b16 %v954
    %v975 = vunpack.c.l.b16 %v955
    %v976 = vunpack.c.l.b16 %v956
    %v977 = vunpack.c.l.b16 %v957
    %v978 = vpack.c.b16 %v971, %v970
    %v979 = vpack.c.b16 %v973, %v972
    %v980 = vpack.c.b16 %v975, %v974
    %v981 = vpack.c.b16 %v977, %v976
    %v987 = vsel %vm157, %v946, 0
    %v990 = vsel %vm157, %v947, 0
    %v993 = vsel %vm157, %v948, 0
    %v996 = vsel %vm157, %v949, 0
    %998 = vmatpush.bf16.msra.mxu0 0
    %999 = vmatpush.bf16.msra.mxu0 0
    %1000 = vmatpush.bf16.msra.mxu0 0
    %1001 = vmatpush.bf16.msra.mxu0 0
    %1002 = vmatpush.bf16.msra.mxu0 %v981
    %1003 = vmatpush.bf16.msra.mxu0 %v980
    %1004 = vmatpush.bf16.msra.mxu0 %v979
    %1005 = vmatpush.bf16.msra.mxu0 %v978
    %1006 = vmatmul.bf16.gmra.mxu0 %v987
    %v1007 = vpop.f32.mrf.mxu0
    %v1008 = vadd.f32 %v960, %v1007
    %v1009 = vpop.f32.mrf.mxu0
    %v1010 = vadd.f32 %v960, %v1009
    %1011 = vmatmul.bf16.gmra.mxu0 %v990
    %v1012 = vpop.f32.mrf.mxu0
    %v1013 = vadd.f32 %v960, %v1012
    %v1014 = vpop.f32.mrf.mxu0
    %v1015 = vadd.f32 %v960, %v1014
    %1016 = vmatmul.bf16.gmra.mxu0 %v993
    %v1017 = vpop.f32.mrf.mxu0
    %v1018 = vadd.f32 %v960, %v1017
    %v1019 = vpop.f32.mrf.mxu0
    %v1020 = vadd.f32 %v960, %v1019
    %1021 = vmatmul.bf16.gmra.mxu0 %v996
    %v1022 = vpop.f32.mrf.mxu0
    %v1023 = vadd.f32 %v960, %v1022
    %v1024 = vpop.f32.mrf.mxu0
    %v1025 = vadd.f32 %v960, %v1024
    %1026 = vdwg.mxu0
    %v1027 = vmul.f32 %v1008, 0.5
    %v1028 = vmul.f32 %v1010, 0.5
    %v1029 = vmul.f32 %v1013, 0.5
    %v1030 = vmul.f32 %v1015, 0.5
    %v1031 = vmul.f32 %v1018, 0.5
    %v1032 = vmul.f32 %v1020, 0.5
    %v1033 = vmul.f32 %v1023, 0.5
    %v1034 = vmul.f32 %v1025, 0.5
    %v1035 = vmul.f32 %v1008, 0.70710677
    %v1036 = vmul.f32 %v1010, 0.70710677
    %v1037 = vmul.f32 %v1013, 0.70710677
    %v1038 = vmul.f32 %v1015, 0.70710677
    %v1039 = vmul.f32 %v1018, 0.70710677
    %v1040 = vmul.f32 %v1020, 0.70710677
    %v1041 = vmul.f32 %v1023, 0.70710677
    %v1042 = vmul.f32 %v1025, 0.70710677
    %v1043 = vand.u32 2147483647, %v1035
    %v1044 = vand.u32 2147483647, %v1036
    %v1045 = vand.u32 2147483647, %v1037
    %v1046 = vand.u32 2147483647, %v1038
    %v1047 = vand.u32 2147483647, %v1039
    %v1048 = vand.u32 2147483647, %v1040
    %v1049 = vand.u32 2147483647, %v1041
    %v1050 = vand.u32 2147483647, %v1042
    %v1051 = vmul.f32 %v1043, 0.3275911
    %v1052 = vmul.f32 %v1044, 0.3275911
    %v1053 = vmul.f32 %v1045, 0.3275911
    %v1054 = vmul.f32 %v1046, 0.3275911
    %v1055 = vmul.f32 %v1047, 0.3275911
    %v1056 = vmul.f32 %v1048, 0.3275911
    %v1057 = vmul.f32 %v1049, 0.3275911
    %v1058 = vmul.f32 %v1050, 0.3275911
    %v1059 = vadd.f32 %v1051, 1.0
    %v1060 = vadd.f32 %v1052, 1.0
    %v1061 = vadd.f32 %v1053, 1.0
    %v1062 = vadd.f32 %v1054, 1.0
    %v1063 = vadd.f32 %v1055, 1.0
    %v1064 = vadd.f32 %v1056, 1.0
    %v1065 = vadd.f32 %v1057, 1.0
    %v1066 = vadd.f32 %v1058, 1.0
    %v1067 = vrcp.pop %v1059
    %v1068 = vmul.f32 %v1059, %v1067
    %v1069 = vsub.f32 1.0, %v1068
    %v1070 = vmul.f32 %v1067, %v1069
    %v1071 = vadd.f32 %v1067, %v1070
    %vm1072 = vweird.f32 %v1059
    %vm1073 = vweird.f32 %v1067
    %vm1074 = vmor %vm1072, %vm1073
    %v1075 = vsel %vm1074, %v1067, %v1071
    %v1076 = vand.u32 2147483647, %v1059
    %vm1077 = vcmp.eq.f32.partialorder %v1076, 8.507059e+37
    %v1078 = vand.u32 %v1059, 2147483648
    %v1079 = vor.u32 1.1754944e-38, %v1078
    %v1080 = vsel %vm1077, %v1079, %v1075
    %v1081 = vmul.f32 1.0, %v1080
    %v1082 = vrcp.pop %v1060
    %v1083 = vmul.f32 %v1060, %v1082
    %v1084 = vsub.f32 1.0, %v1083
    %v1085 = vmul.f32 %v1082, %v1084
    %v1086 = vadd.f32 %v1082, %v1085
    %vm1087 = vweird.f32 %v1060
    %vm1088 = vweird.f32 %v1082
    %vm1089 = vmor %vm1087, %vm1088
    %v1090 = vsel %vm1089, %v1082, %v1086
    %v1091 = vand.u32 2147483647, %v1060
    %vm1092 = vcmp.eq.f32.partialorder %v1091, 8.507059e+37
    %v1093 = vand.u32 %v1060, 2147483648
    %v1094 = vor.u32 1.1754944e-38, %v1093
    %v1095 = vsel %vm1092, %v1094, %v1090
    %v1096 = vmul.f32 1.0, %v1095
    %v1097 = vrcp.pop %v1061
    %v1098 = vmul.f32 %v1061, %v1097
    %v1099 = vsub.f32 1.0, %v1098
    %v1100 = vmul.f32 %v1097, %v1099
    %v1101 = vadd.f32 %v1097, %v1100
    %vm1102 = vweird.f32 %v1061
    %vm1103 = vweird.f32 %v1097
    %vm1104 = vmor %vm1102, %vm1103
    %v1105 = vsel %vm1104, %v1097, %v1101
    %v1106 = vand.u32 2147483647, %v1061
    %vm1107 = vcmp.eq.f32.partialorder %v1106, 8.507059e+37
    %v1108 = vand.u32 %v1061, 2147483648
    %v1109 = vor.u32 1.1754944e-38, %v1108
    %v1110 = vsel %vm1107, %v1109, %v1105
    %v1111 = vmul.f32 1.0, %v1110
    %v1112 = vrcp.pop %v1062
    %v1113 = vmul.f32 %v1062, %v1112
    %v1114 = vsub.f32 1.0, %v1113
    %v1115 = vmul.f32 %v1112, %v1114
    %v1116 = vadd.f32 %v1112, %v1115
    %vm1117 = vweird.f32 %v1062
    %vm1118 = vweird.f32 %v1112
    %vm1119 = vmor %vm1117, %vm1118
    %v1120 = vsel %vm1119, %v1112, %v1116
    %v1121 = vand.u32 2147483647, %v1062
    %vm1122 = vcmp.eq.f32.partialorder %v1121, 8.507059e+37
    %v1123 = vand.u32 %v1062, 2147483648
    %v1124 = vor.u32 1.1754944e-38, %v1123
    %v1125 = vsel %vm1122, %v1124, %v1120
    %v1126 = vmul.f32 1.0, %v1125
    %v1127 = vrcp.pop %v1063
    %v1128 = vmul.f32 %v1063, %v1127
    %v1129 = vsub.f32 1.0, %v1128
    %v1130 = vmul.f32 %v1127, %v1129
    %v1131 = vadd.f32 %v1127, %v1130
    %vm1132 = vweird.f32 %v1063
    %vm1133 = vweird.f32 %v1127
    %vm1134 = vmor %vm1132, %vm1133
    %v1135 = vsel %vm1134, %v1127, %v1131
    %v1136 = vand.u32 2147483647, %v1063
    %vm1137 = vcmp.eq.f32.partialorder %v1136, 8.507059e+37
    %v1138 = vand.u32 %v1063, 2147483648
    %v1139 = vor.u32 1.1754944e-38, %v1138
    %v1140 = vsel %vm1137, %v1139, %v1135
    %v1141 = vmul.f32 1.0, %v1140
    %v1142 = vrcp.pop %v1064
    %v1143 = vmul.f32 %v1064, %v1142
    %v1144 = vsub.f32 1.0, %v1143
    %v1145 = vmul.f32 %v1142, %v1144
    %v1146 = vadd.f32 %v1142, %v1145
    %vm1147 = vweird.f32 %v1064
    %vm1148 = vweird.f32 %v1142
    %vm1149 = vmor %vm1147, %vm1148
    %v1150 = vsel %vm1149, %v1142, %v1146
    %v1151 = vand.u32 2147483647, %v1064
    %vm1152 = vcmp.eq.f32.partialorder %v1151, 8.507059e+37
    %v1153 = vand.u32 %v1064, 2147483648
    %v1154 = vor.u32 1.1754944e-38, %v1153
    %v1155 = vsel %vm1152, %v1154, %v1150
    %v1156 = vmul.f32 1.0, %v1155
    %v1157 = vrcp.pop %v1065
    %v1158 = vmul.f32 %v1065, %v1157
    %v1159 = vsub.f32 1.0, %v1158
    %v1160 = vmul.f32 %v1157, %v1159
    %v1161 = vadd.f32 %v1157, %v1160
    %vm1162 = vweird.f32 %v1065
    %vm1163 = vweird.f32 %v1157
    %vm1164 = vmor %vm1162, %vm1163
    %v1165 = vsel %vm1164, %v1157, %v1161
    %v1166 = vand.u32 2147483647, %v1065
    %vm1167 = vcmp.eq.f32.partialorder %v1166, 8.507059e+37
    %v1168 = vand.u32 %v1065, 2147483648
    %v1169 = vor.u32 1.1754944e-38, %v1168
    %v1170 = vsel %vm1167, %v1169, %v1165
    %v1171 = vmul.f32 1.0, %v1170
    %v1172 = vrcp.pop %v1066
    %v1173 = vmul.f32 %v1066, %v1172
    %v1174 = vsub.f32 1.0, %v1173
    %v1175 = vmul.f32 %v1172, %v1174
    %v1176 = vadd.f32 %v1172, %v1175
    %vm1177 = vweird.f32 %v1066
    %vm1178 = vweird.f32 %v1172
    %vm1179 = vmor %vm1177, %vm1178
    %v1180 = vsel %vm1179, %v1172, %v1176
    %v1181 = vand.u32 2147483647, %v1066
    %vm1182 = vcmp.eq.f32.partialorder %v1181, 8.507059e+37
    %v1183 = vand.u32 %v1066, 2147483648
    %v1184 = vor.u32 1.1754944e-38, %v1183
    %v1185 = vsel %vm1182, %v1184, %v1180
    %v1186 = vmul.f32 1.0, %v1185
    %v1187 = vmul.f32 %v1081, 1.0614054
    %v1188 = vmul.f32 %v1096, 1.0614054
    %v1189 = vmul.f32 %v1111, 1.0614054
    %v1190 = vmul.f32 %v1126, 1.0614054
    %v1191 = vmul.f32 %v1141, 1.0614054
    %v1192 = vmul.f32 %v1156, 1.0614054
    %v1193 = vmul.f32 %v1171, 1.0614054
    %v1194 = vmul.f32 %v1186, 1.0614054
    %v1195 = vadd.f32 %v1187, -1.4531521
    %v1196 = vadd.f32 %v1188, -1.4531521
    %v1197 = vadd.f32 %v1189, -1.4531521
    %v1198 = vadd.f32 %v1190, -1.4531521
    %v1199 = vadd.f32 %v1191, -1.4531521
    %v1200 = vadd.f32 %v1192, -1.4531521
    %v1201 = vadd.f32 %v1193, -1.4531521
    %v1202 = vadd.f32 %v1194, -1.4531521
    %v1203 = vmul.f32 %v1195, %v1081
    %v1204 = vmul.f32 %v1196, %v1096
    %v1205 = vmul.f32 %v1197, %v1111
    %v1206 = vmul.f32 %v1198, %v1126
    %v1207 = vmul.f32 %v1199, %v1141
    %v1208 = vmul.f32 %v1200, %v1156
    %v1209 = vmul.f32 %v1201, %v1171
    %v1210 = vmul.f32 %v1202, %v1186
    %v1211 = vadd.f32 %v1203, 1.4214138
    %v1212 = vadd.f32 %v1204, 1.4214138
    %v1213 = vadd.f32 %v1205, 1.4214138
    %v1214 = vadd.f32 %v1206, 1.4214138
    %v1215 = vadd.f32 %v1207, 1.4214138
    %v1216 = vadd.f32 %v1208, 1.4214138
    %v1217 = vadd.f32 %v1209, 1.4214138
    %v1218 = vadd.f32 %v1210, 1.4214138
    %v1219 = vmul.f32 %v1211, %v1081
    %v1220 = vmul.f32 %v1212, %v1096
    %v1221 = vmul.f32 %v1213, %v1111
    %v1222 = vmul.f32 %v1214, %v1126
    %v1223 = vmul.f32 %v1215, %v1141
    %v1224 = vmul.f32 %v1216, %v1156
    %v1225 = vmul.f32 %v1217, %v1171
    %v1226 = vmul.f32 %v1218, %v1186
    %v1227 = vadd.f32 %v1219, -0.28449672
    %v1228 = vadd.f32 %v1220, -0.28449672
    %v1229 = vadd.f32 %v1221, -0.28449672
    %v1230 = vadd.f32 %v1222, -0.28449672
    %v1231 = vadd.f32 %v1223, -0.28449672
    %v1232 = vadd.f32 %v1224, -0.28449672
    %v1233 = vadd.f32 %v1225, -0.28449672
    %v1234 = vadd.f32 %v1226, -0.28449672
    %v1235 = vmul.f32 %v1227, %v1081
    %v1236 = vmul.f32 %v1228, %v1096
    %v1237 = vmul.f32 %v1229, %v1111
    %v1238 = vmul.f32 %v1230, %v1126
    %v1239 = vmul.f32 %v1231, %v1141
    %v1240 = vmul.f32 %v1232, %v1156
    %v1241 = vmul.f32 %v1233, %v1171
    %v1242 = vmul.f32 %v1234, %v1186
    %v1243 = vadd.f32 %v1235, 0.2548296
    %v1244 = vadd.f32 %v1236, 0.2548296
    %v1245 = vadd.f32 %v1237, 0.2548296
    %v1246 = vadd.f32 %v1238, 0.2548296
    %v1247 = vadd.f32 %v1239, 0.2548296
    %v1248 = vadd.f32 %v1240, 0.2548296
    %v1249 = vadd.f32 %v1241, 0.2548296
    %v1250 = vadd.f32 %v1242, 0.2548296
    %v1251 = vmul.f32 %v1243, %v1081
    %v1252 = vmul.f32 %v1244, %v1096
    %v1253 = vmul.f32 %v1245, %v1111
    %v1254 = vmul.f32 %v1246, %v1126
    %v1255 = vmul.f32 %v1247, %v1141
    %v1256 = vmul.f32 %v1248, %v1156
    %v1257 = vmul.f32 %v1249, %v1171
    %v1258 = vmul.f32 %v1250, %v1186
    %v1259 = vmul.f32 %v1043, %v1043
    %v1260 = vmul.f32 %v1044, %v1044
    %v1261 = vmul.f32 %v1045, %v1045
    %v1262 = vmul.f32 %v1046, %v1046
    %v1263 = vmul.f32 %v1047, %v1047
    %v1264 = vmul.f32 %v1048, %v1048
    %v1265 = vmul.f32 %v1049, %v1049
    %v1266 = vmul.f32 %v1050, %v1050
    %v1267 = vsub.f32 0.0, %v1259
    %v1268 = vsub.f32 0.0, %v1260
    %v1269 = vsub.f32 0.0, %v1261
    %v1270 = vsub.f32 0.0, %v1262
    %v1271 = vsub.f32 0.0, %v1263
    %v1272 = vsub.f32 0.0, %v1264
    %v1273 = vsub.f32 0.0, %v1265
    %v1274 = vsub.f32 0.0, %v1266
    %v1275 = vmul.f32 %v1267, 1.442695
    %v1276 = vpow.pop %v1275
    %v1277 = vmul.f32 %v1268, 1.442695
    %v1278 = vpow.pop %v1277
    %v1279 = vmul.f32 %v1269, 1.442695
    %v1280 = vpow.pop %v1279
    %v1281 = vmul.f32 %v1270, 1.442695
    %v1282 = vpow.pop %v1281
    %v1283 = vmul.f32 %v1271, 1.442695
    %v1284 = vpow.pop %v1283
    %v1285 = vmul.f32 %v1272, 1.442695
    %v1286 = vpow.pop %v1285
    %v1287 = vmul.f32 %v1273, 1.442695
    %v1288 = vpow.pop %v1287
    %v1289 = vmul.f32 %v1274, 1.442695
    %v1290 = vpow.pop %v1289
    %v1291 = vmul.f32 %v1251, %v1276
    %v1292 = vmul.f32 %v1252, %v1278
    %v1293 = vmul.f32 %v1253, %v1280
    %v1294 = vmul.f32 %v1254, %v1282
    %v1295 = vmul.f32 %v1255, %v1284
    %v1296 = vmul.f32 %v1256, %v1286
    %v1297 = vmul.f32 %v1257, %v1288
    %v1298 = vmul.f32 %v1258, %v1290
    %v1299 = vsub.f32 1.0, %v1291
    %v1300 = vsub.f32 1.0, %v1292
    %v1301 = vsub.f32 1.0, %v1293
    %v1302 = vsub.f32 1.0, %v1294
    %v1303 = vsub.f32 1.0, %v1295
    %v1304 = vsub.f32 1.0, %v1296
    %v1305 = vsub.f32 1.0, %v1297
    %v1306 = vsub.f32 1.0, %v1298
    %vm1307 = vcmp.lt.f32.partialorder %v1035, 0.0
    %vm1308 = vcmp.lt.f32.partialorder %v1036, 0.0
    %vm1309 = vcmp.lt.f32.partialorder %v1037, 0.0
    %vm1310 = vcmp.lt.f32.partialorder %v1038, 0.0
    %vm1311 = vcmp.lt.f32.partialorder %v1039, 0.0
    %vm1312 = vcmp.lt.f32.partialorder %v1040, 0.0
    %vm1313 = vcmp.lt.f32.partialorder %v1041, 0.0
    %vm1314 = vcmp.lt.f32.partialorder %v1042, 0.0
    %v1315 = vsub.f32 0.0, %v1299
    %v1316 = vsub.f32 0.0, %v1300
    %v1317 = vsub.f32 0.0, %v1301
    %v1318 = vsub.f32 0.0, %v1302
    %v1319 = vsub.f32 0.0, %v1303
    %v1320 = vsub.f32 0.0, %v1304
    %v1321 = vsub.f32 0.0, %v1305
    %v1322 = vsub.f32 0.0, %v1306
    %v1323 = vsel %vm1307, %v1315, %v1299
    %v1324 = vsel %vm1308, %v1316, %v1300
    %v1325 = vsel %vm1309, %v1317, %v1301
    %v1326 = vsel %vm1310, %v1318, %v1302
    %v1327 = vsel %vm1311, %v1319, %v1303
    %v1328 = vsel %vm1312, %v1320, %v1304
    %v1329 = vsel %vm1313, %v1321, %v1305
    %v1330 = vsel %vm1314, %v1322, %v1306
    %v1331 = vadd.f32 %v1323, 1.0
    %v1332 = vadd.f32 %v1324, 1.0
    %v1333 = vadd.f32 %v1325, 1.0
    %v1334 = vadd.f32 %v1326, 1.0
    %v1335 = vadd.f32 %v1327, 1.0
    %v1336 = vadd.f32 %v1328, 1.0
    %v1337 = vadd.f32 %v1329, 1.0
    %v1338 = vadd.f32 %v1330, 1.0
    %v1339 = vmul.f32 %v1027, %v1331
    %v1340 = vmul.f32 %v1028, %v1332
    %v1341 = vmul.f32 %v1029, %v1333
    %v1342 = vmul.f32 %v1030, %v1334
    %v1343 = vmul.f32 %v1031, %v1335
    %v1344 = vmul.f32 %v1032, %v1336
    %v1345 = vmul.f32 %v1033, %v1337
    %v1346 = vmul.f32 %v1034, %v1338
    %v1347 = vpack.c.bf16 %v1340, %v1339
    %v1348 = vpack.c.bf16 %v1342, %v1341
    %v1349 = vpack.c.bf16 %v1344, %v1343
    %v1350 = vpack.c.bf16 %v1346, %v1345
    %v1351 = vld [vmem:[%s7] sm:$0xf]
    %v1352 = vld [vmem:[%s7 + $0x4] sm:$0xf]
    %v1353 = vld [vmem:[%s7 + $0x8] sm:$0xf]
    %v1354 = vld [vmem:[%s7 + $0xc] sm:$0xf]
    %v1355 = vld [vmem:[%s7 + $0x10] sm:$0xf]
    %v1356 = vld [vmem:[%s7 + $0x14] sm:$0xf]
    %v1357 = vld [vmem:[%s7 + $0x18] sm:$0xf]
    %v1358 = vld [vmem:[%s7 + $0x1c] sm:$0xf]
    %v1359 = vld [vmem:[%s7 + $0x20] sm:$0xf]
    %v1360 = vld [vmem:[%s7 + $0x24] sm:$0xf]
    %v1361 = vld [vmem:[%s7 + $0x28] sm:$0xf]
    %v1362 = vld [vmem:[%s7 + $0x2c] sm:$0xf]
    %v1363 = vld [vmem:[%s7 + $0x30] sm:$0xf]
    %v1364 = vld [vmem:[%s7 + $0x34] sm:$0xf]
    %v1365 = vld [vmem:[%s7 + $0x38] sm:$0xf]
    %v1366 = vld [vmem:[%s7 + $0x3c] sm:$0xf]
    %v1383 = vunpack.c.l.b16 %v1351
    %v1384 = vunpack.c.l.b16 %v1352
    %v1385 = vunpack.c.l.b16 %v1353
    %v1386 = vunpack.c.l.b16 %v1354
    %v1387 = vunpack.c.l.b16 %v1355
    %v1388 = vunpack.c.l.b16 %v1356
    %v1389 = vunpack.c.l.b16 %v1357
    %v1390 = vunpack.c.l.b16 %v1358
    %v1391 = vunpack.c.l.b16 %v1359
    %v1392 = vunpack.c.l.b16 %v1360
    %v1393 = vunpack.c.l.b16 %v1361
    %v1394 = vunpack.c.l.b16 %v1362
    %v1395 = vunpack.c.l.b16 %v1363
    %v1396 = vunpack.c.l.b16 %v1364
    %v1397 = vunpack.c.l.b16 %v1365
    %v1398 = vunpack.c.l.b16 %v1366
    %v1399 = vpack.c.b16 %v1384, %v1383
    %v1400 = vpack.c.b16 %v1386, %v1385
    %v1401 = vpack.c.b16 %v1388, %v1387
    %v1402 = vpack.c.b16 %v1390, %v1389
    %v1403 = vpack.c.b16 %v1392, %v1391
    %v1404 = vpack.c.b16 %v1394, %v1393
    %v1405 = vpack.c.b16 %v1396, %v1395
    %v1406 = vpack.c.b16 %v1398, %v1397
    %1415 = vmatpush.bf16.msra.mxu0 %v1406
    %1416 = vmatpush.bf16.msra.mxu0 %v1405
    %1417 = vmatpush.bf16.msra.mxu0 %v1404
    %1418 = vmatpush.bf16.msra.mxu0 %v1403
    %1419 = vmatpush.bf16.msra.mxu0 %v1402
    %1420 = vmatpush.bf16.msra.mxu0 %v1401
    %1421 = vmatpush.bf16.msra.mxu0 %v1400
    %1422 = vmatpush.bf16.msra.mxu0 %v1399
    %1423 = vmatmul.bf16.gmra.mxu0 %v1347
    %v1424 = vpop.f32.mrf.mxu0
    %v1425 = vadd.f32 0.0, %v1424
    %v1426 = vpop.f32.mrf.mxu0
    %v1427 = vadd.f32 0.0, %v1426
    %1428 = vmatmul.bf16.gmra.mxu0 %v1348
    %v1429 = vpop.f32.mrf.mxu0
    %v1430 = vadd.f32 0.0, %v1429
    %v1431 = vpop.f32.mrf.mxu0
    %v1432 = vadd.f32 0.0, %v1431
    %1433 = vmatmul.bf16.gmra.mxu0 %v1349
    %v1434 = vpop.f32.mrf.mxu0
    %v1435 = vadd.f32 0.0, %v1434
    %v1436 = vpop.f32.mrf.mxu0
    %v1437 = vadd.f32 0.0, %v1436
    %1438 = vmatmul.bf16.gmra.mxu0 %v1350
    %v1439 = vpop.f32.mrf.mxu0
    %v1440 = vadd.f32 0.0, %v1439
    %v1441 = vpop.f32.mrf.mxu0
    %v1442 = vadd.f32 0.0, %v1441
    %1443 = vdwg.mxu0
    %v1444 = vadd.f32 %v938, %v1425
    %v1445 = vadd.f32 %v939, %v1427
    %v1446 = vadd.f32 %v940, %v1430
    %v1447 = vadd.f32 %v941, %v1432
    %v1448 = vadd.f32 %v942, %v1435
    %v1449 = vadd.f32 %v943, %v1437
    %v1450 = vadd.f32 %v944, %v1440
    %v1451 = vadd.f32 %v945, %v1442
    %v1452 = vld [vmem:[%s8] sm:$0x1]
    %v1454 = vperm.slane %v1452, 0
    %v1456 = vadd.f32 %v1444, %v1454
    %v1457 = vadd.f32 %v1445, %v1454
    %v1458 = vadd.f32 %v1446, %v1454
    %v1459 = vadd.f32 %v1447, %v1454
    %v1460 = vadd.f32 %v1448, %v1454
    %v1461 = vadd.f32 %v1449, %v1454
    %v1462 = vadd.f32 %v1450, %v1454
    %v1463 = vadd.f32 %v1451, %v1454
    %v1464 = vld [vmem:[%s11] sm:$0x1]
    %v1465 = vld [vmem:[%s12] sm:$0x1]
    %v1466 = vsel %vm157, %v1456, 0.0
    %1467 = vadd.xlane.f32.xlu0 %v1466
    %v1468 = vpop.xlane.xlu0 %1467
    %v1469 = vsel %vm157, %v1457, 0.0
    %1470 = vadd.xlane.f32.xlu0 %v1469
    %v1471 = vpop.xlane.xlu0 %1470
    %v1472 = vsel %vm157, %v1458, 0.0
    %1473 = vadd.xlane.f32.xlu0 %v1472
    %v1474 = vpop.xlane.xlu0 %1473
    %v1475 = vsel %vm157, %v1459, 0.0
    %1476 = vadd.xlane.f32.xlu0 %v1475
    %v1477 = vpop.xlane.xlu0 %1476
    %v1478 = vsel %vm157, %v1460, 0.0
    %1479 = vadd.xlane.f32.xlu0 %v1478
    %v1480 = vpop.xlane.xlu0 %1479
    %v1481 = vsel %vm157, %v1461, 0.0
    %1482 = vadd.xlane.f32.xlu0 %v1481
    %v1483 = vpop.xlane.xlu0 %1482
    %v1484 = vsel %vm157, %v1462, 0.0
    %1485 = vadd.xlane.f32.xlu0 %v1484
    %v1486 = vpop.xlane.xlu0 %1485
    %v1487 = vsel %vm157, %v1463, 0.0
    %1488 = vadd.xlane.f32.xlu0 %v1487
    %v1489 = vpop.xlane.xlu0 %1488
    %v1490 = vmul.f32 %v1468, %v771
    %v1491 = vmul.f32 %v1471, %v771
    %v1492 = vmul.f32 %v1474, %v771
    %v1493 = vmul.f32 %v1477, %v771
    %v1494 = vmul.f32 %v1480, %v771
    %v1495 = vmul.f32 %v1483, %v771
    %v1496 = vmul.f32 %v1486, %v771
    %v1497 = vmul.f32 %v1489, %v771
    %v1498 = vsub.f32 %v1456, %v1490
    %v1499 = vsub.f32 %v1457, %v1491
    %v1500 = vsub.f32 %v1458, %v1492
    %v1501 = vsub.f32 %v1459, %v1493
    %v1502 = vsub.f32 %v1460, %v1494
    %v1503 = vsub.f32 %v1461, %v1495
    %v1504 = vsub.f32 %v1462, %v1496
    %v1505 = vsub.f32 %v1463, %v1497
    %v1506 = vmul.f32 %v1498, %v1498
    %v1507 = vmul.f32 %v1499, %v1499
    %v1508 = vmul.f32 %v1500, %v1500
    %v1509 = vmul.f32 %v1501, %v1501
    %v1510 = vmul.f32 %v1502, %v1502
    %v1511 = vmul.f32 %v1503, %v1503
    %v1512 = vmul.f32 %v1504, %v1504
    %v1513 = vmul.f32 %v1505, %v1505
    %v1514 = vsel %vm157, %v1506, 0.0
    %1515 = vadd.xlane.f32.xlu0 %v1514
    %v1516 = vpop.xlane.xlu0 %1515
    %v1517 = vsel %vm157, %v1507, 0.0
    %1518 = vadd.xlane.f32.xlu0 %v1517
    %v1519 = vpop.xlane.xlu0 %1518
    %v1520 = vsel %vm157, %v1508, 0.0
    %1521 = vadd.xlane.f32.xlu0 %v1520
    %v1522 = vpop.xlane.xlu0 %1521
    %v1523 = vsel %vm157, %v1509, 0.0
    %1524 = vadd.xlane.f32.xlu0 %v1523
    %v1525 = vpop.xlane.xlu0 %1524
    %v1526 = vsel %vm157, %v1510, 0.0
    %1527 = vadd.xlane.f32.xlu0 %v1526
    %v1528 = vpop.xlane.xlu0 %1527
    %v1529 = vsel %vm157, %v1511, 0.0
    %1530 = vadd.xlane.f32.xlu0 %v1529
    %v1531 = vpop.xlane.xlu0 %1530
    %v1532 = vsel %vm157, %v1512, 0.0
    %1533 = vadd.xlane.f32.xlu0 %v1532
    %v1534 = vpop.xlane.xlu0 %1533
    %v1535 = vsel %vm157, %v1513, 0.0
    %1536 = vadd.xlane.f32.xlu0 %v1535
    %v1537 = vpop.xlane.xlu0 %1536
    %v1538 = vmul.f32 %v1516, %v771
    %v1539 = vmul.f32 %v1519, %v771
    %v1540 = vmul.f32 %v1522, %v771
    %v1541 = vmul.f32 %v1525, %v771
    %v1542 = vmul.f32 %v1528, %v771
    %v1543 = vmul.f32 %v1531, %v771
    %v1544 = vmul.f32 %v1534, %v771
    %v1545 = vmul.f32 %v1537, %v771
    %v1546 = vadd.f32 %v1538, 1e-05
    %v1547 = vadd.f32 %v1539, 1e-05
    %v1548 = vadd.f32 %v1540, 1e-05
    %v1549 = vadd.f32 %v1541, 1e-05
    %v1550 = vadd.f32 %v1542, 1e-05
    %v1551 = vadd.f32 %v1543, 1e-05
    %v1552 = vadd.f32 %v1544, 1e-05
    %v1553 = vadd.f32 %v1545, 1e-05
    %v1554 = vrsqrt.pop %v1546
    %v1555 = vmul.f32 %v1554, %v1546
    %v1556 = vmul.f32 %v1555, %v1554
    %v1557 = vmul.f32 0.5, %v1556
    %v1558 = vsub.f32 1.5, %v1557
    %v1559 = vmul.f32 %v1554, %v1558
    %vm1560 = vweird.f32 %v1546
    %vm1561 = vweird.f32 %v1554
    %vm1562 = vmor %vm1560, %vm1561
    %v1563 = vsel %vm1562, %v1554, %v1559
    %v1564 = vrsqrt.pop %v1547
    %v1565 = vmul.f32 %v1564, %v1547
    %v1566 = vmul.f32 %v1565, %v1564
    %v1567 = vmul.f32 0.5, %v1566
    %v1568 = vsub.f32 1.5, %v1567
    %v1569 = vmul.f32 %v1564, %v1568
    %vm1570 = vweird.f32 %v1547
    %vm1571 = vweird.f32 %v1564
    %vm1572 = vmor %vm1570, %vm1571
    %v1573 = vsel %vm1572, %v1564, %v1569
    %v1574 = vrsqrt.pop %v1548
    %v1575 = vmul.f32 %v1574, %v1548
    %v1576 = vmul.f32 %v1575, %v1574
    %v1577 = vmul.f32 0.5, %v1576
    %v1578 = vsub.f32 1.5, %v1577
    %v1579 = vmul.f32 %v1574, %v1578
    %vm1580 = vweird.f32 %v1548
    %vm1581 = vweird.f32 %v1574
    %vm1582 = vmor %vm1580, %vm1581
    %v1583 = vsel %vm1582, %v1574, %v1579
    %v1584 = vrsqrt.pop %v1549
    %v1585 = vmul.f32 %v1584, %v1549
    %v1586 = vmul.f32 %v1585, %v1584
    %v1587 = vmul.f32 0.5, %v1586
    %v1588 = vsub.f32 1.5, %v1587
    %v1589 = vmul.f32 %v1584, %v1588
    %vm1590 = vweird.f32 %v1549
    %vm1591 = vweird.f32 %v1584
    %vm1592 = vmor %vm1590, %vm1591
    %v1593 = vsel %vm1592, %v1584, %v1589
    %v1594 = vrsqrt.pop %v1550
    %v1595 = vmul.f32 %v1594, %v1550
    %v1596 = vmul.f32 %v1595, %v1594
    %v1597 = vmul.f32 0.5, %v1596
    %v1598 = vsub.f32 1.5, %v1597
    %v1599 = vmul.f32 %v1594, %v1598
    %vm1600 = vweird.f32 %v1550
    %vm1601 = vweird.f32 %v1594
    %vm1602 = vmor %vm1600, %vm1601
    %v1603 = vsel %vm1602, %v1594, %v1599
    %v1604 = vrsqrt.pop %v1551
    %v1605 = vmul.f32 %v1604, %v1551
    %v1606 = vmul.f32 %v1605, %v1604
    %v1607 = vmul.f32 0.5, %v1606
    %v1608 = vsub.f32 1.5, %v1607
    %v1609 = vmul.f32 %v1604, %v1608
    %vm1610 = vweird.f32 %v1551
    %vm1611 = vweird.f32 %v1604
    %vm1612 = vmor %vm1610, %vm1611
    %v1613 = vsel %vm1612, %v1604, %v1609
    %v1614 = vrsqrt.pop %v1552
    %v1615 = vmul.f32 %v1614, %v1552
    %v1616 = vmul.f32 %v1615, %v1614
    %v1617 = vmul.f32 0.5, %v1616
    %v1618 = vsub.f32 1.5, %v1617
    %v1619 = vmul.f32 %v1614, %v1618
    %vm1620 = vweird.f32 %v1552
    %vm1621 = vweird.f32 %v1614
    %vm1622 = vmor %vm1620, %vm1621
    %v1623 = vsel %vm1622, %v1614, %v1619
    %v1624 = vrsqrt.pop %v1553
    %v1625 = vmul.f32 %v1624, %v1553
    %v1626 = vmul.f32 %v1625, %v1624
    %v1627 = vmul.f32 0.5, %v1626
    %v1628 = vsub.f32 1.5, %v1627
    %v1629 = vmul.f32 %v1624, %v1628
    %vm1630 = vweird.f32 %v1553
    %vm1631 = vweird.f32 %v1624
    %vm1632 = vmor %vm1630, %vm1631
    %v1633 = vsel %vm1632, %v1624, %v1629
    %v1634 = vmul.f32 %v1498, %v1563
    %v1635 = vmul.f32 %v1499, %v1573
    %v1636 = vmul.f32 %v1500, %v1583
    %v1637 = vmul.f32 %v1501, %v1593
    %v1638 = vmul.f32 %v1502, %v1603
    %v1639 = vmul.f32 %v1503, %v1613
    %v1640 = vmul.f32 %v1504, %v1623
    %v1641 = vmul.f32 %v1505, %v1633
    %v1643 = vperm.slane %v1464, 0
    %v1645 = vmul.f32 %v1634, %v1643
    %v1646 = vmul.f32 %v1635, %v1643
    %v1647 = vmul.f32 %v1636, %v1643
    %v1648 = vmul.f32 %v1637, %v1643
    %v1649 = vmul.f32 %v1638, %v1643
    %v1650 = vmul.f32 %v1639, %v1643
    %v1651 = vmul.f32 %v1640, %v1643
    %v1652 = vmul.f32 %v1641, %v1643
    %v1654 = vperm.slane %v1465, 0
    %v1656 = vadd.f32 %v1645, %v1654
    %v1657 = vadd.f32 %v1646, %v1654
    %v1658 = vadd.f32 %v1647, %v1654
    %v1659 = vadd.f32 %v1648, %v1654
    %v1660 = vadd.f32 %v1649, %v1654
    %v1661 = vadd.f32 %v1650, %v1654
    %v1662 = vadd.f32 %v1651, %v1654
    %v1663 = vadd.f32 %v1652, %v1654
    %1664 = vst.msk [vmem:[#allocation10] sm:$0xff] %vm157, %v1656
    %1665 = vst.msk [vmem:[#allocation10 + $0x8] sm:$0xff] %vm157, %v1657
    %1666 = vst.msk [vmem:[#allocation10 + $0x10] sm:$0xff] %vm157, %v1658
    %1667 = vst.msk [vmem:[#allocation10 + $0x18] sm:$0xff] %vm157, %v1659
    %1668 = vst.msk [vmem:[#allocation10 + $0x20] sm:$0xff] %vm157, %v1660
    %1669 = vst.msk [vmem:[#allocation10 + $0x28] sm:$0xff] %vm157, %v1661
    %1670 = vst.msk [vmem:[#allocation10 + $0x30] sm:$0xff] %vm157, %v1662
    %1671 = vst.msk [vmem:[#allocation10 + $0x38] sm:$0xff] %vm157, %v1663
    // Predicated region
    $region73: #{tpu_custom_call.1} parent=1 // pred_check
      _
    $region74: #{tpu_custom_call.1} parent=1 // pred_check_branch
      %1673 = sbr.rel (0) target = $region76
    $region75: #{tpu_custom_call.1} parent=1 // pred_region
      %1675 = vsyncadd [#allocation6], 0
      %s1676 = sshll.u32 [#allocation10], 4
      %s1677 = int_to_ptr.vmem [resolvable:$true] %s1676
      %s1678 = sshll.u32 %s13, 4
      %s1679 = int_to_ptr.hbm [resolvable:$true] %s1678
      %1684 = dma.vmem_to_hbm [thread:$0]  %s1677, 1024, %s1679, [#allocation6], 128, 128, 8
    $region76: #{tpu_custom_call.1} parent=1 // pred_fallthru
      _
    // Predicated region
    $region77: #{tpu_custom_call.1} parent=1 // pred_check
      _
    $region78: #{tpu_custom_call.1} parent=1 // pred_check_branch
      %1686 = sbr.rel (0) target = $region80
    $region79: #{tpu_custom_call.1} parent=1 // pred_region
      %1688 = dma.done [#allocation6], 1024
    $region80: #{tpu_custom_call.1} parent=1 // pred_fallthru
      _
    %1689 = vsyncpa [#allocation5], 1
    %1690 = vsyncpa [#allocation8], 1
    %1691 = vsyncpa [#allocation6], 1

</llo_original>
